<compile_context>
chip_gen: v6e
topology: v6e:2x2x1
jax: 0.10.0
libtpu: 0.0.40
codegen_flags: <defaults>
</compile_context>

<pallas_src>
import functools

import jax
import jax.numpy as jnp
from jax.experimental import pallas as pl
from jax.experimental.pallas import tpu as pltpu

EPS = 1e-5
_MIN_GRID_STEPS = 8          # keep enough pipeline steps (2 TCs on v7x)


def _layernorm(x, w, b):
    # Single-pass stats (sum + sum-of-squares), biased variance, eps=1e-5
    # (PyTorch nn.LayerNorm defaults). x: (TS, C), w/b: (1, C).
    # Variance clamped at 0: E[x^2]-mu^2 can go slightly negative from
    # cancellation and rsqrt would then produce NaN.
    # Note: if a bundle dump ever shows the XLU slot binding, these row
    # reductions can be moved onto the (idle) MXU via a dot against ones((C,1)).
    inv_c = 1.0 / x.shape[-1]
    s = jnp.sum(x, axis=-1, keepdims=True)
    ss = jnp.sum(x * x, axis=-1, keepdims=True)
    mu = s * inv_c
    var = jnp.maximum(ss * inv_c - mu * mu, 0.0)
    return (x - mu) * jax.lax.rsqrt(var + EPS) * w + b


def _silu_to_bf16(h, compute_bf16):
    """SiLU producing a bf16 result (the matmul operand is bf16 either way).

    On v6e/v7x (bf16 VPU + EUP) the sigmoid/mul run directly in bf16;
    on v5e they stay in f32 (no bf16 VPU/EUP -> packing would cost cycles).
    """
    if compute_bf16:
        h = h.astype(jnp.bfloat16)
        return h * jax.nn.sigmoid(h)          # sigmoid -> EUP logistic slot
    return (h * jax.nn.sigmoid(h)).astype(jnp.bfloat16)


def _resblock_kernel(x_ref, mscale_ref, mshift_ref,
                     ln1_w_ref, ln1_b_ref, w1_ref,
                     ln2_w_ref, ln2_b_ref, w2_ref, b2_ref,
                     o_ref, *, silu_bf16):
    x = x_ref[0]                                              # (TS, C) f32

    # h = conv1(silu(ln1(x)))   (conv1 bias folded into mshift)
    h = _layernorm(x, ln1_w_ref[...], ln1_b_ref[...])
    h = _silu_to_bf16(h, silu_bf16)
    h = jnp.dot(h, w1_ref[...], preferred_element_type=jnp.float32)

    # adaptive modulation: h*(1+scale) + (b1*(1+scale)+shift), precomputed.
    h = h * mscale_ref[0] + mshift_ref[0]

    # h = conv2(silu(ln2(h)))
    h = _layernorm(h, ln2_w_ref[...], ln2_b_ref[...])
    h = _silu_to_bf16(h, silu_bf16)
    h = jnp.dot(h, w2_ref[...], preferred_element_type=jnp.float32) + b2_ref[...]

    o_ref[0] = (x + h).astype(o_ref.dtype)


def _bf16_elementwise_ok():
    """bf16 VPU/EUP paths exist on v6e (Trillium) and v7x, not on v4/v5e."""
    try:
        kind = jax.devices()[0].device_kind.lower()
    except Exception:
        return False
    return any(tag in kind for tag in ("v6", "v7", "trillium"))


def _pick_seq_tile(S, B, C, vmem_cap):
    """Largest sequence tile that fits the per-chip VMEM budget while still
    leaving enough grid steps to hide pipeline prologue/epilogue."""
    candidates = [t for t in (1024, 512, 256, 128, 64, 32, 16, 8) if S % t == 0]
    if not candidates:
        return S
    budget = int(vmem_cap * 0.5)           # headroom for Mosaic temporaries

    def fits(ts):
        tile_bytes = (2 * 2 * ts * C * 4   # double-buffered f32 x + out tiles
                      + 2 * C * C * 2      # bf16 conv weights (single-buffered)
                      + 8 * ts * C * 4     # in-body f32/bf16 temporaries (rough)
                      + 64 * C * 4)        # LN params / biases / modulation
        return tile_bytes <= budget

    fitting = [t for t in candidates if fits(t)] or [candidates[-1]]
    for ts in fitting:                     # largest first
        if B * (S // ts) >= _MIN_GRID_STEPS:
            return ts
    return fitting[-1]                     # maximize steps if none reach the min


@functools.partial(jax.jit, static_argnames=("single_buffer_consts",))
def resblock_forward(x, temb, params, *, single_buffer_consts=True):
    """x: (B, S, C) f32, temb: (B, T) f32. Returns (B, S, C) f32."""
    B, S, C = x.shape

    # Generation-aware VMEM budget (v7x: 64 MiB; v5e/v6e: 128 MiB).
    try:
        vmem_cap = int(pltpu.get_tpu_info().vmem_capacity_bytes)
    except Exception:
        vmem_cap = 64 << 20                # conservative default (v7x)

    TS = _pick_seq_tile(S, B, C, vmem_cap)
    n_s = S // TS
    silu_bf16 = _bf16_elementwise_ok()

    # Hoist the 1-row time-embedding projection; fold conv1 bias and the "+1"
    # of the modulation into per-batch vectors (one fewer kernel input, two
    # fewer full-tile VPU adds per grid step).
    te = temb.astype(jnp.float32) @ params["tproj_w"] + params["tproj_b"][0]
    scale, shift = jnp.split(te, 2, axis=-1)              # each (B, C)
    mod_scale = 1.0 + scale
    mod_shift = params["b1"][0] * mod_scale + shift
    mod_scale = mod_scale.reshape(B, 1, C)
    mod_shift = mod_shift.reshape(B, 1, C)

    const_mode = pl.Buffered(1) if single_buffer_consts else None

    def const_spec(shape):
        # Constant index_map across the whole grid -> single buffer is enough.
        idx = lambda b, s: (0,) * len(shape)
        if const_mode is not None:
            return pl.BlockSpec(shape, idx, pipeline_mode=const_mode)
        return pl.BlockSpec(shape, idx)

    perbatch_spec = pl.BlockSpec((1, 1, C), lambda b, s: (b, 0, 0))

    w_buf = 1 if single_buffer_consts else 2
    vmem_needed = (2 * 2 * TS * C * 4          # double-buffered f32 x + out tiles
                   + w_buf * 2 * C * C * 2     # bf16 conv weights
                   + 8 * TS * C * 4            # in-body temporaries (rough)
                   + 64 * C * 4                # small vectors
                   + (8 << 20))                # slack for compiler temporaries
    vmem_limit = int(min(max(vmem_needed, 32 << 20), int(0.9 * vmem_cap)))

    kernel = functools.partial(_resblock_kernel, silu_bf16=silu_bf16)

    return pl.pallas_call(
        kernel,
        out_shape=jax.ShapeDtypeStruct((B, S, C), x.dtype),
        grid_spec=pltpu.PrefetchScalarGridSpec(
            num_scalar_prefetch=0,
            grid=(B, n_s),
            in_specs=[
                pl.BlockSpec((1, TS, C), lambda b, s: (b, s, 0)),   # x
                perbatch_spec,            # mod_scale (B, 1, C)
                perbatch_spec,            # mod_shift (B, 1, C)
                const_spec((1, C)),       # ln1 weight
                const_spec((1, C)),       # ln1 bias
                const_spec((C, C)),       # conv1 weight (transposed, bf16)
                const_spec((1, C)),       # ln2 weight
                const_spec((1, C)),       # ln2 bias
                const_spec((C, C)),       # conv2 weight (transposed, bf16)
                const_spec((1, C)),       # conv2 bias
            ],
            out_specs=pl.BlockSpec((1, TS, C), lambda b, s: (b, s, 0)),
        ),
        compiler_params=pltpu.CompilerParams(
            dimension_semantics=("parallel", "parallel"),
            vmem_limit_bytes=vmem_limit),
    )(x, mod_scale, mod_shift,
      params["ln1_w"], params["ln1_b"], params["w1"],
      params["ln2_w"], params["ln2_b"], params["w2"], params["b2"])


def init_params(key, channels, time_embed_dim):
    C, T = channels, time_embed_dim
    ks = jax.random.split(key, 6)
    return {
        # LayerNorm: weight=1, bias=0 (PyTorch default init).
        "ln1_w": jnp.ones((1, C), jnp.float32),
        "ln1_b": jnp.zeros((1, C), jnp.float32),
        "ln2_w": jnp.ones((1, C), jnp.float32),
        "ln2_b": jnp.zeros((1, C), jnp.float32),
        # Linear layers stored pre-transposed as (in, out); y = x @ W + b.
        "tproj_w": jax.random.normal(ks[0], (T, 2 * C), jnp.float32) * 0.05,
        "tproj_b": jax.random.normal(ks[1], (1, 2 * C), jnp.float32) * 0.05,
        # conv1/conv2 weights in bf16 (MXU-native, half the DMA/VMEM bytes).
        "w1": (jax.random.normal(ks[2], (C, C), jnp.float32) * 0.05
               ).astype(jnp.bfloat16),
        "b1": jax.random.normal(ks[3], (1, C), jnp.float32) * 0.05,
        "w2": (jax.random.normal(ks[4], (C, C), jnp.float32) * 0.05
               ).astype(jnp.bfloat16),
        "b2": jax.random.normal(ks[5], (1, C), jnp.float32) * 0.05,
    }


def resblock_ref(x, temb, p):
    """Pure-JAX f32 reference mirroring the PyTorch forward."""
    def ln(h, w, b):
        mu = jnp.mean(h, axis=-1, keepdims=True)
        var = jnp.mean((h - mu) ** 2, axis=-1, keepdims=True)
        return (h - mu) / jnp.sqrt(var + EPS) * w[0] + b[0]

    h = ln(x, p["ln1_w"], p["ln1_b"])
    h = jax.nn.silu(h)
    h = h @ p["w1"].astype(jnp.float32) + p["b1"][0]
    te = temb @ p["tproj_w"] + p["tproj_b"][0]            # (B, 2C)
    scale, shift = jnp.split(te, 2, axis=-1)
    h = h * (1.0 + scale[:, None, :]) + shift[:, None, :]
    h = ln(h, p["ln2_w"], p["ln2_b"])
    h = jax.nn.silu(h)
    h = h @ p["w2"].astype(jnp.float32) + p["b2"][0]
    return x + h


if __name__ == "__main__":
    # Lane-dense, tile-aligned demo shapes: C multiple of 128, S multiple of
    # the sequence tile.
    B, S, C, T = 2, 512, 128, 64
    key = jax.random.PRNGKey(0)
    kx, kt, kp = jax.random.split(key, 3)

    x = jax.random.normal(kx, (B, S, C), jnp.float32)
    temb = jax.random.normal(kt, (B, T), jnp.float32)
    params = init_params(kp, C, T)

    try:
        out = jax.block_until_ready(resblock_forward(x, temb, params))
    except Exception:
        # Fallback: default double-buffered pipelining for the constant
        # operands, in case pipeline_mode=pl.Buffered(1) is not supported by
        # the installed jax version.
        out = jax.block_until_ready(
            resblock_forward(x, temb, params, single_buffer_consts=False))

    ref = resblock_ref(x, temb, params)
    assert out.shape == (B, S, C)
    # bf16 matmul operands (+ bf16 SiLU on v6e/v7x) vs. the f32 reference.
    max_err = jnp.max(jnp.abs(out - ref))
    assert jnp.allclose(out, ref, atol=3e-2, rtol=3e-2), f"max err {max_err}"

    print("KERNEL_OK")
</pallas_src>

<mosaic_0001>
module attributes {stable_mosaic.version = 11 : i64} {
  func.func @_resblock_kernel(%arg0: i32, %arg1: i32, %arg2: memref<1x128x128xf32, #tpu.memory_space<vmem>>, %arg3: memref<1x1x128xf32, #tpu.memory_space<vmem>>, %arg4: memref<1x1x128xf32, #tpu.memory_space<vmem>>, %arg5: memref<1x128xf32, #tpu.memory_space<vmem>>, %arg6: memref<1x128xf32, #tpu.memory_space<vmem>>, %arg7: memref<128x128xbf16, #tpu.memory_space<vmem>>, %arg8: memref<1x128xf32, #tpu.memory_space<vmem>>, %arg9: memref<1x128xf32, #tpu.memory_space<vmem>>, %arg10: memref<128x128xbf16, #tpu.memory_space<vmem>>, %arg11: memref<1x128xf32, #tpu.memory_space<vmem>>, %arg12: memref<1x128x128xf32, #tpu.memory_space<vmem>>) attributes {dimension_semantics = [#tpu.dimension_semantics<parallel>, #tpu.dimension_semantics<parallel>], iteration_bounds = array<i64: 2, 4>, scalar_prefetch = 0 : i64, scratch_operands = 0 : i64, tpu.core_type = #tpu.core_type<tc>, window_params = [{transform_indices = @transform_0, window_bounds = array<i64: 1, 128, 128>}, {transform_indices = @transform_1, window_bounds = array<i64: 1, 1, 128>}, {transform_indices = @transform_2, window_bounds = array<i64: 1, 1, 128>}, {pipeline_mode = #tpu.pipeline_mode<synchronous>, transform_indices = @transform_3, window_bounds = array<i64: 1, 128>}, {pipeline_mode = #tpu.pipeline_mode<synchronous>, transform_indices = @transform_4, window_bounds = array<i64: 1, 128>}, {pipeline_mode = #tpu.pipeline_mode<synchronous>, transform_indices = @transform_5, window_bounds = array<i64: 128, 128>}, {pipeline_mode = #tpu.pipeline_mode<synchronous>, transform_indices = @transform_6, window_bounds = array<i64: 1, 128>}, {pipeline_mode = #tpu.pipeline_mode<synchronous>, transform_indices = @transform_7, window_bounds = array<i64: 1, 128>}, {pipeline_mode = #tpu.pipeline_mode<synchronous>, transform_indices = @transform_8, window_bounds = array<i64: 128, 128>}, {pipeline_mode = #tpu.pipeline_mode<synchronous>, transform_indices = @transform_9, window_bounds = array<i64: 1, 128>}, {transform_indices = @transform_10, window_bounds = array<i64: 1, 128, 128>}]} {
    %c0 = arith.constant 0 : index
    %c0_0 = arith.constant 0 : index
    %c0_1 = arith.constant 0 : index
    %0 = vector.load %arg2[%c0, %c0_0, %c0_1] : memref<1x128x128xf32, #tpu.memory_space<vmem>>, vector<1x128x128xf32>
    %1 = vector.shape_cast %0 : vector<1x128x128xf32> to vector<128x128xf32>
    %c0_2 = arith.constant 0 : index
    %c0_3 = arith.constant 0 : index
    %2 = vector.load %arg5[%c0_2, %c0_3] : memref<1x128xf32, #tpu.memory_space<vmem>>, vector<1x128xf32>
    %c0_4 = arith.constant 0 : index
    %c0_5 = arith.constant 0 : index
    %3 = vector.load %arg6[%c0_4, %c0_5] : memref<1x128xf32, #tpu.memory_space<vmem>>, vector<1x128xf32>
    %cst = arith.constant dense<0.000000e+00> : vector<128xf32>
    %4 = vector.multi_reduction <add>, %1, %cst [1] : vector<128x128xf32> to vector<128xf32>
    %5 = vector.shape_cast %4 : vector<128xf32> to vector<128x1xf32>
    %6 = arith.mulf %1, %1 : vector<128x128xf32>
    %cst_6 = arith.constant dense<0.000000e+00> : vector<128xf32>
    %7 = vector.multi_reduction <add>, %6, %cst_6 [1] : vector<128x128xf32> to vector<128xf32>
    %8 = vector.shape_cast %7 : vector<128xf32> to vector<128x1xf32>
    %cst_7 = arith.constant 7.812500e-03 : f32
    %9 = vector.broadcast %cst_7 : f32 to vector<128x1xf32>
    %10 = arith.mulf %5, %9 : vector<128x1xf32>
    %cst_8 = arith.constant 7.812500e-03 : f32
    %11 = vector.broadcast %cst_8 : f32 to vector<128x1xf32>
    %12 = arith.mulf %8, %11 : vector<128x1xf32>
    %13 = arith.mulf %10, %10 : vector<128x1xf32>
    %14 = arith.subf %12, %13 : vector<128x1xf32>
    %cst_9 = arith.constant 0.000000e+00 : f32
    %15 = vector.broadcast %cst_9 : f32 to vector<128x1xf32>
    %16 = arith.maximumf %14, %15 : vector<128x1xf32>
    %17 = vector.broadcast %10 : vector<128x1xf32> to vector<128x128xf32>
    %18 = arith.subf %1, %17 : vector<128x128xf32>
    %cst_10 = arith.constant 9.99999974E-6 : f32
    %19 = vector.broadcast %cst_10 : f32 to vector<128x1xf32>
    %20 = arith.addf %16, %19 : vector<128x1xf32>
    %21 = math.rsqrt %20 : vector<128x1xf32>
    %22 = vector.broadcast %21 : vector<128x1xf32> to vector<128x128xf32>
    %23 = arith.mulf %18, %22 : vector<128x128xf32>
    %24 = vector.broadcast %2 : vector<1x128xf32> to vector<128x128xf32>
    %25 = arith.mulf %23, %24 : vector<128x128xf32>
    %26 = vector.broadcast %3 : vector<1x128xf32> to vector<128x128xf32>
    %27 = arith.addf %25, %26 : vector<128x128xf32>
    %28 = arith.negf %27 : vector<128x128xf32>
    %29 = math.exp %28 : vector<128x128xf32>
    %cst_11 = arith.constant 1.000000e+00 : f32
    %30 = vector.broadcast %cst_11 : f32 to vector<128x128xf32>
    %31 = arith.addf %30, %29 : vector<128x128xf32>
    %32 = arith.divf %30, %31 : vector<128x128xf32>
    %33 = arith.mulf %27, %32 : vector<128x128xf32>
    %34 = arith.truncf %33 : vector<128x128xf32> to vector<128x128xbf16>
    %c0_12 = arith.constant 0 : index
    %c0_13 = arith.constant 0 : index
    %35 = vector.load %arg7[%c0_12, %c0_13] : memref<128x128xbf16, #tpu.memory_space<vmem>>, vector<128x128xbf16>
    %cst_14 = arith.constant dense<0.000000e+00> : vector<128x128xf32>
    %36 = tpu.matmul %34, %35, %cst_14 {dimension_numbers = #tpu.dot_dimension_numbers<[1], [0], [0], [1], [0, 0, 1, 1], [], []>} : vector<128x128xbf16>, vector<128x128xbf16>, vector<128x128xf32> -> vector<128x128xf32>
    %c0_15 = arith.constant 0 : index
    %c0_16 = arith.constant 0 : index
    %c0_17 = arith.constant 0 : index
    %37 = vector.load %arg3[%c0_15, %c0_16, %c0_17] : memref<1x1x128xf32, #tpu.memory_space<vmem>>, vector<1x1x128xf32>
    %38 = vector.shape_cast %37 : vector<1x1x128xf32> to vector<1x128xf32>
    %39 = vector.broadcast %38 : vector<1x128xf32> to vector<128x128xf32>
    %40 = arith.mulf %36, %39 : vector<128x128xf32>
    %c0_18 = arith.constant 0 : index
    %c0_19 = arith.constant 0 : index
    %c0_20 = arith.constant 0 : index
    %41 = vector.load %arg4[%c0_18, %c0_19, %c0_20] : memref<1x1x128xf32, #tpu.memory_space<vmem>>, vector<1x1x128xf32>
    %42 = vector.shape_cast %41 : vector<1x1x128xf32> to vector<1x128xf32>
    %43 = vector.broadcast %42 : vector<1x128xf32> to vector<128x128xf32>
    %44 = arith.addf %40, %43 : vector<128x128xf32>
    %c0_21 = arith.constant 0 : index
    %c0_22 = arith.constant 0 : index
    %45 = vector.load %arg8[%c0_21, %c0_22] : memref<1x128xf32, #tpu.memory_space<vmem>>, vector<1x128xf32>
    %c0_23 = arith.constant 0 : index
    %c0_24 = arith.constant 0 : index
    %46 = vector.load %arg9[%c0_23, %c0_24] : memref<1x128xf32, #tpu.memory_space<vmem>>, vector<1x128xf32>
    %cst_25 = arith.constant dense<0.000000e+00> : vector<128xf32>
    %47 = vector.multi_reduction <add>, %44, %cst_25 [1] : vector<128x128xf32> to vector<128xf32>
    %48 = vector.shape_cast %47 : vector<128xf32> to vector<128x1xf32>
    %49 = arith.mulf %44, %44 : vector<128x128xf32>
    %cst_26 = arith.constant dense<0.000000e+00> : vector<128xf32>
    %50 = vector.multi_reduction <add>, %49, %cst_26 [1] : vector<128x128xf32> to vector<128xf32>
    %51 = vector.shape_cast %50 : vector<128xf32> to vector<128x1xf32>
    %cst_27 = arith.constant 7.812500e-03 : f32
    %52 = vector.broadcast %cst_27 : f32 to vector<128x1xf32>
    %53 = arith.mulf %48, %52 : vector<128x1xf32>
    %cst_28 = arith.constant 7.812500e-03 : f32
    %54 = vector.broadcast %cst_28 : f32 to vector<128x1xf32>
    %55 = arith.mulf %51, %54 : vector<128x1xf32>
    %56 = arith.mulf %53, %53 : vector<128x1xf32>
    %57 = arith.subf %55, %56 : vector<128x1xf32>
    %cst_29 = arith.constant 0.000000e+00 : f32
    %58 = vector.broadcast %cst_29 : f32 to vector<128x1xf32>
    %59 = arith.maximumf %57, %58 : vector<128x1xf32>
    %60 = vector.broadcast %53 : vector<128x1xf32> to vector<128x128xf32>
    %61 = arith.subf %44, %60 : vector<128x128xf32>
    %cst_30 = arith.constant 9.99999974E-6 : f32
    %62 = vector.broadcast %cst_30 : f32 to vector<128x1xf32>
    %63 = arith.addf %59, %62 : vector<128x1xf32>
    %64 = math.rsqrt %63 : vector<128x1xf32>
    %65 = vector.broadcast %64 : vector<128x1xf32> to vector<128x128xf32>
    %66 = arith.mulf %61, %65 : vector<128x128xf32>
    %67 = vector.broadcast %45 : vector<1x128xf32> to vector<128x128xf32>
    %68 = arith.mulf %66, %67 : vector<128x128xf32>
    %69 = vector.broadcast %46 : vector<1x128xf32> to vector<128x128xf32>
    %70 = arith.addf %68, %69 : vector<128x128xf32>
    %71 = arith.negf %70 : vector<128x128xf32>
    %72 = math.exp %71 : vector<128x128xf32>
    %cst_31 = arith.constant 1.000000e+00 : f32
    %73 = vector.broadcast %cst_31 : f32 to vector<128x128xf32>
    %74 = arith.addf %73, %72 : vector<128x128xf32>
    %75 = arith.divf %73, %74 : vector<128x128xf32>
    %76 = arith.mulf %70, %75 : vector<128x128xf32>
    %77 = arith.truncf %76 : vector<128x128xf32> to vector<128x128xbf16>
    %c0_32 = arith.constant 0 : index
    %c0_33 = arith.constant 0 : index
    %78 = vector.load %arg10[%c0_32, %c0_33] : memref<128x128xbf16, #tpu.memory_space<vmem>>, vector<128x128xbf16>
    %cst_34 = arith.constant dense<0.000000e+00> : vector<128x128xf32>
    %79 = tpu.matmul %77, %78, %cst_34 {dimension_numbers = #tpu.dot_dimension_numbers<[1], [0], [0], [1], [0, 0, 1, 1], [], []>} : vector<128x128xbf16>, vector<128x128xbf16>, vector<128x128xf32> -> vector<128x128xf32>
    %c0_35 = arith.constant 0 : index
    %c0_36 = arith.constant 0 : index
    %80 = vector.load %arg11[%c0_35, %c0_36] : memref<1x128xf32, #tpu.memory_space<vmem>>, vector<1x128xf32>
    %81 = vector.broadcast %80 : vector<1x128xf32> to vector<128x128xf32>
    %82 = arith.addf %79, %81 : vector<128x128xf32>
    %83 = arith.addf %1, %82 : vector<128x128xf32>
    %c0_37 = arith.constant 0 : index
    %c0_38 = arith.constant 0 : index
    %c0_39 = arith.constant 0 : index
    %84 = vector.load %arg12[%c0_37, %c0_38, %c0_39] : memref<1x128x128xf32, #tpu.memory_space<vmem>>, vector<1x128x128xf32>
    %85 = vector.shape_cast %84 : vector<1x128x128xf32> to vector<128x128xf32>
    %86 = vector.shape_cast %83 : vector<128x128xf32> to vector<1x128x128xf32>
    tpu.vector_store %arg12[%c0_37, %c0_38, %c0_39], %86 {strides = array<i32>} : memref<1x128x128xf32, #tpu.memory_space<vmem>>, vector<1x128x128xf32>,
    return
  }
  func.func @transform_0(%arg0: i32, %arg1: i32) -> (i32, i32, i32) {
    %c0_i32 = arith.constant 0 : i32
    %c0_i32_0 = arith.constant 0 : i32
    return %arg0, %arg1, %c0_i32 : i32, i32, i32
  }
  func.func @transform_1(%arg0: i32, %arg1: i32) -> (i32, i32, i32) {
    %c0_i32 = arith.constant 0 : i32
    %c0_i32_0 = arith.constant 0 : i32
    %c0_i32_1 = arith.constant 0 : i32
    return %arg0, %c0_i32, %c0_i32_0 : i32, i32, i32
  }
  func.func @transform_2(%arg0: i32, %arg1: i32) -> (i32, i32, i32) {
    %c0_i32 = arith.constant 0 : i32
    %c0_i32_0 = arith.constant 0 : i32
    %c0_i32_1 = arith.constant 0 : i32
    return %arg0, %c0_i32, %c0_i32_0 : i32, i32, i32
  }
  func.func @transform_3(%arg0: i32, %arg1: i32) -> (i32, i32) {
    %c0_i32 = arith.constant 0 : i32
    %c0_i32_0 = arith.constant 0 : i32
    %c0_i32_1 = arith.constant 0 : i32
    return %c0_i32, %c0_i32_0 : i32, i32
  }
  func.func @transform_4(%arg0: i32, %arg1: i32) -> (i32, i32) {
    %c0_i32 = arith.constant 0 : i32
    %c0_i32_0 = arith.constant 0 : i32
    %c0_i32_1 = arith.constant 0 : i32
    return %c0_i32, %c0_i32_0 : i32, i32
  }
  func.func @transform_5(%arg0: i32, %arg1: i32) -> (i32, i32) {
    %c0_i32 = arith.constant 0 : i32
    %c0_i32_0 = arith.constant 0 : i32
    %c0_i32_1 = arith.constant 0 : i32
    return %c0_i32, %c0_i32_0 : i32, i32
  }
  func.func @transform_6(%arg0: i32, %arg1: i32) -> (i32, i32) {
    %c0_i32 = arith.constant 0 : i32
    %c0_i32_0 = arith.constant 0 : i32
    %c0_i32_1 = arith.constant 0 : i32
    return %c0_i32, %c0_i32_0 : i32, i32
  }
  func.func @transform_7(%arg0: i32, %arg1: i32) -> (i32, i32) {
    %c0_i32 = arith.constant 0 : i32
    %c0_i32_0 = arith.constant 0 : i32
    %c0_i32_1 = arith.constant 0 : i32
    return %c0_i32, %c0_i32_0 : i32, i32
  }
  func.func @transform_8(%arg0: i32, %arg1: i32) -> (i32, i32) {
    %c0_i32 = arith.constant 0 : i32
    %c0_i32_0 = arith.constant 0 : i32
    %c0_i32_1 = arith.constant 0 : i32
    return %c0_i32, %c0_i32_0 : i32, i32
  }
  func.func @transform_9(%arg0: i32, %arg1: i32) -> (i32, i32) {
    %c0_i32 = arith.constant 0 : i32
    %c0_i32_0 = arith.constant 0 : i32
    %c0_i32_1 = arith.constant 0 : i32
    return %c0_i32, %c0_i32_0 : i32, i32
  }
  func.func @transform_10(%arg0: i32, %arg1: i32) -> (i32, i32, i32) {
    %c0_i32 = arith.constant 0 : i32
    %c0_i32_0 = arith.constant 0 : i32
    return %arg0, %arg1, %c0_i32 : i32, i32, i32
  }
}

module attributes {stable_mosaic.version = 11 : i64} {
  func.func @_resblock_kernel(%arg0: i32, %arg1: i32, %arg2: memref<1x128x128xf32, #tpu.memory_space<vmem>>, %arg3: memref<1x1x128xf32, #tpu.memory_space<vmem>>, %arg4: memref<1x1x128xf32, #tpu.memory_space<vmem>>, %arg5: memref<1x128xf32, #tpu.memory_space<vmem>>, %arg6: memref<1x128xf32, #tpu.memory_space<vmem>>, %arg7: memref<128x128xbf16, #tpu.memory_space<vmem>>, %arg8: memref<1x128xf32, #tpu.memory_space<vmem>>, %arg9: memref<1x128xf32, #tpu.memory_space<vmem>>, %arg10: memref<128x128xbf16, #tpu.memory_space<vmem>>, %arg11: memref<1x128xf32, #tpu.memory_space<vmem>>, %arg12: memref<1x128x128xf32, #tpu.memory_space<vmem>>) attributes {dimension_semantics = [#tpu.dimension_semantics<parallel>, #tpu.dimension_semantics<parallel>], iteration_bounds = array<i64: 2, 4>, scalar_prefetch = 0 : i64, scratch_operands = 0 : i64, tpu.core_type = #tpu.core_type<tc>, window_params = [{transform_indices = @transform_0, window_bounds = array<i64: 1, 128, 128>}, {transform_indices = @transform_1, window_bounds = array<i64: 1, 1, 128>}, {transform_indices = @transform_2, window_bounds = array<i64: 1, 1, 128>}, {pipeline_mode = #tpu.pipeline_mode<synchronous>, transform_indices = @transform_3, window_bounds = array<i64: 1, 128>}, {pipeline_mode = #tpu.pipeline_mode<synchronous>, transform_indices = @transform_4, window_bounds = array<i64: 1, 128>}, {pipeline_mode = #tpu.pipeline_mode<synchronous>, transform_indices = @transform_5, window_bounds = array<i64: 128, 128>}, {pipeline_mode = #tpu.pipeline_mode<synchronous>, transform_indices = @transform_6, window_bounds = array<i64: 1, 128>}, {pipeline_mode = #tpu.pipeline_mode<synchronous>, transform_indices = @transform_7, window_bounds = array<i64: 1, 128>}, {pipeline_mode = #tpu.pipeline_mode<synchronous>, transform_indices = @transform_8, window_bounds = array<i64: 128, 128>}, {pipeline_mode = #tpu.pipeline_mode<synchronous>, transform_indices = @transform_9, window_bounds = array<i64: 1, 128>}, {transform_indices = @transform_10, window_bounds = array<i64: 1, 128, 128>}]} {
    %c0 = arith.constant 0 : index
    %c0_0 = arith.constant 0 : index
    %c0_1 = arith.constant 0 : index
    %0 = vector.load %arg2[%c0, %c0_0, %c0_1] : memref<1x128x128xf32, #tpu.memory_space<vmem>>, vector<1x128x128xf32>
    %1 = vector.shape_cast %0 : vector<1x128x128xf32> to vector<128x128xf32>
    %c0_2 = arith.constant 0 : index
    %c0_3 = arith.constant 0 : index
    %2 = vector.load %arg5[%c0_2, %c0_3] : memref<1x128xf32, #tpu.memory_space<vmem>>, vector<1x128xf32>
    %c0_4 = arith.constant 0 : index
    %c0_5 = arith.constant 0 : index
    %3 = vector.load %arg6[%c0_4, %c0_5] : memref<1x128xf32, #tpu.memory_space<vmem>>, vector<1x128xf32>
    %cst = arith.constant dense<0.000000e+00> : vector<128xf32>
    %4 = vector.multi_reduction <add>, %1, %cst [1] : vector<128x128xf32> to vector<128xf32>
    %5 = vector.shape_cast %4 : vector<128xf32> to vector<128x1xf32>
    %6 = arith.mulf %1, %1 : vector<128x128xf32>
    %cst_6 = arith.constant dense<0.000000e+00> : vector<128xf32>
    %7 = vector.multi_reduction <add>, %6, %cst_6 [1] : vector<128x128xf32> to vector<128xf32>
    %8 = vector.shape_cast %7 : vector<128xf32> to vector<128x1xf32>
    %cst_7 = arith.constant 7.812500e-03 : f32
    %9 = vector.broadcast %cst_7 : f32 to vector<128x1xf32>
    %10 = arith.mulf %5, %9 : vector<128x1xf32>
    %cst_8 = arith.constant 7.812500e-03 : f32
    %11 = vector.broadcast %cst_8 : f32 to vector<128x1xf32>
    %12 = arith.mulf %8, %11 : vector<128x1xf32>
    %13 = arith.mulf %10, %10 : vector<128x1xf32>
    %14 = arith.subf %12, %13 : vector<128x1xf32>
    %cst_9 = arith.constant 0.000000e+00 : f32
    %15 = vector.broadcast %cst_9 : f32 to vector<128x1xf32>
    %16 = arith.maximumf %14, %15 : vector<128x1xf32>
    %17 = vector.broadcast %10 : vector<128x1xf32> to vector<128x128xf32>
    %18 = arith.subf %1, %17 : vector<128x128xf32>
    %cst_10 = arith.constant 9.99999974E-6 : f32
    %19 = vector.broadcast %cst_10 : f32 to vector<128x1xf32>
    %20 = arith.addf %16, %19 : vector<128x1xf32>
    %21 = math.rsqrt %20 : vector<128x1xf32>
    %22 = vector.broadcast %21 : vector<128x1xf32> to vector<128x128xf32>
    %23 = arith.mulf %18, %22 : vector<128x128xf32>
    %24 = vector.broadcast %2 : vector<1x128xf32> to vector<128x128xf32>
    %25 = arith.mulf %23, %24 : vector<128x128xf32>
    %26 = vector.broadcast %3 : vector<1x128xf32> to vector<128x128xf32>
    %27 = arith.addf %25, %26 : vector<128x128xf32>
    %28 = arith.negf %27 : vector<128x128xf32>
    %29 = math.exp %28 : vector<128x128xf32>
    %cst_11 = arith.constant 1.000000e+00 : f32
    %30 = vector.broadcast %cst_11 : f32 to vector<128x128xf32>
    %31 = arith.addf %30, %29 : vector<128x128xf32>
    %32 = arith.divf %30, %31 : vector<128x128xf32>
    %33 = arith.mulf %27, %32 : vector<128x128xf32>
    %34 = arith.truncf %33 : vector<128x128xf32> to vector<128x128xbf16>
    %c0_12 = arith.constant 0 : index
    %c0_13 = arith.constant 0 : index
    %35 = vector.load %arg7[%c0_12, %c0_13] : memref<128x128xbf16, #tpu.memory_space<vmem>>, vector<128x128xbf16>
    %cst_14 = arith.constant dense<0.000000e+00> : vector<128x128xf32>
    %36 = tpu.matmul %34, %35, %cst_14 {dimension_numbers = #tpu.dot_dimension_numbers<[1], [0], [0], [1], [0, 0, 1, 1], [], []>} : vector<128x128xbf16>, vector<128x128xbf16>, vector<128x128xf32> -> vector<128x128xf32>
    %c0_15 = arith.constant 0 : index
    %c0_16 = arith.constant 0 : index
    %c0_17 = arith.constant 0 : index
    %37 = vector.load %arg3[%c0_15, %c0_16, %c0_17] : memref<1x1x128xf32, #tpu.memory_space<vmem>>, vector<1x1x128xf32>
    %38 = vector.shape_cast %37 : vector<1x1x128xf32> to vector<1x128xf32>
    %39 = vector.broadcast %38 : vector<1x128xf32> to vector<128x128xf32>
    %40 = arith.mulf %36, %39 : vector<128x128xf32>
    %c0_18 = arith.constant 0 : index
    %c0_19 = arith.constant 0 : index
    %c0_20 = arith.constant 0 : index
    %41 = vector.load %arg4[%c0_18, %c0_19, %c0_20] : memref<1x1x128xf32, #tpu.memory_space<vmem>>, vector<1x1x128xf32>
    %42 = vector.shape_cast %41 : vector<1x1x128xf32> to vector<1x128xf32>
    %43 = vector.broadcast %42 : vector<1x128xf32> to vector<128x128xf32>
    %44 = arith.addf %40, %43 : vector<128x128xf32>
    %c0_21 = arith.constant 0 : index
    %c0_22 = arith.constant 0 : index
    %45 = vector.load %arg8[%c0_21, %c0_22] : memref<1x128xf32, #tpu.memory_space<vmem>>, vector<1x128xf32>
    %c0_23 = arith.constant 0 : index
    %c0_24 = arith.constant 0 : index
    %46 = vector.load %arg9[%c0_23, %c0_24] : memref<1x128xf32, #tpu.memory_space<vmem>>, vector<1x128xf32>
    %cst_25 = arith.constant dense<0.000000e+00> : vector<128xf32>
    %47 = vector.multi_reduction <add>, %44, %cst_25 [1] : vector<128x128xf32> to vector<128xf32>
    %48 = vector.shape_cast %47 : vector<128xf32> to vector<128x1xf32>
    %49 = arith.mulf %44, %44 : vector<128x128xf32>
    %cst_26 = arith.constant dense<0.000000e+00> : vector<128xf32>
    %50 = vector.multi_reduction <add>, %49, %cst_26 [1] : vector<128x128xf32> to vector<128xf32>
    %51 = vector.shape_cast %50 : vector<128xf32> to vector<128x1xf32>
    %cst_27 = arith.constant 7.812500e-03 : f32
    %52 = vector.broadcast %cst_27 : f32 to vector<128x1xf32>
    %53 = arith.mulf %48, %52 : vector<128x1xf32>
    %cst_28 = arith.constant 7.812500e-03 : f32
    %54 = vector.broadcast %cst_28 : f32 to vector<128x1xf32>
    %55 = arith.mulf %51, %54 : vector<128x1xf32>
    %56 = arith.mulf %53, %53 : vector<128x1xf32>
    %57 = arith.subf %55, %56 : vector<128x1xf32>
    %cst_29 = arith.constant 0.000000e+00 : f32
    %58 = vector.broadcast %cst_29 : f32 to vector<128x1xf32>
    %59 = arith.maximumf %57, %58 : vector<128x1xf32>
    %60 = vector.broadcast %53 : vector<128x1xf32> to vector<128x128xf32>
    %61 = arith.subf %44, %60 : vector<128x128xf32>
    %cst_30 = arith.constant 9.99999974E-6 : f32
    %62 = vector.broadcast %cst_30 : f32 to vector<128x1xf32>
    %63 = arith.addf %59, %62 : vector<128x1xf32>
    %64 = math.rsqrt %63 : vector<128x1xf32>
    %65 = vector.broadcast %64 : vector<128x1xf32> to vector<128x128xf32>
    %66 = arith.mulf %61, %65 : vector<128x128xf32>
    %67 = vector.broadcast %45 : vector<1x128xf32> to vector<128x128xf32>
    %68 = arith.mulf %66, %67 : vector<128x128xf32>
    %69 = vector.broadcast %46 : vector<1x128xf32> to vector<128x128xf32>
    %70 = arith.addf %68, %69 : vector<128x128xf32>
    %71 = arith.negf %70 : vector<128x128xf32>
    %72 = math.exp %71 : vector<128x128xf32>
    %cst_31 = arith.constant 1.000000e+00 : f32
    %73 = vector.broadcast %cst_31 : f32 to vector<128x128xf32>
    %74 = arith.addf %73, %72 : vector<128x128xf32>
    %75 = arith.divf %73, %74 : vector<128x128xf32>
    %76 = arith.mulf %70, %75 : vector<128x128xf32>
    %77 = arith.truncf %76 : vector<128x128xf32> to vector<128x128xbf16>
    %c0_32 = arith.constant 0 : index
    %c0_33 = arith.constant 0 : index
    %78 = vector.load %arg10[%c0_32, %c0_33] : memref<128x128xbf16, #tpu.memory_space<vmem>>, vector<128x128xbf16>
    %cst_34 = arith.constant dense<0.000000e+00> : vector<128x128xf32>
    %79 = tpu.matmul %77, %78, %cst_34 {dimension_numbers = #tpu.dot_dimension_numbers<[1], [0], [0], [1], [0, 0, 1, 1], [], []>} : vector<128x128xbf16>, vector<128x128xbf16>, vector<128x128xf32> -> vector<128x128xf32>
    %c0_35 = arith.constant 0 : index
    %c0_36 = arith.constant 0 : index
    %80 = vector.load %arg11[%c0_35, %c0_36] : memref<1x128xf32, #tpu.memory_space<vmem>>, vector<1x128xf32>
    %81 = vector.broadcast %80 : vector<1x128xf32> to vector<128x128xf32>
    %82 = arith.addf %79, %81 : vector<128x128xf32>
    %83 = arith.addf %1, %82 : vector<128x128xf32>
    %c0_37 = arith.constant 0 : index
    %c0_38 = arith.constant 0 : index
    %c0_39 = arith.constant 0 : index
    %84 = vector.load %arg12[%c0_37, %c0_38, %c0_39] : memref<1x128x128xf32, #tpu.memory_space<vmem>>, vector<1x128x128xf32>
    %85 = vector.shape_cast %84 : vector<1x128x128xf32> to vector<128x128xf32>
    %86 = vector.shape_cast %83 : vector<128x128xf32> to vector<1x128x128xf32>
    tpu.vector_store %arg12[%c0_37, %c0_38, %c0_39], %86 {strides = array<i32>} : memref<1x128x128xf32, #tpu.memory_space<vmem>>, vector<1x128x128xf32>,
    return
  }
  func.func @transform_0(%arg0: i32, %arg1: i32) -> (i32, i32, i32) {
    %c0_i32 = arith.constant 0 : i32
    %c0_i32_0 = arith.constant 0 : i32
    return %arg0, %arg1, %c0_i32 : i32, i32, i32
  }
  func.func @transform_1(%arg0: i32, %arg1: i32) -> (i32, i32, i32) {
    %c0_i32 = arith.constant 0 : i32
    %c0_i32_0 = arith.constant 0 : i32
    %c0_i32_1 = arith.constant 0 : i32
    return %arg0, %c0_i32, %c0_i32_0 : i32, i32, i32
  }
  func.func @transform_2(%arg0: i32, %arg1: i32) -> (i32, i32, i32) {
    %c0_i32 = arith.constant 0 : i32
    %c0_i32_0 = arith.constant 0 : i32
    %c0_i32_1 = arith.constant 0 : i32
    return %arg0, %c0_i32, %c0_i32_0 : i32, i32, i32
  }
  func.func @transform_3(%arg0: i32, %arg1: i32) -> (i32, i32) {
    %c0_i32 = arith.constant 0 : i32
    %c0_i32_0 = arith.constant 0 : i32
    %c0_i32_1 = arith.constant 0 : i32
    return %c0_i32, %c0_i32_0 : i32, i32
  }
  func.func @transform_4(%arg0: i32, %arg1: i32) -> (i32, i32) {
    %c0_i32 = arith.constant 0 : i32
    %c0_i32_0 = arith.constant 0 : i32
    %c0_i32_1 = arith.constant 0 : i32
    return %c0_i32, %c0_i32_0 : i32, i32
  }
  func.func @transform_5(%arg0: i32, %arg1: i32) -> (i32, i32) {
    %c0_i32 = arith.constant 0 : i32
    %c0_i32_0 = arith.constant 0 : i32
    %c0_i32_1 = arith.constant 0 : i32
    return %c0_i32, %c0_i32_0 : i32, i32
  }
  func.func @transform_6(%arg0: i32, %arg1: i32) -> (i32, i32) {
    %c0_i32 = arith.constant 0 : i32
    %c0_i32_0 = arith.constant 0 : i32
    %c0_i32_1 = arith.constant 0 : i32
    return %c0_i32, %c0_i32_0 : i32, i32
  }
  func.func @transform_7(%arg0: i32, %arg1: i32) -> (i32, i32) {
    %c0_i32 = arith.constant 0 : i32
    %c0_i32_0 = arith.constant 0 : i32
    %c0_i32_1 = arith.constant 0 : i32
    return %c0_i32, %c0_i32_0 : i32, i32
  }
  func.func @transform_8(%arg0: i32, %arg1: i32) -> (i32, i32) {
    %c0_i32 = arith.constant 0 : i32
    %c0_i32_0 = arith.constant 0 : i32
    %c0_i32_1 = arith.constant 0 : i32
    return %c0_i32, %c0_i32_0 : i32, i32
  }
  func.func @transform_9(%arg0: i32, %arg1: i32) -> (i32, i32) {
    %c0_i32 = arith.constant 0 : i32
    %c0_i32_0 = arith.constant 0 : i32
    %c0_i32_1 = arith.constant 0 : i32
    return %c0_i32, %c0_i32_0 : i32, i32
  }
  func.func @transform_10(%arg0: i32, %arg1: i32) -> (i32, i32, i32) {
    %c0_i32 = arith.constant 0 : i32
    %c0_i32_0 = arith.constant 0 : i32
    return %arg0, %arg1, %c0_i32 : i32, i32, i32
  }
}

</mosaic_0001>

<llo_original>
// kernel: resblock_forward.1
$region0: #{resblock_forward.1}
  #allocation0 [shape = 'u32[]', space=smem, size = 0x4, offset = 0x4, fixed_abs, tag = 'smem constant byte address 0x4 - core index']
  #allocation1 [shape = 'u32[144,128]{1,0:T(1,128)}', space=vmem, size = 0x12000, scoped, tag = 'internal scratch']
  %s0 = inlined_call_operand.hbm [shape: f32[2,512,128], index: 0, kind: input, shape index: {}]
  %s1 = inlined_call_operand.vmem [shape: f32[2,1,128], index: 1, kind: input, shape index: {}]
  %s2 = inlined_call_operand.vmem [shape: f32[2,1,128], index: 2, kind: input, shape index: {}]
  %s3 = inlined_call_operand.vmem [shape: f32[1,128], index: 3, kind: input, shape index: {}]
  %s4 = inlined_call_operand.vmem [shape: f32[1,128], index: 4, kind: input, shape index: {}]
  %s5 = inlined_call_operand.vmem [shape: bf16[128,128], index: 5, kind: input, shape index: {}]
  %s6 = inlined_call_operand.vmem [shape: f32[1,128], index: 6, kind: input, shape index: {}]
  %s7 = inlined_call_operand.vmem [shape: f32[1,128], index: 7, kind: input, shape index: {}]
  %s8 = inlined_call_operand.vmem [shape: bf16[128,128], index: 8, kind: input, shape index: {}]
  %s9 = inlined_call_operand.vmem [shape: f32[1,128], index: 9, kind: input, shape index: {}]
  %s10 = inlined_call_operand.hbm [shape: f32[2,512,128], index: 10, kind: output, shape index: {}]
  %s11 = sld [smem:[#allocation0]]
  $region77: #{resblock_forward.1} parent=0
    _
  %s13 = ssub.s32 1, %s11
  %s14 = scalar_select 0, %s13, %s11
  $region1: #{resblock_forward.1} parent=0
    #allocation2 [shape = 'u8[131072]{0}', space=vmem, size = 0x20000, scoped, tag = 'input window, operand 0']
    #allocation3 [shape = 's32[2]{0}', space=sflag, size = 0x8, scoped, tag = 'scoped memory for resblock_forward.1']
    #allocation4 [shape = 's32[2]{0}', space=sflag, size = 0x8, scoped, tag = 'scoped memory for resblock_forward.1']
    #allocation5 [shape = 'u8[131072]{0}', space=vmem, size = 0x20000, scoped, tag = 'output window, operand 0']
    %15 = vsyncpa [#allocation3], 0
    %s16 = scalar_lea.sflag [#allocation3], 1
    %17 = vsyncpa %s16, 0
    %18 = vsyncpa [#allocation4], 0
    %s19 = scalar_lea.sflag [#allocation4], 1
    %20 = vsyncpa %s19, 0
    loop: start=0, step=1, limit=10
    $region2: #{resblock_forward.1} parent=1 // loop_pre_header
      _
    $region3: #{resblock_forward.1} parent=1 // loop_header
      %s22 = sphi 0, %s26
      %p23 = scmp.ge.s32.totalorder %s22, 10
      %s29 = sphi 0, %s41
      %s30 = sphi 0, %s37
      %s31 = sphi 0, %s29
      %s32 = sphi 0, %s30
      %s33 = sphi 0, %s31
      %s34 = sphi 0, %s32
      %s46 = sphi 0, %s48
      %s49 = sphi 0, %s46
      %s50 = sphi 0, %s49
      %s66 = sphi 0, %s50
      %s72 = sphi 0, %s74
      %s75 = sphi 0, %s72
      %s76 = sphi 0, %s75
      %s92 = sphi 0, %s76
      %s98 = sphi 0, %s100
      %s101 = sphi 0, %s98
      %s102 = sphi 0, %s101
      %s118 = sphi 0, %s102
      %s122 = sphi 0, %s122
      %s124 = sphi 0, %s122
      %s125 = sphi 0, %s124
      %s139 = sphi 0, %s125
      %s143 = sphi 0, %s143
      %s145 = sphi 0, %s143
      %s146 = sphi 0, %s145
      %s160 = sphi 0, %s146
      %s164 = sphi 0, %s164
      %s166 = sphi 0, %s164
      %s167 = sphi 0, %s166
      %s181 = sphi 0, %s167
      %s185 = sphi 0, %s185
      %s187 = sphi 0, %s185
      %s188 = sphi 0, %s187
      %s202 = sphi 0, %s188
      %s206 = sphi 0, %s206
      %s208 = sphi 0, %s206
      %s209 = sphi 0, %s208
      %s223 = sphi 0, %s209
      %s227 = sphi 0, %s227
      %s229 = sphi 0, %s227
      %s230 = sphi 0, %s229
      %s244 = sphi 0, %s230
      %s248 = sphi 0, %s248
      %s250 = sphi 0, %s248
      %s251 = sphi 0, %s250
      %s265 = sphi 0, %s251
      %s273 = sphi 0, %s275
      %s276 = sphi 0, %s273
      %s277 = sphi 0, %s276
      %s293 = sphi 0, %s277
    $region4: #{resblock_forward.1} parent=1 // loop_header_branch
      %25 = sbr.rel (%p23) target = $region8
    $region5: #{resblock_forward.1} parent=1 // loop_body
      %s27 = ssub.s32 %s22, 1
      %s28 = ssub.s32 %s22, 2
      %s35 = sadd.s32 1, %s30
      %p36 = scmp.ge.s32.totalorder %s35, 4
      %s37 = scalar_select %p36, 0, %s35
      %s38 = sadd.s32 1, %s29
      %s39 = scalar_select %p36, %s38, %s29
      %p40 = scmp.ge.s32.totalorder %s39, 2
      %s41 = scalar_select %p40, 0, %s39
      %s42 = ssub.s32 %s29, %s41
      %s43 = ssub.s32 %s30, %s37
      %s44 = sor.u32 %s42, %s43
      %p45 = scmp.eq.s32.totalorder %s44, 0
      %s47 = sadd.s32 %s46, 1
      %s48 = scalar_select %p45, %s46, %s47
      %p51 = pneg %p45
      %p52 = scmp.eq.s32.totalorder %s22, 7
      %p53 = por %p51, %p52
      %p54 = scmp.ne.s32.totalorder %s46, %s49
      %p55 = scmp.eq.s32.totalorder %s22, 0
      %p56 = por %p54, %p55
      %p57 = scmp.ne.s32.totalorder %s46, %s49
      %p58 = scmp.eq.s32.totalorder %s27, 7
      %p59 = por %p57, %p58
      %p60 = scmp.ne.s32.totalorder %s49, %s50
      %p61 = scmp.eq.s32.totalorder %s27, 0
      %p62 = por %p60, %p61
      %p63 = scmp.ne.s32.totalorder %s49, %s50
      %p64 = scmp.eq.s32.totalorder %s28, 7
      %p65 = por %p63, %p64
      %p67 = scmp.ne.s32.totalorder %s50, %s66
      %p68 = scmp.eq.s32.totalorder %s28, 0
      %p69 = por %p67, %p68
      %s70 = ssub.s32 %s29, %s41
      %p71 = scmp.eq.s32.totalorder %s70, 0
      %s73 = sadd.s32 %s72, 1
      %s74 = scalar_select %p71, %s72, %s73
      %p77 = pneg %p71
      %p78 = scmp.eq.s32.totalorder %s22, 7
      %p79 = por %p77, %p78
      %p80 = scmp.ne.s32.totalorder %s72, %s75
      %p81 = scmp.eq.s32.totalorder %s22, 0
      %p82 = por %p80, %p81
      %p83 = scmp.ne.s32.totalorder %s72, %s75
      %p84 = scmp.eq.s32.totalorder %s27, 7
      %p85 = por %p83, %p84
      %p86 = scmp.ne.s32.totalorder %s75, %s76
      %p87 = scmp.eq.s32.totalorder %s27, 0
      %p88 = por %p86, %p87
      %p89 = scmp.ne.s32.totalorder %s75, %s76
      %p90 = scmp.eq.s32.totalorder %s28, 7
      %p91 = por %p89, %p90
      %p93 = scmp.ne.s32.totalorder %s76, %s92
      %p94 = scmp.eq.s32.totalorder %s28, 0
      %p95 = por %p93, %p94
      %s96 = ssub.s32 %s29, %s41
      %p97 = scmp.eq.s32.totalorder %s96, 0
      %s99 = sadd.s32 %s98, 1
      %s100 = scalar_select %p97, %s98, %s99
      %p103 = pneg %p97
      %p104 = scmp.eq.s32.totalorder %s22, 7
      %p105 = por %p103, %p104
      %p106 = scmp.ne.s32.totalorder %s98, %s101
      %p107 = scmp.eq.s32.totalorder %s22, 0
      %p108 = por %p106, %p107
      %p109 = scmp.ne.s32.totalorder %s98, %s101
      %p110 = scmp.eq.s32.totalorder %s27, 7
      %p111 = por %p109, %p110
      %p112 = scmp.ne.s32.totalorder %s101, %s102
      %p113 = scmp.eq.s32.totalorder %s27, 0
      %p114 = por %p112, %p113
      %p115 = scmp.ne.s32.totalorder %s101, %s102
      %p116 = scmp.eq.s32.totalorder %s28, 7
      %p117 = por %p115, %p116
      %p119 = scmp.ne.s32.totalorder %s102, %s118
      %p120 = scmp.eq.s32.totalorder %s28, 0
      %p121 = por %p119, %p120
      %s123 = sadd.s32 %s122, 1
      %p126 = scmp.eq.s32.totalorder %s22, 7
      %p127 = scmp.ne.s32.totalorder %s122, %s124
      %p128 = scmp.eq.s32.totalorder %s22, 0
      %p129 = por %p127, %p128
      %p130 = scmp.ne.s32.totalorder %s122, %s124
      %p131 = scmp.eq.s32.totalorder %s27, 7
      %p132 = por %p130, %p131
      %p133 = scmp.ne.s32.totalorder %s124, %s125
      %p134 = scmp.eq.s32.totalorder %s27, 0
      %p135 = por %p133, %p134
      %p136 = scmp.ne.s32.totalorder %s124, %s125
      %p137 = scmp.eq.s32.totalorder %s28, 7
      %p138 = por %p136, %p137
      %p140 = scmp.ne.s32.totalorder %s125, %s139
      %p141 = scmp.eq.s32.totalorder %s28, 0
      %p142 = por %p140, %p141
      %s144 = sadd.s32 %s143, 1
      %p147 = scmp.eq.s32.totalorder %s22, 7
      %p148 = scmp.ne.s32.totalorder %s143, %s145
      %p149 = scmp.eq.s32.totalorder %s22, 0
      %p150 = por %p148, %p149
      %p151 = scmp.ne.s32.totalorder %s143, %s145
      %p152 = scmp.eq.s32.totalorder %s27, 7
      %p153 = por %p151, %p152
      %p154 = scmp.ne.s32.totalorder %s145, %s146
      %p155 = scmp.eq.s32.totalorder %s27, 0
      %p156 = por %p154, %p155
      %p157 = scmp.ne.s32.totalorder %s145, %s146
      %p158 = scmp.eq.s32.totalorder %s28, 7
      %p159 = por %p157, %p158
      %p161 = scmp.ne.s32.totalorder %s146, %s160
      %p162 = scmp.eq.s32.totalorder %s28, 0
      %p163 = por %p161, %p162
      %s165 = sadd.s32 %s164, 1
      %p168 = scmp.eq.s32.totalorder %s22, 7
      %p169 = scmp.ne.s32.totalorder %s164, %s166
      %p170 = scmp.eq.s32.totalorder %s22, 0
      %p171 = por %p169, %p170
      %p172 = scmp.ne.s32.totalorder %s164, %s166
      %p173 = scmp.eq.s32.totalorder %s27, 7
      %p174 = por %p172, %p173
      %p175 = scmp.ne.s32.totalorder %s166, %s167
      %p176 = scmp.eq.s32.totalorder %s27, 0
      %p177 = por %p175, %p176
      %p178 = scmp.ne.s32.totalorder %s166, %s167
      %p179 = scmp.eq.s32.totalorder %s28, 7
      %p180 = por %p178, %p179
      %p182 = scmp.ne.s32.totalorder %s167, %s181
      %p183 = scmp.eq.s32.totalorder %s28, 0
      %p184 = por %p182, %p183
      %s186 = sadd.s32 %s185, 1
      %p189 = scmp.eq.s32.totalorder %s22, 7
      %p190 = scmp.ne.s32.totalorder %s185, %s187
      %p191 = scmp.eq.s32.totalorder %s22, 0
      %p192 = por %p190, %p191
      %p193 = scmp.ne.s32.totalorder %s185, %s187
      %p194 = scmp.eq.s32.totalorder %s27, 7
      %p195 = por %p193, %p194
      %p196 = scmp.ne.s32.totalorder %s187, %s188
      %p197 = scmp.eq.s32.totalorder %s27, 0
      %p198 = por %p196, %p197
      %p199 = scmp.ne.s32.totalorder %s187, %s188
      %p200 = scmp.eq.s32.totalorder %s28, 7
      %p201 = por %p199, %p200
      %p203 = scmp.ne.s32.totalorder %s188, %s202
      %p204 = scmp.eq.s32.totalorder %s28, 0
      %p205 = por %p203, %p204
      %s207 = sadd.s32 %s206, 1
      %p210 = scmp.eq.s32.totalorder %s22, 7
      %p211 = scmp.ne.s32.totalorder %s206, %s208
      %p212 = scmp.eq.s32.totalorder %s22, 0
      %p213 = por %p211, %p212
      %p214 = scmp.ne.s32.totalorder %s206, %s208
      %p215 = scmp.eq.s32.totalorder %s27, 7
      %p216 = por %p214, %p215
      %p217 = scmp.ne.s32.totalorder %s208, %s209
      %p218 = scmp.eq.s32.totalorder %s27, 0
      %p219 = por %p217, %p218
      %p220 = scmp.ne.s32.totalorder %s208, %s209
      %p221 = scmp.eq.s32.totalorder %s28, 7
      %p222 = por %p220, %p221
      %p224 = scmp.ne.s32.totalorder %s209, %s223
      %p225 = scmp.eq.s32.totalorder %s28, 0
      %p226 = por %p224, %p225
      %s228 = sadd.s32 %s227, 1
      %p231 = scmp.eq.s32.totalorder %s22, 7
      %p232 = scmp.ne.s32.totalorder %s227, %s229
      %p233 = scmp.eq.s32.totalorder %s22, 0
      %p234 = por %p232, %p233
      %p235 = scmp.ne.s32.totalorder %s227, %s229
      %p236 = scmp.eq.s32.totalorder %s27, 7
      %p237 = por %p235, %p236
      %p238 = scmp.ne.s32.totalorder %s229, %s230
      %p239 = scmp.eq.s32.totalorder %s27, 0
      %p240 = por %p238, %p239
      %p241 = scmp.ne.s32.totalorder %s229, %s230
      %p242 = scmp.eq.s32.totalorder %s28, 7
      %p243 = por %p241, %p242
      %p245 = scmp.ne.s32.totalorder %s230, %s244
      %p246 = scmp.eq.s32.totalorder %s28, 0
      %p247 = por %p245, %p246
      %s249 = sadd.s32 %s248, 1
      %p252 = scmp.eq.s32.totalorder %s22, 7
      %p253 = scmp.ne.s32.totalorder %s248, %s250
      %p254 = scmp.eq.s32.totalorder %s22, 0
      %p255 = por %p253, %p254
      %p256 = scmp.ne.s32.totalorder %s248, %s250
      %p257 = scmp.eq.s32.totalorder %s27, 7
      %p258 = por %p256, %p257
      %p259 = scmp.ne.s32.totalorder %s250, %s251
      %p260 = scmp.eq.s32.totalorder %s27, 0
      %p261 = por %p259, %p260
      %p262 = scmp.ne.s32.totalorder %s250, %s251
      %p263 = scmp.eq.s32.totalorder %s28, 7
      %p264 = por %p262, %p263
      %p266 = scmp.ne.s32.totalorder %s251, %s265
      %p267 = scmp.eq.s32.totalorder %s28, 0
      %p268 = por %p266, %p267
      %s269 = ssub.s32 %s29, %s41
      %s270 = ssub.s32 %s30, %s37
      %s271 = sor.u32 %s269, %s270
      %p272 = scmp.eq.s32.totalorder %s271, 0
      %s274 = sadd.s32 %s273, 1
      %s275 = scalar_select %p272, %s273, %s274
      %p278 = pneg %p272
      %p279 = scmp.eq.s32.totalorder %s22, 7
      %p280 = por %p278, %p279
      %p281 = scmp.ne.s32.totalorder %s273, %s276
      %p282 = scmp.eq.s32.totalorder %s22, 0
      %p283 = por %p281, %p282
      %p284 = scmp.ne.s32.totalorder %s273, %s276
      %p285 = scmp.eq.s32.totalorder %s27, 7
      %p286 = por %p284, %p285
      %p287 = scmp.ne.s32.totalorder %s276, %s277
      %p288 = scmp.eq.s32.totalorder %s27, 0
      %p289 = por %p287, %p288
      %p290 = scmp.ne.s32.totalorder %s276, %s277
      %p291 = scmp.eq.s32.totalorder %s28, 7
      %p292 = por %p290, %p291
      %p294 = scmp.ne.s32.totalorder %s277, %s293
      %p295 = scmp.eq.s32.totalorder %s28, 0
      %p296 = por %p294, %p295
      %p297 = scmp.le.s32.totalorder 1, %s22
      %p298 = scmp.lt.s32.totalorder %s22, 9
      %p299 = pnand %p297, %p298
      %p300 = pneg %p299
      // Predicated region
      $region9: #{resblock_forward.1} parent=5 // pred_check
        _
      $region10: #{resblock_forward.1} parent=5 // pred_check_branch
        %302 = sbr.rel (%p299) target = $region12
      $region11: #{resblock_forward.1} parent=5 // pred_region
        %s303 = ssub.s32 %s22, 1
        // Predicated region
        $region13: #{resblock_forward.1} parent=11 // pred_check
          %p304 = pneg %p135
        $region14: #{resblock_forward.1} parent=11 // pred_check_branch
          %306 = sbr.rel (%p304) target = $region16
        $region15: #{resblock_forward.1} parent=11 // pred_region
          _
        $region16: #{resblock_forward.1} parent=11 // pred_fallthru
          _
        // Predicated region
        $region17: #{resblock_forward.1} parent=11 // pred_check
          %p307 = pneg %p156
        $region18: #{resblock_forward.1} parent=11 // pred_check_branch
          %309 = sbr.rel (%p307) target = $region20
        $region19: #{resblock_forward.1} parent=11 // pred_region
          _
        $region20: #{resblock_forward.1} parent=11 // pred_fallthru
          _
        // Predicated region
        $region21: #{resblock_forward.1} parent=11 // pred_check
          %p310 = pneg %p177
        $region22: #{resblock_forward.1} parent=11 // pred_check_branch
          %312 = sbr.rel (%p310) target = $region24
        $region23: #{resblock_forward.1} parent=11 // pred_region
          _
        $region24: #{resblock_forward.1} parent=11 // pred_fallthru
          _
        // Predicated region
        $region25: #{resblock_forward.1} parent=11 // pred_check
          %p313 = pneg %p198
        $region26: #{resblock_forward.1} parent=11 // pred_check_branch
          %315 = sbr.rel (%p313) target = $region28
        $region27: #{resblock_forward.1} parent=11 // pred_region
          _
        $region28: #{resblock_forward.1} parent=11 // pred_fallthru
          _
        // Predicated region
        $region29: #{resblock_forward.1} parent=11 // pred_check
          %p316 = pneg %p219
        $region30: #{resblock_forward.1} parent=11 // pred_check_branch
          %318 = sbr.rel (%p316) target = $region32
        $region31: #{resblock_forward.1} parent=11 // pred_region
          _
        $region32: #{resblock_forward.1} parent=11 // pred_fallthru
          _
        // Predicated region
        $region33: #{resblock_forward.1} parent=11 // pred_check
          %p319 = pneg %p240
        $region34: #{resblock_forward.1} parent=11 // pred_check_branch
          %321 = sbr.rel (%p319) target = $region36
        $region35: #{resblock_forward.1} parent=11 // pred_region
          _
        $region36: #{resblock_forward.1} parent=11 // pred_fallthru
          _
        // Predicated region
        $region37: #{resblock_forward.1} parent=11 // pred_check
          %p322 = pneg %p261
        $region38: #{resblock_forward.1} parent=11 // pred_check_branch
          %324 = sbr.rel (%p322) target = $region40
        $region39: #{resblock_forward.1} parent=11 // pred_region
          _
        $region40: #{resblock_forward.1} parent=11 // pred_fallthru
          _
      $region12: #{resblock_forward.1} parent=5 // pred_fallthru
        _
      %p325 = scmp.lt.s32.totalorder %s22, 8
      // Predicated region
      $region41: #{resblock_forward.1} parent=5 // pred_check
        %p326 = pneg %p325
      $region42: #{resblock_forward.1} parent=5 // pred_check_branch
        %328 = sbr.rel (%p326) target = $region44
      $region43: #{resblock_forward.1} parent=5 // pred_region
        // Predicated region
        $region45: #{resblock_forward.1} parent=43 // pred_check
          %p329 = pneg %p56
        $region46: #{resblock_forward.1} parent=43 // pred_check_branch
          %331 = sbr.rel (%p329) target = $region48
        $region47: #{resblock_forward.1} parent=43 // pred_region
          %s332 = sand.u32 %s46, 1
          %s333 = scalar_lea.sflag [#allocation3], %s332
          %s334 = sand.u32 %s46, 1
          %s335 = smul.addr %s334, 128
          %s336 = scalar_lea.vmem [#allocation2], %s335
          %s337 = smul.u32 16, %s30
          %s339 = ssub.s32 2048, 2048
          %340 = vsyncadd %s333, %s339
          %s341 = smul.addr %s29, 64
          %s342 = sadd.s32 %s337, %s341
          %s343 = smul.addr %s342, 128
          %s344 = scalar_lea.hbm %s0, %s343
          %s345 = sshll.u32 %s336, 4
          %s346 = int_to_ptr.vmem [resolvable:$true] %s345
          %351 = dma.hbm_to_vmem [thread:$0]  %s344, 2048, %s346, %s333, 128, 128, 8
        $region48: #{resblock_forward.1} parent=43 // pred_fallthru
          _
        // Predicated region
        $region49: #{resblock_forward.1} parent=43 // pred_check
          %p352 = pneg %p82
        $region50: #{resblock_forward.1} parent=43 // pred_check_branch
          %354 = sbr.rel (%p352) target = $region52
        $region51: #{resblock_forward.1} parent=43 // pred_region
          %p355 = scmp.lt.s32.totalorder %s29, 1
          %s356 = scalar_select %p355, %s29, 1
          %s357 = scalar_lea.vmem %s1, %s356
        $region52: #{resblock_forward.1} parent=43 // pred_fallthru
          _
        // Predicated region
        $region53: #{resblock_forward.1} parent=43 // pred_check
          %p358 = pneg %p108
        $region54: #{resblock_forward.1} parent=43 // pred_check_branch
          %360 = sbr.rel (%p358) target = $region56
        $region55: #{resblock_forward.1} parent=43 // pred_region
          %p361 = scmp.lt.s32.totalorder %s29, 1
          %s362 = scalar_select %p361, %s29, 1
          %s363 = scalar_lea.vmem %s2, %s362
        $region56: #{resblock_forward.1} parent=43 // pred_fallthru
          _
      $region44: #{resblock_forward.1} parent=5 // pred_fallthru
        _
      %p364 = scmp.le.s32.totalorder 1, %s22
      %p365 = scmp.lt.s32.totalorder %s22, 9
      %p366 = pnand %p364, %p365
      %p367 = pneg %p366
      // Predicated region
      $region57: #{resblock_forward.1} parent=5 // pred_check
        _
      $region58: #{resblock_forward.1} parent=5 // pred_check_branch
        %369 = sbr.rel (%p366) target = $region60
      $region59: #{resblock_forward.1} parent=5 // pred_region
        %s370 = ssub.s32 %s22, 1
        %s371 = sand.u32 %s49, 1
        %s372 = scalar_lea.sflag [#allocation3], %s371
        %s373 = sand.u32 %s49, 1
        %s374 = smul.addr %s373, 128
        %s375 = scalar_lea.vmem [#allocation2], %s374
        // Predicated region
        $region61: #{resblock_forward.1} parent=59 // pred_check
          %p376 = pneg %p62
        $region62: #{resblock_forward.1} parent=59 // pred_check_branch
          %378 = sbr.rel (%p376) target = $region64
        $region63: #{resblock_forward.1} parent=59 // pred_region
          %379 = dma.done %s372, 2048
        $region64: #{resblock_forward.1} parent=59 // pred_fallthru
          _
        %s380 = sand.u32 %s49, 1
        %s381 = scalar_lea.sflag [#allocation3], %s380
        %s382 = sand.u32 %s49, 1
        %s383 = smul.addr %s382, 128
        %s384 = scalar_lea.vmem [#allocation2], %s383
        %p385 = pneg %p62
        %p386 = pneg %p59
        %p387 = scmp.lt.s32.totalorder %s31, 1
        %s388 = scalar_select %p387, %s31, 1
        %s389 = scalar_lea.vmem %s1, %s388
        %p390 = pneg %p88
        %p391 = pneg %p85
        %p392 = scmp.lt.s32.totalorder %s31, 1
        %s393 = scalar_select %p392, %s31, 1
        %s394 = scalar_lea.vmem %s2, %s393
        %p395 = pneg %p114
        %p396 = pneg %p111
        %p397 = pneg %p135
        %p398 = pneg %p132
        %p399 = pneg %p156
        %p400 = pneg %p153
        %p401 = pneg %p177
        %p402 = pneg %p174
        %p403 = pneg %p198
        %p404 = pneg %p195
        %p405 = pneg %p219
        %p406 = pneg %p216
        %p407 = pneg %p240
        %p408 = pneg %p237
        %p409 = pneg %p261
        %p410 = pneg %p258
        %p411 = pneg %p289
        %p412 = pneg %p286
        %s413 = sand.u32 %s276, 1
        %s414 = scalar_lea.sflag [#allocation4], %s413
        %s415 = sand.u32 %s276, 1
        %s416 = smul.addr %s415, 128
        %s417 = scalar_lea.vmem [#allocation5], %s416
        %s418 = smul.u32 16, %s32
        %p419 = scmp.lt.s32.totalorder %s31, 1
        %s420 = scalar_select %p419, %s31, 1
        %s421 = scalar_lea.vmem %s1, %s420
        %p422 = scmp.lt.s32.totalorder %s31, 1
        %s423 = scalar_select %p422, %s31, 1
        %s424 = scalar_lea.vmem %s2, %s423
        %s425 = smul.u32 16, %s32
        %v427 = vld [vmem:[%s375] sm:$0xff]
        %v428 = vld [vmem:[%s375 + $0x8] sm:$0xff]
        %v429 = vld [vmem:[%s375 + $0x10] sm:$0xff]
        %v430 = vld [vmem:[%s375 + $0x18] sm:$0xff]
        %v431 = vld [vmem:[%s375 + $0x20] sm:$0xff]
        %v432 = vld [vmem:[%s375 + $0x28] sm:$0xff]
        %v433 = vld [vmem:[%s375 + $0x30] sm:$0xff]
        %v434 = vld [vmem:[%s375 + $0x38] sm:$0xff]
        %v435 = vld [vmem:[%s375 + $0x40] sm:$0xff]
        %v436 = vld [vmem:[%s375 + $0x48] sm:$0xff]
        %v437 = vld [vmem:[%s375 + $0x50] sm:$0xff]
        %v438 = vld [vmem:[%s375 + $0x58] sm:$0xff]
        %v439 = vld [vmem:[%s375 + $0x60] sm:$0xff]
        %v440 = vld [vmem:[%s375 + $0x68] sm:$0xff]
        %v441 = vld [vmem:[%s375 + $0x70] sm:$0xff]
        %v442 = vld [vmem:[%s375 + $0x78] sm:$0xff]
        %v443 = vld [vmem:[%s3] sm:$0x1]
        %v444 = vld [vmem:[%s4] sm:$0x1]
        %445 = vadd.xlane.f32.xlu0 %v427
        %v446 = vpop.xlane.xlu0 %445
        %447 = vadd.xlane.f32.xlu0 %v428
        %v448 = vpop.xlane.xlu0 %447
        %449 = vadd.xlane.f32.xlu0 %v429
        %v450 = vpop.xlane.xlu0 %449
        %451 = vadd.xlane.f32.xlu0 %v430
        %v452 = vpop.xlane.xlu0 %451
        %453 = vadd.xlane.f32.xlu0 %v431
        %v454 = vpop.xlane.xlu0 %453
        %455 = vadd.xlane.f32.xlu0 %v432
        %v456 = vpop.xlane.xlu0 %455
        %457 = vadd.xlane.f32.xlu0 %v433
        %v458 = vpop.xlane.xlu0 %457
        %459 = vadd.xlane.f32.xlu0 %v434
        %v460 = vpop.xlane.xlu0 %459
        %461 = vadd.xlane.f32.xlu0 %v435
        %v462 = vpop.xlane.xlu0 %461
        %463 = vadd.xlane.f32.xlu0 %v436
        %v464 = vpop.xlane.xlu0 %463
        %465 = vadd.xlane.f32.xlu0 %v437
        %v466 = vpop.xlane.xlu0 %465
        %467 = vadd.xlane.f32.xlu0 %v438
        %v468 = vpop.xlane.xlu0 %467
        %469 = vadd.xlane.f32.xlu0 %v439
        %v470 = vpop.xlane.xlu0 %469
        %471 = vadd.xlane.f32.xlu0 %v440
        %v472 = vpop.xlane.xlu0 %471
        %473 = vadd.xlane.f32.xlu0 %v441
        %v474 = vpop.xlane.xlu0 %473
        %475 = vadd.xlane.f32.xlu0 %v442
        %v476 = vpop.xlane.xlu0 %475
        %v477 = vmul.f32 %v427, %v427
        %v478 = vmul.f32 %v428, %v428
        %v479 = vmul.f32 %v429, %v429
        %v480 = vmul.f32 %v430, %v430
        %v481 = vmul.f32 %v431, %v431
        %v482 = vmul.f32 %v432, %v432
        %v483 = vmul.f32 %v433, %v433
        %v484 = vmul.f32 %v434, %v434
        %v485 = vmul.f32 %v435, %v435
        %v486 = vmul.f32 %v436, %v436
        %v487 = vmul.f32 %v437, %v437
        %v488 = vmul.f32 %v438, %v438
        %v489 = vmul.f32 %v439, %v439
        %v490 = vmul.f32 %v440, %v440
        %v491 = vmul.f32 %v441, %v441
        %v492 = vmul.f32 %v442, %v442
        %493 = vadd.xlane.f32.xlu0 %v477
        %v494 = vpop.xlane.xlu0 %493
        %495 = vadd.xlane.f32.xlu0 %v478
        %v496 = vpop.xlane.xlu0 %495
        %497 = vadd.xlane.f32.xlu0 %v479
        %v498 = vpop.xlane.xlu0 %497
        %499 = vadd.xlane.f32.xlu0 %v480
        %v500 = vpop.xlane.xlu0 %499
        %501 = vadd.xlane.f32.xlu0 %v481
        %v502 = vpop.xlane.xlu0 %501
        %503 = vadd.xlane.f32.xlu0 %v482
        %v504 = vpop.xlane.xlu0 %503
        %505 = vadd.xlane.f32.xlu0 %v483
        %v506 = vpop.xlane.xlu0 %505
        %507 = vadd.xlane.f32.xlu0 %v484
        %v508 = vpop.xlane.xlu0 %507
        %509 = vadd.xlane.f32.xlu0 %v485
        %v510 = vpop.xlane.xlu0 %509
        %511 = vadd.xlane.f32.xlu0 %v486
        %v512 = vpop.xlane.xlu0 %511
        %513 = vadd.xlane.f32.xlu0 %v487
        %v514 = vpop.xlane.xlu0 %513
        %515 = vadd.xlane.f32.xlu0 %v488
        %v516 = vpop.xlane.xlu0 %515
        %517 = vadd.xlane.f32.xlu0 %v489
        %v518 = vpop.xlane.xlu0 %517
        %519 = vadd.xlane.f32.xlu0 %v490
        %v520 = vpop.xlane.xlu0 %519
        %521 = vadd.xlane.f32.xlu0 %v491
        %v522 = vpop.xlane.xlu0 %521
        %523 = vadd.xlane.f32.xlu0 %v492
        %v524 = vpop.xlane.xlu0 %523
        %v525 = vmul.f32 %v446, 0.0078125
        %v526 = vmul.f32 %v448, 0.0078125
        %v527 = vmul.f32 %v450, 0.0078125
        %v528 = vmul.f32 %v452, 0.0078125
        %v529 = vmul.f32 %v454, 0.0078125
        %v530 = vmul.f32 %v456, 0.0078125
        %v531 = vmul.f32 %v458, 0.0078125
        %v532 = vmul.f32 %v460, 0.0078125
        %v533 = vmul.f32 %v462, 0.0078125
        %v534 = vmul.f32 %v464, 0.0078125
        %v535 = vmul.f32 %v466, 0.0078125
        %v536 = vmul.f32 %v468, 0.0078125
        %v537 = vmul.f32 %v470, 0.0078125
        %v538 = vmul.f32 %v472, 0.0078125
        %v539 = vmul.f32 %v474, 0.0078125
        %v540 = vmul.f32 %v476, 0.0078125
        %v541 = vmul.f32 %v494, 0.0078125
        %v542 = vmul.f32 %v496, 0.0078125
        %v543 = vmul.f32 %v498, 0.0078125
        %v544 = vmul.f32 %v500, 0.0078125
        %v545 = vmul.f32 %v502, 0.0078125
        %v546 = vmul.f32 %v504, 0.0078125
        %v547 = vmul.f32 %v506, 0.0078125
        %v548 = vmul.f32 %v508, 0.0078125
        %v549 = vmul.f32 %v510, 0.0078125
        %v550 = vmul.f32 %v512, 0.0078125
        %v551 = vmul.f32 %v514, 0.0078125
        %v552 = vmul.f32 %v516, 0.0078125
        %v553 = vmul.f32 %v518, 0.0078125
        %v554 = vmul.f32 %v520, 0.0078125
        %v555 = vmul.f32 %v522, 0.0078125
        %v556 = vmul.f32 %v524, 0.0078125
        %v557 = vmul.f32 %v525, %v525
        %v558 = vmul.f32 %v526, %v526
        %v559 = vmul.f32 %v527, %v527
        %v560 = vmul.f32 %v528, %v528
        %v561 = vmul.f32 %v529, %v529
        %v562 = vmul.f32 %v530, %v530
        %v563 = vmul.f32 %v531, %v531
        %v564 = vmul.f32 %v532, %v532
        %v565 = vmul.f32 %v533, %v533
        %v566 = vmul.f32 %v534, %v534
        %v567 = vmul.f32 %v535, %v535
        %v568 = vmul.f32 %v536, %v536
        %v569 = vmul.f32 %v537, %v537
        %v570 = vmul.f32 %v538, %v538
        %v571 = vmul.f32 %v539, %v539
        %v572 = vmul.f32 %v540, %v540
        %v573 = vsub.f32 %v541, %v557
        %v574 = vsub.f32 %v542, %v558
        %v575 = vsub.f32 %v543, %v559
        %v576 = vsub.f32 %v544, %v560
        %v577 = vsub.f32 %v545, %v561
        %v578 = vsub.f32 %v546, %v562
        %v579 = vsub.f32 %v547, %v563
        %v580 = vsub.f32 %v548, %v564
        %v581 = vsub.f32 %v549, %v565
        %v582 = vsub.f32 %v550, %v566
        %v583 = vsub.f32 %v551, %v567
        %v584 = vsub.f32 %v552, %v568
        %v585 = vsub.f32 %v553, %v569
        %v586 = vsub.f32 %v554, %v570
        %v587 = vsub.f32 %v555, %v571
        %v588 = vsub.f32 %v556, %v572
        %v589 = vmax.f32 %v573, 0.0
        %v590 = vmax.f32 %v574, 0.0
        %v591 = vmax.f32 %v575, 0.0
        %v592 = vmax.f32 %v576, 0.0
        %v593 = vmax.f32 %v577, 0.0
        %v594 = vmax.f32 %v578, 0.0
        %v595 = vmax.f32 %v579, 0.0
        %v596 = vmax.f32 %v580, 0.0
        %v597 = vmax.f32 %v581, 0.0
        %v598 = vmax.f32 %v582, 0.0
        %v599 = vmax.f32 %v583, 0.0
        %v600 = vmax.f32 %v584, 0.0
        %v601 = vmax.f32 %v585, 0.0
        %v602 = vmax.f32 %v586, 0.0
        %v603 = vmax.f32 %v587, 0.0
        %v604 = vmax.f32 %v588, 0.0
        %v605 = vsub.f32 %v427, %v525
        %v606 = vsub.f32 %v428, %v526
        %v607 = vsub.f32 %v429, %v527
        %v608 = vsub.f32 %v430, %v528
        %v609 = vsub.f32 %v431, %v529
        %v610 = vsub.f32 %v432, %v530
        %v611 = vsub.f32 %v433, %v531
        %v612 = vsub.f32 %v434, %v532
        %v613 = vsub.f32 %v435, %v533
        %v614 = vsub.f32 %v436, %v534
        %v615 = vsub.f32 %v437, %v535
        %v616 = vsub.f32 %v438, %v536
        %v617 = vsub.f32 %v439, %v537
        %v618 = vsub.f32 %v440, %v538
        %v619 = vsub.f32 %v441, %v539
        %v620 = vsub.f32 %v442, %v540
        %v621 = vadd.f32 %v589, 1e-05
        %v622 = vadd.f32 %v590, 1e-05
        %v623 = vadd.f32 %v591, 1e-05
        %v624 = vadd.f32 %v592, 1e-05
        %v625 = vadd.f32 %v593, 1e-05
        %v626 = vadd.f32 %v594, 1e-05
        %v627 = vadd.f32 %v595, 1e-05
        %v628 = vadd.f32 %v596, 1e-05
        %v629 = vadd.f32 %v597, 1e-05
        %v630 = vadd.f32 %v598, 1e-05
        %v631 = vadd.f32 %v599, 1e-05
        %v632 = vadd.f32 %v600, 1e-05
        %v633 = vadd.f32 %v601, 1e-05
        %v634 = vadd.f32 %v602, 1e-05
        %v635 = vadd.f32 %v603, 1e-05
        %v636 = vadd.f32 %v604, 1e-05
        %v637 = vrsqrt.pop %v621
        %v638 = vrsqrt.pop %v622
        %v639 = vrsqrt.pop %v623
        %v640 = vrsqrt.pop %v624
        %v641 = vrsqrt.pop %v625
        %v642 = vrsqrt.pop %v626
        %v643 = vrsqrt.pop %v627
        %v644 = vrsqrt.pop %v628
        %v645 = vrsqrt.pop %v629
        %v646 = vrsqrt.pop %v630
        %v647 = vrsqrt.pop %v631
        %v648 = vrsqrt.pop %v632
        %v649 = vrsqrt.pop %v633
        %v650 = vrsqrt.pop %v634
        %v651 = vrsqrt.pop %v635
        %v652 = vrsqrt.pop %v636
        %v653 = vmul.f32 %v605, %v637
        %v654 = vmul.f32 %v606, %v638
        %v655 = vmul.f32 %v607, %v639
        %v656 = vmul.f32 %v608, %v640
        %v657 = vmul.f32 %v609, %v641
        %v658 = vmul.f32 %v610, %v642
        %v659 = vmul.f32 %v611, %v643
        %v660 = vmul.f32 %v612, %v644
        %v661 = vmul.f32 %v613, %v645
        %v662 = vmul.f32 %v614, %v646
        %v663 = vmul.f32 %v615, %v647
        %v664 = vmul.f32 %v616, %v648
        %v665 = vmul.f32 %v617, %v649
        %v666 = vmul.f32 %v618, %v650
        %v667 = vmul.f32 %v619, %v651
        %v668 = vmul.f32 %v620, %v652
        %v670 = vlaneseq
        %v671 = vshrl.u32 %v670, 7
        %v672 = vsub.s32 0, %v671
        %v673 = vrot.slane %v443, %v672
        %v675 = vmul.f32 %v653, %v673
        %v676 = vmul.f32 %v654, %v673
        %v677 = vmul.f32 %v655, %v673
        %v678 = vmul.f32 %v656, %v673
        %v679 = vmul.f32 %v657, %v673
        %v680 = vmul.f32 %v658, %v673
        %v681 = vmul.f32 %v659, %v673
        %v682 = vmul.f32 %v660, %v673
        %v683 = vmul.f32 %v661, %v673
        %v684 = vmul.f32 %v662, %v673
        %v685 = vmul.f32 %v663, %v673
        %v686 = vmul.f32 %v664, %v673
        %v687 = vmul.f32 %v665, %v673
        %v688 = vmul.f32 %v666, %v673
        %v689 = vmul.f32 %v667, %v673
        %v690 = vmul.f32 %v668, %v673
        %v692 = vlaneseq
        %v693 = vshrl.u32 %v692, 7
        %v694 = vsub.s32 0, %v693
        %v695 = vrot.slane %v444, %v694
        %v697 = vadd.f32 %v675, %v695
        %v698 = vadd.f32 %v676, %v695
        %v699 = vadd.f32 %v677, %v695
        %v700 = vadd.f32 %v678, %v695
        %v701 = vadd.f32 %v679, %v695
        %v702 = vadd.f32 %v680, %v695
        %v703 = vadd.f32 %v681, %v695
        %v704 = vadd.f32 %v682, %v695
        %v705 = vadd.f32 %v683, %v695
        %v706 = vadd.f32 %v684, %v695
        %v707 = vadd.f32 %v685, %v695
        %v708 = vadd.f32 %v686, %v695
        %v709 = vadd.f32 %v687, %v695
        %v710 = vadd.f32 %v688, %v695
        %v711 = vadd.f32 %v689, %v695
        %v712 = vadd.f32 %v690, %v695
        %v713 = vxor.u32 %v697, 2147483648
        %v714 = vxor.u32 %v698, 2147483648
        %v715 = vxor.u32 %v699, 2147483648
        %v716 = vxor.u32 %v700, 2147483648
        %v717 = vxor.u32 %v701, 2147483648
        %v718 = vxor.u32 %v702, 2147483648
        %v719 = vxor.u32 %v703, 2147483648
        %v720 = vxor.u32 %v704, 2147483648
        %v721 = vxor.u32 %v705, 2147483648
        %v722 = vxor.u32 %v706, 2147483648
        %v723 = vxor.u32 %v707, 2147483648
        %v724 = vxor.u32 %v708, 2147483648
        %v725 = vxor.u32 %v709, 2147483648
        %v726 = vxor.u32 %v710, 2147483648
        %v727 = vxor.u32 %v711, 2147483648
        %v728 = vxor.u32 %v712, 2147483648
        %v729 = vmul.f32 %v713, 1.442695
        %v730 = vpow.pop %v729
        %v731 = vmul.f32 %v714, 1.442695
        %v732 = vpow.pop %v731
        %v733 = vmul.f32 %v715, 1.442695
        %v734 = vpow.pop %v733
        %v735 = vmul.f32 %v716, 1.442695
        %v736 = vpow.pop %v735
        %v737 = vmul.f32 %v717, 1.442695
        %v738 = vpow.pop %v737
        %v739 = vmul.f32 %v718, 1.442695
        %v740 = vpow.pop %v739
        %v741 = vmul.f32 %v719, 1.442695
        %v742 = vpow.pop %v741
        %v743 = vmul.f32 %v720, 1.442695
        %v744 = vpow.pop %v743
        %v745 = vmul.f32 %v721, 1.442695
        %v746 = vpow.pop %v745
        %v747 = vmul.f32 %v722, 1.442695
        %v748 = vpow.pop %v747
        %v749 = vmul.f32 %v723, 1.442695
        %v750 = vpow.pop %v749
        %v751 = vmul.f32 %v724, 1.442695
        %v752 = vpow.pop %v751
        %v753 = vmul.f32 %v725, 1.442695
        %v754 = vpow.pop %v753
        %v755 = vmul.f32 %v726, 1.442695
        %v756 = vpow.pop %v755
        %v757 = vmul.f32 %v727, 1.442695
        %v758 = vpow.pop %v757
        %v759 = vmul.f32 %v728, 1.442695
        %v760 = vpow.pop %v759
        %v761 = vadd.f32 %v730, 1.0
        %v762 = vadd.f32 %v732, 1.0
        %v763 = vadd.f32 %v734, 1.0
        %v764 = vadd.f32 %v736, 1.0
        %v765 = vadd.f32 %v738, 1.0
        %v766 = vadd.f32 %v740, 1.0
        %v767 = vadd.f32 %v742, 1.0
        %v768 = vadd.f32 %v744, 1.0
        %v769 = vadd.f32 %v746, 1.0
        %v770 = vadd.f32 %v748, 1.0
        %v771 = vadd.f32 %v750, 1.0
        %v772 = vadd.f32 %v752, 1.0
        %v773 = vadd.f32 %v754, 1.0
        %v774 = vadd.f32 %v756, 1.0
        %v775 = vadd.f32 %v758, 1.0
        %v776 = vadd.f32 %v760, 1.0
        %v777 = vrcp.pop %v761
        %v778 = vmul.f32 1.0, %v777
        %v779 = vrcp.pop %v762
        %v780 = vmul.f32 1.0, %v779
        %v781 = vrcp.pop %v763
        %v782 = vmul.f32 1.0, %v781
        %v783 = vrcp.pop %v764
        %v784 = vmul.f32 1.0, %v783
        %v785 = vrcp.pop %v765
        %v786 = vmul.f32 1.0, %v785
        %v787 = vrcp.pop %v766
        %v788 = vmul.f32 1.0, %v787
        %v789 = vrcp.pop %v767
        %v790 = vmul.f32 1.0, %v789
        %v791 = vrcp.pop %v768
        %v792 = vmul.f32 1.0, %v791
        %v793 = vrcp.pop %v769
        %v794 = vmul.f32 1.0, %v793
        %v795 = vrcp.pop %v770
        %v796 = vmul.f32 1.0, %v795
        %v797 = vrcp.pop %v771
        %v798 = vmul.f32 1.0, %v797
        %v799 = vrcp.pop %v772
        %v800 = vmul.f32 1.0, %v799
        %v801 = vrcp.pop %v773
        %v802 = vmul.f32 1.0, %v801
        %v803 = vrcp.pop %v774
        %v804 = vmul.f32 1.0, %v803
        %v805 = vrcp.pop %v775
        %v806 = vmul.f32 1.0, %v805
        %v807 = vrcp.pop %v776
        %v808 = vmul.f32 1.0, %v807
        %v809 = vmul.f32 %v697, %v778
        %v810 = vmul.f32 %v698, %v780
        %v811 = vmul.f32 %v699, %v782
        %v812 = vmul.f32 %v700, %v784
        %v813 = vmul.f32 %v701, %v786
        %v814 = vmul.f32 %v702, %v788
        %v815 = vmul.f32 %v703, %v790
        %v816 = vmul.f32 %v704, %v792
        %v817 = vmul.f32 %v705, %v794
        %v818 = vmul.f32 %v706, %v796
        %v819 = vmul.f32 %v707, %v798
        %v820 = vmul.f32 %v708, %v800
        %v821 = vmul.f32 %v709, %v802
        %v822 = vmul.f32 %v710, %v804
        %v823 = vmul.f32 %v711, %v806
        %v824 = vmul.f32 %v712, %v808
        %v825 = vpack.c.bf16 %v810, %v809
        %v826 = vpack.c.bf16 %v812, %v811
        %v827 = vpack.c.bf16 %v814, %v813
        %v828 = vpack.c.bf16 %v816, %v815
        %v829 = vpack.c.bf16 %v818, %v817
        %v830 = vpack.c.bf16 %v820, %v819
        %v831 = vpack.c.bf16 %v822, %v821
        %v832 = vpack.c.bf16 %v824, %v823
        %v833 = vld [vmem:[%s5] sm:$0xf]
        %v834 = vld [vmem:[%s5 + $0x4] sm:$0xf]
        %v835 = vld [vmem:[%s5 + $0x8] sm:$0xf]
        %v836 = vld [vmem:[%s5 + $0xc] sm:$0xf]
        %v837 = vld [vmem:[%s5 + $0x10] sm:$0xf]
        %v838 = vld [vmem:[%s5 + $0x14] sm:$0xf]
        %v839 = vld [vmem:[%s5 + $0x18] sm:$0xf]
        %v840 = vld [vmem:[%s5 + $0x1c] sm:$0xf]
        %v841 = vld [vmem:[%s5 + $0x20] sm:$0xf]
        %v842 = vld [vmem:[%s5 + $0x24] sm:$0xf]
        %v843 = vld [vmem:[%s5 + $0x28] sm:$0xf]
        %v844 = vld [vmem:[%s5 + $0x2c] sm:$0xf]
        %v845 = vld [vmem:[%s5 + $0x30] sm:$0xf]
        %v846 = vld [vmem:[%s5 + $0x34] sm:$0xf]
        %v847 = vld [vmem:[%s5 + $0x38] sm:$0xf]
        %v848 = vld [vmem:[%s5 + $0x3c] sm:$0xf]
        %v865 = vunpack.c.l.b16 %v833
        %v866 = vunpack.c.l.b16 %v834
        %v867 = vunpack.c.l.b16 %v835
        %v868 = vunpack.c.l.b16 %v836
        %v869 = vunpack.c.l.b16 %v837
        %v870 = vunpack.c.l.b16 %v838
        %v871 = vunpack.c.l.b16 %v839
        %v872 = vunpack.c.l.b16 %v840
        %v873 = vunpack.c.l.b16 %v841
        %v874 = vunpack.c.l.b16 %v842
        %v875 = vunpack.c.l.b16 %v843
        %v876 = vunpack.c.l.b16 %v844
        %v877 = vunpack.c.l.b16 %v845
        %v878 = vunpack.c.l.b16 %v846
        %v879 = vunpack.c.l.b16 %v847
        %v880 = vunpack.c.l.b16 %v848
        %v881 = vpack.c.b16 %v866, %v865
        %v882 = vpack.c.b16 %v868, %v867
        %v883 = vpack.c.b16 %v870, %v869
        %v884 = vpack.c.b16 %v872, %v871
        %v885 = vpack.c.b16 %v874, %v873
        %v886 = vpack.c.b16 %v876, %v875
        %v887 = vpack.c.b16 %v878, %v877
        %v888 = vpack.c.b16 %v880, %v879
        %897 = vmatprep.subr.bf16.mxu0 0
        %898 = vmatpush1.bf16.msra.mxu0 %v888
        %899 = vmatprep.subr.bf16.mxu0 0
        %900 = vmatpush1.bf16.msra.mxu0 %v887
        %901 = vmatprep.subr.bf16.mxu0 0
        %902 = vmatpush1.bf16.msra.mxu0 %v886
        %903 = vmatprep.subr.bf16.mxu0 0
        %904 = vmatpush1.bf16.msra.mxu0 %v885
        %905 = vmatprep.subr.bf16.mxu0 0
        %906 = vmatpush1.bf16.msra.mxu0 %v884
        %907 = vmatprep.subr.bf16.mxu0 0
        %908 = vmatpush1.bf16.msra.mxu0 %v883
        %909 = vmatprep.subr.bf16.mxu0 0
        %910 = vmatpush1.bf16.msra.mxu0 %v882
        %911 = vmatprep.subr.bf16.mxu0 0
        %912 = vmatpush1.bf16.msra.mxu0 %v881
        %913 = vmatprep.subr.bf16.mxu0 0
        %914 = vmatpush2.bf16.msra.mxu0 0
        %915 = vmatprep.subr.bf16.mxu0 0
        %916 = vmatpush2.bf16.msra.mxu0 0
        %917 = vmatprep.subr.bf16.mxu0 0
        %918 = vmatpush2.bf16.msra.mxu0 0
        %919 = vmatprep.subr.bf16.mxu0 0
        %920 = vmatpush2.bf16.msra.mxu0 0
        %921 = vmatprep.subr.bf16.mxu0 0
        %922 = vmatpush2.bf16.msra.mxu0 0
        %923 = vmatprep.subr.bf16.mxu0 0
        %924 = vmatpush2.bf16.msra.mxu0 0
        %925 = vmatprep.subr.bf16.mxu0 0
        %926 = vmatpush2.bf16.msra.mxu0 0
        %927 = vmatprep.subr.bf16.mxu0 0
        %928 = vmatpush2.bf16.msra.mxu0 0
        %929 = vmatprep.mubr.bf16.mxu0 0
        %930 = vmatmul.mubr.bf16.gmra.mxu0 %v825
        %v931 = vpop.f32.mrf.mxu0
        %v932 = vadd.f32 0.0, %v931
        %v933 = vpop.f32.mrf.mxu0
        %v934 = vpop.f32.mrf.mxu0
        %v935 = vadd.f32 0.0, %v934
        %v936 = vpop.f32.mrf.mxu0
        %937 = vmatprep.mubr.bf16.mxu0 0
        %938 = vmatmul.mubr.bf16.gmra.mxu0 %v826
        %v939 = vpop.f32.mrf.mxu0
        %v940 = vadd.f32 0.0, %v939
        %v941 = vpop.f32.mrf.mxu0
        %v942 = vpop.f32.mrf.mxu0
        %v943 = vadd.f32 0.0, %v942
        %v944 = vpop.f32.mrf.mxu0
        %945 = vmatprep.mubr.bf16.mxu0 0
        %946 = vmatmul.mubr.bf16.gmra.mxu0 %v827
        %v947 = vpop.f32.mrf.mxu0
        %v948 = vadd.f32 0.0, %v947
        %v949 = vpop.f32.mrf.mxu0
        %v950 = vpop.f32.mrf.mxu0
        %v951 = vadd.f32 0.0, %v950
        %v952 = vpop.f32.mrf.mxu0
        %953 = vmatprep.mubr.bf16.mxu0 0
        %954 = vmatmul.mubr.bf16.gmra.mxu0 %v828
        %v955 = vpop.f32.mrf.mxu0
        %v956 = vadd.f32 0.0, %v955
        %v957 = vpop.f32.mrf.mxu0
        %v958 = vpop.f32.mrf.mxu0
        %v959 = vadd.f32 0.0, %v958
        %v960 = vpop.f32.mrf.mxu0
        %961 = vmatprep.mubr.bf16.mxu0 0
        %962 = vmatmul.mubr.bf16.gmra.mxu0 %v829
        %v963 = vpop.f32.mrf.mxu0
        %v964 = vadd.f32 0.0, %v963
        %v965 = vpop.f32.mrf.mxu0
        %v966 = vpop.f32.mrf.mxu0
        %v967 = vadd.f32 0.0, %v966
        %v968 = vpop.f32.mrf.mxu0
        %969 = vmatprep.mubr.bf16.mxu0 0
        %970 = vmatmul.mubr.bf16.gmra.mxu0 %v830
        %v971 = vpop.f32.mrf.mxu0
        %v972 = vadd.f32 0.0, %v971
        %v973 = vpop.f32.mrf.mxu0
        %v974 = vpop.f32.mrf.mxu0
        %v975 = vadd.f32 0.0, %v974
        %v976 = vpop.f32.mrf.mxu0
        %977 = vmatprep.mubr.bf16.mxu0 0
        %978 = vmatmul.mubr.bf16.gmra.mxu0 %v831
        %v979 = vpop.f32.mrf.mxu0
        %v980 = vadd.f32 0.0, %v979
        %v981 = vpop.f32.mrf.mxu0
        %v982 = vpop.f32.mrf.mxu0
        %v983 = vadd.f32 0.0, %v982
        %v984 = vpop.f32.mrf.mxu0
        %985 = vmatprep.mubr.bf16.mxu0 0
        %986 = vmatmul.mubr.bf16.gmra.mxu0 %v832
        %v987 = vpop.f32.mrf.mxu0
        %v988 = vadd.f32 0.0, %v987
        %v989 = vpop.f32.mrf.mxu0
        %v990 = vpop.f32.mrf.mxu0
        %v991 = vadd.f32 0.0, %v990
        %v992 = vpop.f32.mrf.mxu0
        %993 = vdwg.mxu0
        %v994 = vld [vmem:[%s421] sm:$0x1]
        %v996 = vlaneseq
        %v997 = vshrl.u32 %v996, 7
        %v998 = vsub.s32 0, %v997
        %v999 = vrot.slane %v994, %v998
        %v1001 = vmul.f32 %v932, %v999
        %v1002 = vmul.f32 %v935, %v999
        %v1003 = vmul.f32 %v940, %v999
        %v1004 = vmul.f32 %v943, %v999
        %v1005 = vmul.f32 %v948, %v999
        %v1006 = vmul.f32 %v951, %v999
        %v1007 = vmul.f32 %v956, %v999
        %v1008 = vmul.f32 %v959, %v999
        %v1009 = vmul.f32 %v964, %v999
        %v1010 = vmul.f32 %v967, %v999
        %v1011 = vmul.f32 %v972, %v999
        %v1012 = vmul.f32 %v975, %v999
        %v1013 = vmul.f32 %v980, %v999
        %v1014 = vmul.f32 %v983, %v999
        %v1015 = vmul.f32 %v988, %v999
        %v1016 = vmul.f32 %v991, %v999
        %v1017 = vld [vmem:[%s424] sm:$0x1]
        %v1019 = vlaneseq
        %v1020 = vshrl.u32 %v1019, 7
        %v1021 = vsub.s32 0, %v1020
        %v1022 = vrot.slane %v1017, %v1021
        %v1024 = vadd.f32 %v1001, %v1022
        %v1025 = vadd.f32 %v1002, %v1022
        %v1026 = vadd.f32 %v1003, %v1022
        %v1027 = vadd.f32 %v1004, %v1022
        %v1028 = vadd.f32 %v1005, %v1022
        %v1029 = vadd.f32 %v1006, %v1022
        %v1030 = vadd.f32 %v1007, %v1022
        %v1031 = vadd.f32 %v1008, %v1022
        %v1032 = vadd.f32 %v1009, %v1022
        %v1033 = vadd.f32 %v1010, %v1022
        %v1034 = vadd.f32 %v1011, %v1022
        %v1035 = vadd.f32 %v1012, %v1022
        %v1036 = vadd.f32 %v1013, %v1022
        %v1037 = vadd.f32 %v1014, %v1022
        %v1038 = vadd.f32 %v1015, %v1022
        %v1039 = vadd.f32 %v1016, %v1022
        %v1040 = vld [vmem:[%s6] sm:$0x1]
        %v1041 = vld [vmem:[%s7] sm:$0x1]
        %1042 = vadd.xlane.f32.xlu0 %v1024
        %v1043 = vpop.xlane.xlu0 %1042
        %1044 = vadd.xlane.f32.xlu0 %v1025
        %v1045 = vpop.xlane.xlu0 %1044
        %1046 = vadd.xlane.f32.xlu0 %v1026
        %v1047 = vpop.xlane.xlu0 %1046
        %1048 = vadd.xlane.f32.xlu0 %v1027
        %v1049 = vpop.xlane.xlu0 %1048
        %1050 = vadd.xlane.f32.xlu0 %v1028
        %v1051 = vpop.xlane.xlu0 %1050
        %1052 = vadd.xlane.f32.xlu0 %v1029
        %v1053 = vpop.xlane.xlu0 %1052
        %1054 = vadd.xlane.f32.xlu0 %v1030
        %v1055 = vpop.xlane.xlu0 %1054
        %1056 = vadd.xlane.f32.xlu0 %v1031
        %v1057 = vpop.xlane.xlu0 %1056
        %1058 = vadd.xlane.f32.xlu0 %v1032
        %v1059 = vpop.xlane.xlu0 %1058
        %1060 = vadd.xlane.f32.xlu0 %v1033
        %v1061 = vpop.xlane.xlu0 %1060
        %1062 = vadd.xlane.f32.xlu0 %v1034
        %v1063 = vpop.xlane.xlu0 %1062
        %1064 = vadd.xlane.f32.xlu0 %v1035
        %v1065 = vpop.xlane.xlu0 %1064
        %1066 = vadd.xlane.f32.xlu0 %v1036
        %v1067 = vpop.xlane.xlu0 %1066
        %1068 = vadd.xlane.f32.xlu0 %v1037
        %v1069 = vpop.xlane.xlu0 %1068
        %1070 = vadd.xlane.f32.xlu0 %v1038
        %v1071 = vpop.xlane.xlu0 %1070
        %1072 = vadd.xlane.f32.xlu0 %v1039
        %v1073 = vpop.xlane.xlu0 %1072
        %v1074 = vmul.f32 %v1024, %v1024
        %v1075 = vmul.f32 %v1025, %v1025
        %v1076 = vmul.f32 %v1026, %v1026
        %v1077 = vmul.f32 %v1027, %v1027
        %v1078 = vmul.f32 %v1028, %v1028
        %v1079 = vmul.f32 %v1029, %v1029
        %v1080 = vmul.f32 %v1030, %v1030
        %v1081 = vmul.f32 %v1031, %v1031
        %v1082 = vmul.f32 %v1032, %v1032
        %v1083 = vmul.f32 %v1033, %v1033
        %v1084 = vmul.f32 %v1034, %v1034
        %v1085 = vmul.f32 %v1035, %v1035
        %v1086 = vmul.f32 %v1036, %v1036
        %v1087 = vmul.f32 %v1037, %v1037
        %v1088 = vmul.f32 %v1038, %v1038
        %v1089 = vmul.f32 %v1039, %v1039
        %1090 = vadd.xlane.f32.xlu0 %v1074
        %v1091 = vpop.xlane.xlu0 %1090
        %1092 = vadd.xlane.f32.xlu0 %v1075
        %v1093 = vpop.xlane.xlu0 %1092
        %1094 = vadd.xlane.f32.xlu0 %v1076
        %v1095 = vpop.xlane.xlu0 %1094
        %1096 = vadd.xlane.f32.xlu0 %v1077
        %v1097 = vpop.xlane.xlu0 %1096
        %1098 = vadd.xlane.f32.xlu0 %v1078
        %v1099 = vpop.xlane.xlu0 %1098
        %1100 = vadd.xlane.f32.xlu0 %v1079
        %v1101 = vpop.xlane.xlu0 %1100
        %1102 = vadd.xlane.f32.xlu0 %v1080
        %v1103 = vpop.xlane.xlu0 %1102
        %1104 = vadd.xlane.f32.xlu0 %v1081
        %v1105 = vpop.xlane.xlu0 %1104
        %1106 = vadd.xlane.f32.xlu0 %v1082
        %v1107 = vpop.xlane.xlu0 %1106
        %1108 = vadd.xlane.f32.xlu0 %v1083
        %v1109 = vpop.xlane.xlu0 %1108
        %1110 = vadd.xlane.f32.xlu0 %v1084
        %v1111 = vpop.xlane.xlu0 %1110
        %1112 = vadd.xlane.f32.xlu0 %v1085
        %v1113 = vpop.xlane.xlu0 %1112
        %1114 = vadd.xlane.f32.xlu0 %v1086
        %v1115 = vpop.xlane.xlu0 %1114
        %1116 = vadd.xlane.f32.xlu0 %v1087
        %v1117 = vpop.xlane.xlu0 %1116
        %1118 = vadd.xlane.f32.xlu0 %v1088
        %v1119 = vpop.xlane.xlu0 %1118
        %1120 = vadd.xlane.f32.xlu0 %v1089
        %v1121 = vpop.xlane.xlu0 %1120
        %v1122 = vmul.f32 %v1043, 0.0078125
        %v1123 = vmul.f32 %v1045, 0.0078125
        %v1124 = vmul.f32 %v1047, 0.0078125
        %v1125 = vmul.f32 %v1049, 0.0078125
        %v1126 = vmul.f32 %v1051, 0.0078125
        %v1127 = vmul.f32 %v1053, 0.0078125
        %v1128 = vmul.f32 %v1055, 0.0078125
        %v1129 = vmul.f32 %v1057, 0.0078125
        %v1130 = vmul.f32 %v1059, 0.0078125
        %v1131 = vmul.f32 %v1061, 0.0078125
        %v1132 = vmul.f32 %v1063, 0.0078125
        %v1133 = vmul.f32 %v1065, 0.0078125
        %v1134 = vmul.f32 %v1067, 0.0078125
        %v1135 = vmul.f32 %v1069, 0.0078125
        %v1136 = vmul.f32 %v1071, 0.0078125
        %v1137 = vmul.f32 %v1073, 0.0078125
        %v1138 = vmul.f32 %v1091, 0.0078125
        %v1139 = vmul.f32 %v1093, 0.0078125
        %v1140 = vmul.f32 %v1095, 0.0078125
        %v1141 = vmul.f32 %v1097, 0.0078125
        %v1142 = vmul.f32 %v1099, 0.0078125
        %v1143 = vmul.f32 %v1101, 0.0078125
        %v1144 = vmul.f32 %v1103, 0.0078125
        %v1145 = vmul.f32 %v1105, 0.0078125
        %v1146 = vmul.f32 %v1107, 0.0078125
        %v1147 = vmul.f32 %v1109, 0.0078125
        %v1148 = vmul.f32 %v1111, 0.0078125
        %v1149 = vmul.f32 %v1113, 0.0078125
        %v1150 = vmul.f32 %v1115, 0.0078125
        %v1151 = vmul.f32 %v1117, 0.0078125
        %v1152 = vmul.f32 %v1119, 0.0078125
        %v1153 = vmul.f32 %v1121, 0.0078125
        %v1154 = vmul.f32 %v1122, %v1122
        %v1155 = vmul.f32 %v1123, %v1123
        %v1156 = vmul.f32 %v1124, %v1124
        %v1157 = vmul.f32 %v1125, %v1125
        %v1158 = vmul.f32 %v1126, %v1126
        %v1159 = vmul.f32 %v1127, %v1127
        %v1160 = vmul.f32 %v1128, %v1128
        %v1161 = vmul.f32 %v1129, %v1129
        %v1162 = vmul.f32 %v1130, %v1130
        %v1163 = vmul.f32 %v1131, %v1131
        %v1164 = vmul.f32 %v1132, %v1132
        %v1165 = vmul.f32 %v1133, %v1133
        %v1166 = vmul.f32 %v1134, %v1134
        %v1167 = vmul.f32 %v1135, %v1135
        %v1168 = vmul.f32 %v1136, %v1136
        %v1169 = vmul.f32 %v1137, %v1137
        %v1170 = vsub.f32 %v1138, %v1154
        %v1171 = vsub.f32 %v1139, %v1155
        %v1172 = vsub.f32 %v1140, %v1156
        %v1173 = vsub.f32 %v1141, %v1157
        %v1174 = vsub.f32 %v1142, %v1158
        %v1175 = vsub.f32 %v1143, %v1159
        %v1176 = vsub.f32 %v1144, %v1160
        %v1177 = vsub.f32 %v1145, %v1161
        %v1178 = vsub.f32 %v1146, %v1162
        %v1179 = vsub.f32 %v1147, %v1163
        %v1180 = vsub.f32 %v1148, %v1164
        %v1181 = vsub.f32 %v1149, %v1165
        %v1182 = vsub.f32 %v1150, %v1166
        %v1183 = vsub.f32 %v1151, %v1167
        %v1184 = vsub.f32 %v1152, %v1168
        %v1185 = vsub.f32 %v1153, %v1169
        %v1186 = vmax.f32 %v1170, 0.0
        %v1187 = vmax.f32 %v1171, 0.0
        %v1188 = vmax.f32 %v1172, 0.0
        %v1189 = vmax.f32 %v1173, 0.0
        %v1190 = vmax.f32 %v1174, 0.0
        %v1191 = vmax.f32 %v1175, 0.0
        %v1192 = vmax.f32 %v1176, 0.0
        %v1193 = vmax.f32 %v1177, 0.0
        %v1194 = vmax.f32 %v1178, 0.0
        %v1195 = vmax.f32 %v1179, 0.0
        %v1196 = vmax.f32 %v1180, 0.0
        %v1197 = vmax.f32 %v1181, 0.0
        %v1198 = vmax.f32 %v1182, 0.0
        %v1199 = vmax.f32 %v1183, 0.0
        %v1200 = vmax.f32 %v1184, 0.0
        %v1201 = vmax.f32 %v1185, 0.0
        %v1202 = vsub.f32 %v1024, %v1122
        %v1203 = vsub.f32 %v1025, %v1123
        %v1204 = vsub.f32 %v1026, %v1124
        %v1205 = vsub.f32 %v1027, %v1125
        %v1206 = vsub.f32 %v1028, %v1126
        %v1207 = vsub.f32 %v1029, %v1127
        %v1208 = vsub.f32 %v1030, %v1128
        %v1209 = vsub.f32 %v1031, %v1129
        %v1210 = vsub.f32 %v1032, %v1130
        %v1211 = vsub.f32 %v1033, %v1131
        %v1212 = vsub.f32 %v1034, %v1132
        %v1213 = vsub.f32 %v1035, %v1133
        %v1214 = vsub.f32 %v1036, %v1134
        %v1215 = vsub.f32 %v1037, %v1135
        %v1216 = vsub.f32 %v1038, %v1136
        %v1217 = vsub.f32 %v1039, %v1137
        %v1218 = vadd.f32 %v1186, 1e-05
        %v1219 = vadd.f32 %v1187, 1e-05
        %v1220 = vadd.f32 %v1188, 1e-05
        %v1221 = vadd.f32 %v1189, 1e-05
        %v1222 = vadd.f32 %v1190, 1e-05
        %v1223 = vadd.f32 %v1191, 1e-05
        %v1224 = vadd.f32 %v1192, 1e-05
        %v1225 = vadd.f32 %v1193, 1e-05
        %v1226 = vadd.f32 %v1194, 1e-05
        %v1227 = vadd.f32 %v1195, 1e-05
        %v1228 = vadd.f32 %v1196, 1e-05
        %v1229 = vadd.f32 %v1197, 1e-05
        %v1230 = vadd.f32 %v1198, 1e-05
        %v1231 = vadd.f32 %v1199, 1e-05
        %v1232 = vadd.f32 %v1200, 1e-05
        %v1233 = vadd.f32 %v1201, 1e-05
        %v1234 = vrsqrt.pop %v1218
        %v1235 = vrsqrt.pop %v1219
        %v1236 = vrsqrt.pop %v1220
        %v1237 = vrsqrt.pop %v1221
        %v1238 = vrsqrt.pop %v1222
        %v1239 = vrsqrt.pop %v1223
        %v1240 = vrsqrt.pop %v1224
        %v1241 = vrsqrt.pop %v1225
        %v1242 = vrsqrt.pop %v1226
        %v1243 = vrsqrt.pop %v1227
        %v1244 = vrsqrt.pop %v1228
        %v1245 = vrsqrt.pop %v1229
        %v1246 = vrsqrt.pop %v1230
        %v1247 = vrsqrt.pop %v1231
        %v1248 = vrsqrt.pop %v1232
        %v1249 = vrsqrt.pop %v1233
        %v1250 = vmul.f32 %v1202, %v1234
        %v1251 = vmul.f32 %v1203, %v1235
        %v1252 = vmul.f32 %v1204, %v1236
        %v1253 = vmul.f32 %v1205, %v1237
        %v1254 = vmul.f32 %v1206, %v1238
        %v1255 = vmul.f32 %v1207, %v1239
        %v1256 = vmul.f32 %v1208, %v1240
        %v1257 = vmul.f32 %v1209, %v1241
        %v1258 = vmul.f32 %v1210, %v1242
        %v1259 = vmul.f32 %v1211, %v1243
        %v1260 = vmul.f32 %v1212, %v1244
        %v1261 = vmul.f32 %v1213, %v1245
        %v1262 = vmul.f32 %v1214, %v1246
        %v1263 = vmul.f32 %v1215, %v1247
        %v1264 = vmul.f32 %v1216, %v1248
        %v1265 = vmul.f32 %v1217, %v1249
        %v1267 = vlaneseq
        %v1268 = vshrl.u32 %v1267, 7
        %v1269 = vsub.s32 0, %v1268
        %v1270 = vrot.slane %v1040, %v1269
        %v1272 = vmul.f32 %v1250, %v1270
        %v1273 = vmul.f32 %v1251, %v1270
        %v1274 = vmul.f32 %v1252, %v1270
        %v1275 = vmul.f32 %v1253, %v1270
        %v1276 = vmul.f32 %v1254, %v1270
        %v1277 = vmul.f32 %v1255, %v1270
        %v1278 = vmul.f32 %v1256, %v1270
        %v1279 = vmul.f32 %v1257, %v1270
        %v1280 = vmul.f32 %v1258, %v1270
        %v1281 = vmul.f32 %v1259, %v1270
        %v1282 = vmul.f32 %v1260, %v1270
        %v1283 = vmul.f32 %v1261, %v1270
        %v1284 = vmul.f32 %v1262, %v1270
        %v1285 = vmul.f32 %v1263, %v1270
        %v1286 = vmul.f32 %v1264, %v1270
        %v1287 = vmul.f32 %v1265, %v1270
        %v1289 = vlaneseq
        %v1290 = vshrl.u32 %v1289, 7
        %v1291 = vsub.s32 0, %v1290
        %v1292 = vrot.slane %v1041, %v1291
        %v1294 = vadd.f32 %v1272, %v1292
        %v1295 = vadd.f32 %v1273, %v1292
        %v1296 = vadd.f32 %v1274, %v1292
        %v1297 = vadd.f32 %v1275, %v1292
        %v1298 = vadd.f32 %v1276, %v1292
        %v1299 = vadd.f32 %v1277, %v1292
        %v1300 = vadd.f32 %v1278, %v1292
        %v1301 = vadd.f32 %v1279, %v1292
        %v1302 = vadd.f32 %v1280, %v1292
        %v1303 = vadd.f32 %v1281, %v1292
        %v1304 = vadd.f32 %v1282, %v1292
        %v1305 = vadd.f32 %v1283, %v1292
        %v1306 = vadd.f32 %v1284, %v1292
        %v1307 = vadd.f32 %v1285, %v1292
        %v1308 = vadd.f32 %v1286, %v1292
        %v1309 = vadd.f32 %v1287, %v1292
        %v1310 = vxor.u32 %v1294, 2147483648
        %v1311 = vxor.u32 %v1295, 2147483648
        %v1312 = vxor.u32 %v1296, 2147483648
        %v1313 = vxor.u32 %v1297, 2147483648
        %v1314 = vxor.u32 %v1298, 2147483648
        %v1315 = vxor.u32 %v1299, 2147483648
        %v1316 = vxor.u32 %v1300, 2147483648
        %v1317 = vxor.u32 %v1301, 2147483648
        %v1318 = vxor.u32 %v1302, 2147483648
        %v1319 = vxor.u32 %v1303, 2147483648
        %v1320 = vxor.u32 %v1304, 2147483648
        %v1321 = vxor.u32 %v1305, 2147483648
        %v1322 = vxor.u32 %v1306, 2147483648
        %v1323 = vxor.u32 %v1307, 2147483648
        %v1324 = vxor.u32 %v1308, 2147483648
        %v1325 = vxor.u32 %v1309, 2147483648
        %v1326 = vmul.f32 %v1310, 1.442695
        %v1327 = vpow.pop %v1326
        %v1328 = vmul.f32 %v1311, 1.442695
        %v1329 = vpow.pop %v1328
        %v1330 = vmul.f32 %v1312, 1.442695
        %v1331 = vpow.pop %v1330
        %v1332 = vmul.f32 %v1313, 1.442695
        %v1333 = vpow.pop %v1332
        %v1334 = vmul.f32 %v1314, 1.442695
        %v1335 = vpow.pop %v1334
        %v1336 = vmul.f32 %v1315, 1.442695
        %v1337 = vpow.pop %v1336
        %v1338 = vmul.f32 %v1316, 1.442695
        %v1339 = vpow.pop %v1338
        %v1340 = vmul.f32 %v1317, 1.442695
        %v1341 = vpow.pop %v1340
        %v1342 = vmul.f32 %v1318, 1.442695
        %v1343 = vpow.pop %v1342
        %v1344 = vmul.f32 %v1319, 1.442695
        %v1345 = vpow.pop %v1344
        %v1346 = vmul.f32 %v1320, 1.442695
        %v1347 = vpow.pop %v1346
        %v1348 = vmul.f32 %v1321, 1.442695
        %v1349 = vpow.pop %v1348
        %v1350 = vmul.f32 %v1322, 1.442695
        %v1351 = vpow.pop %v1350
        %v1352 = vmul.f32 %v1323, 1.442695
        %v1353 = vpow.pop %v1352
        %v1354 = vmul.f32 %v1324, 1.442695
        %v1355 = vpow.pop %v1354
        %v1356 = vmul.f32 %v1325, 1.442695
        %v1357 = vpow.pop %v1356
        %v1358 = vadd.f32 %v1327, 1.0
        %v1359 = vadd.f32 %v1329, 1.0
        %v1360 = vadd.f32 %v1331, 1.0
        %v1361 = vadd.f32 %v1333, 1.0
        %v1362 = vadd.f32 %v1335, 1.0
        %v1363 = vadd.f32 %v1337, 1.0
        %v1364 = vadd.f32 %v1339, 1.0
        %v1365 = vadd.f32 %v1341, 1.0
        %v1366 = vadd.f32 %v1343, 1.0
        %v1367 = vadd.f32 %v1345, 1.0
        %v1368 = vadd.f32 %v1347, 1.0
        %v1369 = vadd.f32 %v1349, 1.0
        %v1370 = vadd.f32 %v1351, 1.0
        %v1371 = vadd.f32 %v1353, 1.0
        %v1372 = vadd.f32 %v1355, 1.0
        %v1373 = vadd.f32 %v1357, 1.0
        %v1374 = vrcp.pop %v1358
        %v1375 = vmul.f32 1.0, %v1374
        %v1376 = vrcp.pop %v1359
        %v1377 = vmul.f32 1.0, %v1376
        %v1378 = vrcp.pop %v1360
        %v1379 = vmul.f32 1.0, %v1378
        %v1380 = vrcp.pop %v1361
        %v1381 = vmul.f32 1.0, %v1380
        %v1382 = vrcp.pop %v1362
        %v1383 = vmul.f32 1.0, %v1382
        %v1384 = vrcp.pop %v1363
        %v1385 = vmul.f32 1.0, %v1384
        %v1386 = vrcp.pop %v1364
        %v1387 = vmul.f32 1.0, %v1386
        %v1388 = vrcp.pop %v1365
        %v1389 = vmul.f32 1.0, %v1388
        %v1390 = vrcp.pop %v1366
        %v1391 = vmul.f32 1.0, %v1390
        %v1392 = vrcp.pop %v1367
        %v1393 = vmul.f32 1.0, %v1392
        %v1394 = vrcp.pop %v1368
        %v1395 = vmul.f32 1.0, %v1394
        %v1396 = vrcp.pop %v1369
        %v1397 = vmul.f32 1.0, %v1396
        %v1398 = vrcp.pop %v1370
        %v1399 = vmul.f32 1.0, %v1398
        %v1400 = vrcp.pop %v1371
        %v1401 = vmul.f32 1.0, %v1400
        %v1402 = vrcp.pop %v1372
        %v1403 = vmul.f32 1.0, %v1402
        %v1404 = vrcp.pop %v1373
        %v1405 = vmul.f32 1.0, %v1404
        %v1406 = vmul.f32 %v1294, %v1375
        %v1407 = vmul.f32 %v1295, %v1377
        %v1408 = vmul.f32 %v1296, %v1379
        %v1409 = vmul.f32 %v1297, %v1381
        %v1410 = vmul.f32 %v1298, %v1383
        %v1411 = vmul.f32 %v1299, %v1385
        %v1412 = vmul.f32 %v1300, %v1387
        %v1413 = vmul.f32 %v1301, %v1389
        %v1414 = vmul.f32 %v1302, %v1391
        %v1415 = vmul.f32 %v1303, %v1393
        %v1416 = vmul.f32 %v1304, %v1395
        %v1417 = vmul.f32 %v1305, %v1397
        %v1418 = vmul.f32 %v1306, %v1399
        %v1419 = vmul.f32 %v1307, %v1401
        %v1420 = vmul.f32 %v1308, %v1403
        %v1421 = vmul.f32 %v1309, %v1405
        %v1422 = vpack.c.bf16 %v1407, %v1406
        %v1423 = vpack.c.bf16 %v1409, %v1408
        %v1424 = vpack.c.bf16 %v1411, %v1410
        %v1425 = vpack.c.bf16 %v1413, %v1412
        %v1426 = vpack.c.bf16 %v1415, %v1414
        %v1427 = vpack.c.bf16 %v1417, %v1416
        %v1428 = vpack.c.bf16 %v1419, %v1418
        %v1429 = vpack.c.bf16 %v1421, %v1420
        %v1430 = vld [vmem:[%s8] sm:$0xf]
        %v1431 = vld [vmem:[%s8 + $0x4] sm:$0xf]
        %v1432 = vld [vmem:[%s8 + $0x8] sm:$0xf]
        %v1433 = vld [vmem:[%s8 + $0xc] sm:$0xf]
        %v1434 = vld [vmem:[%s8 + $0x10] sm:$0xf]
        %v1435 = vld [vmem:[%s8 + $0x14] sm:$0xf]
        %v1436 = vld [vmem:[%s8 + $0x18] sm:$0xf]
        %v1437 = vld [vmem:[%s8 + $0x1c] sm:$0xf]
        %v1438 = vld [vmem:[%s8 + $0x20] sm:$0xf]
        %v1439 = vld [vmem:[%s8 + $0x24] sm:$0xf]
        %v1440 = vld [vmem:[%s8 + $0x28] sm:$0xf]
        %v1441 = vld [vmem:[%s8 + $0x2c] sm:$0xf]
        %v1442 = vld [vmem:[%s8 + $0x30] sm:$0xf]
        %v1443 = vld [vmem:[%s8 + $0x34] sm:$0xf]
        %v1444 = vld [vmem:[%s8 + $0x38] sm:$0xf]
        %v1445 = vld [vmem:[%s8 + $0x3c] sm:$0xf]
        %v1446 = vld [vmem:[%s9] sm:$0x1]
        %v1448 = vlaneseq
        %v1449 = vshrl.u32 %v1448, 7
        %v1450 = vsub.s32 0, %v1449
        %v1451 = vrot.slane %v1446, %v1450
        %v1469 = vunpack.c.l.b16 %v1430
        %v1470 = vunpack.c.l.b16 %v1431
        %v1471 = vunpack.c.l.b16 %v1432
        %v1472 = vunpack.c.l.b16 %v1433
        %v1473 = vunpack.c.l.b16 %v1434
        %v1474 = vunpack.c.l.b16 %v1435
        %v1475 = vunpack.c.l.b16 %v1436
        %v1476 = vunpack.c.l.b16 %v1437
        %v1477 = vunpack.c.l.b16 %v1438
        %v1478 = vunpack.c.l.b16 %v1439
        %v1479 = vunpack.c.l.b16 %v1440
        %v1480 = vunpack.c.l.b16 %v1441
        %v1481 = vunpack.c.l.b16 %v1442
        %v1482 = vunpack.c.l.b16 %v1443
        %v1483 = vunpack.c.l.b16 %v1444
        %v1484 = vunpack.c.l.b16 %v1445
        %v1485 = vpack.c.b16 %v1470, %v1469
        %v1486 = vpack.c.b16 %v1472, %v1471
        %v1487 = vpack.c.b16 %v1474, %v1473
        %v1488 = vpack.c.b16 %v1476, %v1475
        %v1489 = vpack.c.b16 %v1478, %v1477
        %v1490 = vpack.c.b16 %v1480, %v1479
        %v1491 = vpack.c.b16 %v1482, %v1481
        %v1492 = vpack.c.b16 %v1484, %v1483
        %1501 = vmatprep.subr.bf16.mxu0 0
        %1502 = vmatpush1.bf16.msra.mxu0 %v1492
        %1503 = vmatprep.subr.bf16.mxu0 0
        %1504 = vmatpush1.bf16.msra.mxu0 %v1491
        %1505 = vmatprep.subr.bf16.mxu0 0
        %1506 = vmatpush1.bf16.msra.mxu0 %v1490
        %1507 = vmatprep.subr.bf16.mxu0 0
        %1508 = vmatpush1.bf16.msra.mxu0 %v1489
        %1509 = vmatprep.subr.bf16.mxu0 0
        %1510 = vmatpush1.bf16.msra.mxu0 %v1488
        %1511 = vmatprep.subr.bf16.mxu0 0
        %1512 = vmatpush1.bf16.msra.mxu0 %v1487
        %1513 = vmatprep.subr.bf16.mxu0 0
        %1514 = vmatpush1.bf16.msra.mxu0 %v1486
        %1515 = vmatprep.subr.bf16.mxu0 0
        %1516 = vmatpush1.bf16.msra.mxu0 %v1485
        %1517 = vmatprep.subr.bf16.mxu0 0
        %1518 = vmatpush2.bf16.msra.mxu0 0
        %1519 = vmatprep.subr.bf16.mxu0 0
        %1520 = vmatpush2.bf16.msra.mxu0 0
        %1521 = vmatprep.subr.bf16.mxu0 0
        %1522 = vmatpush2.bf16.msra.mxu0 0
        %1523 = vmatprep.subr.bf16.mxu0 0
        %1524 = vmatpush2.bf16.msra.mxu0 0
        %1525 = vmatprep.subr.bf16.mxu0 0
        %1526 = vmatpush2.bf16.msra.mxu0 0
        %1527 = vmatprep.subr.bf16.mxu0 0
        %1528 = vmatpush2.bf16.msra.mxu0 0
        %1529 = vmatprep.subr.bf16.mxu0 0
        %1530 = vmatpush2.bf16.msra.mxu0 0
        %1531 = vmatprep.subr.bf16.mxu0 0
        %1532 = vmatpush2.bf16.msra.mxu0 0
        %1533 = vmatprep.mubr.bf16.mxu0 0
        %1534 = vmatmul.mubr.bf16.gmra.mxu0 %v1422
        %v1535 = vpop.f32.mrf.mxu0
        %v1536 = vadd.f32 %v1451, %v1535
        %v1537 = vpop.f32.mrf.mxu0
        %v1538 = vpop.f32.mrf.mxu0
        %v1539 = vadd.f32 %v1451, %v1538
        %v1540 = vpop.f32.mrf.mxu0
        %1541 = vmatprep.mubr.bf16.mxu0 0
        %1542 = vmatmul.mubr.bf16.gmra.mxu0 %v1423
        %v1543 = vpop.f32.mrf.mxu0
        %v1544 = vadd.f32 %v1451, %v1543
        %v1545 = vpop.f32.mrf.mxu0
        %v1546 = vpop.f32.mrf.mxu0
        %v1547 = vadd.f32 %v1451, %v1546
        %v1548 = vpop.f32.mrf.mxu0
        %1549 = vmatprep.mubr.bf16.mxu0 0
        %1550 = vmatmul.mubr.bf16.gmra.mxu0 %v1424
        %v1551 = vpop.f32.mrf.mxu0
        %v1552 = vadd.f32 %v1451, %v1551
        %v1553 = vpop.f32.mrf.mxu0
        %v1554 = vpop.f32.mrf.mxu0
        %v1555 = vadd.f32 %v1451, %v1554
        %v1556 = vpop.f32.mrf.mxu0
        %1557 = vmatprep.mubr.bf16.mxu0 0
        %1558 = vmatmul.mubr.bf16.gmra.mxu0 %v1425
        %v1559 = vpop.f32.mrf.mxu0
        %v1560 = vadd.f32 %v1451, %v1559
        %v1561 = vpop.f32.mrf.mxu0
        %v1562 = vpop.f32.mrf.mxu0
        %v1563 = vadd.f32 %v1451, %v1562
        %v1564 = vpop.f32.mrf.mxu0
        %1565 = vmatprep.mubr.bf16.mxu0 0
        %1566 = vmatmul.mubr.bf16.gmra.mxu0 %v1426
        %v1567 = vpop.f32.mrf.mxu0
        %v1568 = vadd.f32 %v1451, %v1567
        %v1569 = vpop.f32.mrf.mxu0
        %v1570 = vpop.f32.mrf.mxu0
        %v1571 = vadd.f32 %v1451, %v1570
        %v1572 = vpop.f32.mrf.mxu0
        %1573 = vmatprep.mubr.bf16.mxu0 0
        %1574 = vmatmul.mubr.bf16.gmra.mxu0 %v1427
        %v1575 = vpop.f32.mrf.mxu0
        %v1576 = vadd.f32 %v1451, %v1575
        %v1577 = vpop.f32.mrf.mxu0
        %v1578 = vpop.f32.mrf.mxu0
        %v1579 = vadd.f32 %v1451, %v1578
        %v1580 = vpop.f32.mrf.mxu0
        %1581 = vmatprep.mubr.bf16.mxu0 0
        %1582 = vmatmul.mubr.bf16.gmra.mxu0 %v1428
        %v1583 = vpop.f32.mrf.mxu0
        %v1584 = vadd.f32 %v1451, %v1583
        %v1585 = vpop.f32.mrf.mxu0
        %v1586 = vpop.f32.mrf.mxu0
        %v1587 = vadd.f32 %v1451, %v1586
        %v1588 = vpop.f32.mrf.mxu0
        %1589 = vmatprep.mubr.bf16.mxu0 0
        %1590 = vmatmul.mubr.bf16.gmra.mxu0 %v1429
        %v1591 = vpop.f32.mrf.mxu0
        %v1592 = vadd.f32 %v1451, %v1591
        %v1593 = vpop.f32.mrf.mxu0
        %v1594 = vpop.f32.mrf.mxu0
        %v1595 = vadd.f32 %v1451, %v1594
        %v1596 = vpop.f32.mrf.mxu0
        %1597 = vdwg.mxu0
        %v1598 = vadd.f32 %v427, %v1536
        %v1599 = vadd.f32 %v428, %v1539
        %v1600 = vadd.f32 %v429, %v1544
        %v1601 = vadd.f32 %v430, %v1547
        %v1602 = vadd.f32 %v431, %v1552
        %v1603 = vadd.f32 %v432, %v1555
        %v1604 = vadd.f32 %v433, %v1560
        %v1605 = vadd.f32 %v434, %v1563
        %v1606 = vadd.f32 %v435, %v1568
        %v1607 = vadd.f32 %v436, %v1571
        %v1608 = vadd.f32 %v437, %v1576
        %v1609 = vadd.f32 %v438, %v1579
        %v1610 = vadd.f32 %v439, %v1584
        %v1611 = vadd.f32 %v440, %v1587
        %v1612 = vadd.f32 %v441, %v1592
        %v1613 = vadd.f32 %v442, %v1595
        %1614 = vst [vmem:[%s417] sm:$0xff] %v1598
        %1615 = vst [vmem:[%s417 + $0x8] sm:$0xff] %v1599
        %1616 = vst [vmem:[%s417 + $0x10] sm:$0xff] %v1600
        %1617 = vst [vmem:[%s417 + $0x18] sm:$0xff] %v1601
        %1618 = vst [vmem:[%s417 + $0x20] sm:$0xff] %v1602
        %1619 = vst [vmem:[%s417 + $0x28] sm:$0xff] %v1603
        %1620 = vst [vmem:[%s417 + $0x30] sm:$0xff] %v1604
        %1621 = vst [vmem:[%s417 + $0x38] sm:$0xff] %v1605
        %1622 = vst [vmem:[%s417 + $0x40] sm:$0xff] %v1606
        %1623 = vst [vmem:[%s417 + $0x48] sm:$0xff] %v1607
        %1624 = vst [vmem:[%s417 + $0x50] sm:$0xff] %v1608
        %1625 = vst [vmem:[%s417 + $0x58] sm:$0xff] %v1609
        %1626 = vst [vmem:[%s417 + $0x60] sm:$0xff] %v1610
        %1627 = vst [vmem:[%s417 + $0x68] sm:$0xff] %v1611
        %1628 = vst [vmem:[%s417 + $0x70] sm:$0xff] %v1612
        %1629 = vst [vmem:[%s417 + $0x78] sm:$0xff] %v1613
        %s1630 = sand.u32 %s276, 1
        %s1631 = scalar_lea.sflag [#allocation4], %s1630
        %s1632 = sand.u32 %s276, 1
        %s1633 = smul.addr %s1632, 128
        %s1634 = scalar_lea.vmem [#allocation5], %s1633
        // Predicated region
        $region65: #{resblock_forward.1} parent=59 // pred_check
          %p1635 = pneg %p286
        $region66: #{resblock_forward.1} parent=59 // pred_check_branch
          %1637 = sbr.rel (%p1635) target = $region68
        $region67: #{resblock_forward.1} parent=59 // pred_region
          %s1638 = smul.u32 16, %s32
          %s1640 = ssub.s32 2048, 2048
          %1641 = vsyncadd %s1631, %s1640
          %s1642 = smul.addr %s31, 64
          %s1643 = sadd.s32 %s1638, %s1642
          %s1644 = smul.addr %s1643, 128
          %s1645 = scalar_lea.hbm %s10, %s1644
          %s1646 = sshll.u32 %s1634, 4
          %s1647 = int_to_ptr.vmem [resolvable:$true] %s1646
          %1652 = dma.vmem_to_hbm [thread:$0]  %s1647, 2048, %s1645, %s1631, 128, 128, 8
        $region68: #{resblock_forward.1} parent=59 // pred_fallthru
          _
      $region60: #{resblock_forward.1} parent=5 // pred_fallthru
        _
      %p1653 = scmp.le.s32.totalorder 2, %s22
      // Predicated region
      $region69: #{resblock_forward.1} parent=5 // pred_check
        %p1654 = pneg %p1653
      $region70: #{resblock_forward.1} parent=5 // pred_check_branch
        %1656 = sbr.rel (%p1654) target = $region72
      $region71: #{resblock_forward.1} parent=5 // pred_region
        %s1657 = ssub.s32 %s22, 2
        // Predicated region
        $region73: #{resblock_forward.1} parent=71 // pred_check
          %p1658 = pneg %p292
        $region74: #{resblock_forward.1} parent=71 // pred_check_branch
          %1660 = sbr.rel (%p1658) target = $region76
        $region75: #{resblock_forward.1} parent=71 // pred_region
          %s1661 = sand.u32 %s277, 1
          %s1662 = scalar_lea.sflag [#allocation4], %s1661
          %s1663 = sand.u32 %s277, 1
          %s1664 = smul.addr %s1663, 128
          %s1665 = scalar_lea.vmem [#allocation5], %s1664
          %1666 = dma.done %s1662, 2048
        $region76: #{resblock_forward.1} parent=71 // pred_fallthru
          _
      $region72: #{resblock_forward.1} parent=5 // pred_fallthru
        _
    $region6: #{resblock_forward.1} parent=1 // loop_footer
      %s26 = sadd.s32 1, %s22
    $region7: #{resblock_forward.1} parent=1 // loop_footer_branch
      %21 = sbr.rel target = $region3
    $region8: #{resblock_forward.1} parent=1 // loop_exit
      _
    %1667 = vsyncpa [#allocation3], 1
    %s1668 = scalar_lea.sflag [#allocation3], 1
    %1669 = vsyncpa %s1668, 1
    %1670 = vsyncpa [#allocation4], 1
    %s1671 = scalar_lea.sflag [#allocation4], 1
    %1672 = vsyncpa %s1671, 1

// kernel: resblock_forward.1
$region0: #{resblock_forward.1}
  #allocation0 [shape = 'u32[]', space=smem, size = 0x4, offset = 0x4, fixed_abs, tag = 'smem constant byte address 0x4 - core index']
  #allocation1 [shape = 'u32[144,128]{1,0:T(1,128)}', space=vmem, size = 0x12000, scoped, tag = 'internal scratch']
  %s0 = inlined_call_operand.hbm [shape: f32[2,512,128], index: 0, kind: input, shape index: {}]
  %s1 = inlined_call_operand.vmem [shape: f32[2,1,128], index: 1, kind: input, shape index: {}]
  %s2 = inlined_call_operand.vmem [shape: f32[2,1,128], index: 2, kind: input, shape index: {}]
  %s3 = inlined_call_operand.vmem [shape: f32[1,128], index: 3, kind: input, shape index: {}]
  %s4 = inlined_call_operand.vmem [shape: f32[1,128], index: 4, kind: input, shape index: {}]
  %s5 = inlined_call_operand.vmem [shape: bf16[128,128], index: 5, kind: input, shape index: {}]
  %s6 = inlined_call_operand.vmem [shape: f32[1,128], index: 6, kind: input, shape index: {}]
  %s7 = inlined_call_operand.vmem [shape: f32[1,128], index: 7, kind: input, shape index: {}]
  %s8 = inlined_call_operand.vmem [shape: bf16[128,128], index: 8, kind: input, shape index: {}]
  %s9 = inlined_call_operand.vmem [shape: f32[1,128], index: 9, kind: input, shape index: {}]
  %s10 = inlined_call_operand.hbm [shape: f32[2,512,128], index: 10, kind: output, shape index: {}]
  %s11 = sld [smem:[#allocation0]]
  $region77: #{resblock_forward.1} parent=0
    _
  %s13 = ssub.s32 1, %s11
  %s14 = scalar_select 0, %s13, %s11
  $region1: #{resblock_forward.1} parent=0
    #allocation2 [shape = 'u8[131072]{0}', space=vmem, size = 0x20000, scoped, tag = 'input window, operand 0']
    #allocation3 [shape = 's32[2]{0}', space=sflag, size = 0x8, scoped, tag = 'scoped memory for resblock_forward.1']
    #allocation4 [shape = 's32[2]{0}', space=sflag, size = 0x8, scoped, tag = 'scoped memory for resblock_forward.1']
    #allocation5 [shape = 'u8[131072]{0}', space=vmem, size = 0x20000, scoped, tag = 'output window, operand 0']
    %15 = vsyncpa [#allocation3], 0
    %s16 = scalar_lea.sflag [#allocation3], 1
    %17 = vsyncpa %s16, 0
    %18 = vsyncpa [#allocation4], 0
    %s19 = scalar_lea.sflag [#allocation4], 1
    %20 = vsyncpa %s19, 0
    loop: start=0, step=1, limit=10
    $region2: #{resblock_forward.1} parent=1 // loop_pre_header
      _
    $region3: #{resblock_forward.1} parent=1 // loop_header
      %s22 = sphi 0, %s26
      %p23 = scmp.ge.s32.totalorder %s22, 10
      %s29 = sphi 0, %s41
      %s30 = sphi 0, %s37
      %s31 = sphi 0, %s29
      %s32 = sphi 0, %s30
      %s33 = sphi 0, %s31
      %s34 = sphi 0, %s32
      %s46 = sphi 0, %s48
      %s49 = sphi 0, %s46
      %s50 = sphi 0, %s49
      %s66 = sphi 0, %s50
      %s72 = sphi 0, %s74
      %s75 = sphi 0, %s72
      %s76 = sphi 0, %s75
      %s92 = sphi 0, %s76
      %s98 = sphi 0, %s100
      %s101 = sphi 0, %s98
      %s102 = sphi 0, %s101
      %s118 = sphi 0, %s102
      %s122 = sphi 0, %s122
      %s124 = sphi 0, %s122
      %s125 = sphi 0, %s124
      %s139 = sphi 0, %s125
      %s143 = sphi 0, %s143
      %s145 = sphi 0, %s143
      %s146 = sphi 0, %s145
      %s160 = sphi 0, %s146
      %s164 = sphi 0, %s164
      %s166 = sphi 0, %s164
      %s167 = sphi 0, %s166
      %s181 = sphi 0, %s167
      %s185 = sphi 0, %s185
      %s187 = sphi 0, %s185
      %s188 = sphi 0, %s187
      %s202 = sphi 0, %s188
      %s206 = sphi 0, %s206
      %s208 = sphi 0, %s206
      %s209 = sphi 0, %s208
      %s223 = sphi 0, %s209
      %s227 = sphi 0, %s227
      %s229 = sphi 0, %s227
      %s230 = sphi 0, %s229
      %s244 = sphi 0, %s230
      %s248 = sphi 0, %s248
      %s250 = sphi 0, %s248
      %s251 = sphi 0, %s250
      %s265 = sphi 0, %s251
      %s273 = sphi 0, %s275
      %s276 = sphi 0, %s273
      %s277 = sphi 0, %s276
      %s293 = sphi 0, %s277
    $region4: #{resblock_forward.1} parent=1 // loop_header_branch
      %25 = sbr.rel (%p23) target = $region8
    $region5: #{resblock_forward.1} parent=1 // loop_body
      %s27 = ssub.s32 %s22, 1
      %s28 = ssub.s32 %s22, 2
      %s35 = sadd.s32 1, %s30
      %p36 = scmp.ge.s32.totalorder %s35, 4
      %s37 = scalar_select %p36, 0, %s35
      %s38 = sadd.s32 1, %s29
      %s39 = scalar_select %p36, %s38, %s29
      %p40 = scmp.ge.s32.totalorder %s39, 2
      %s41 = scalar_select %p40, 0, %s39
      %s42 = ssub.s32 %s29, %s41
      %s43 = ssub.s32 %s30, %s37
      %s44 = sor.u32 %s42, %s43
      %p45 = scmp.eq.s32.totalorder %s44, 0
      %s47 = sadd.s32 %s46, 1
      %s48 = scalar_select %p45, %s46, %s47
      %p51 = pneg %p45
      %p52 = scmp.eq.s32.totalorder %s22, 7
      %p53 = por %p51, %p52
      %p54 = scmp.ne.s32.totalorder %s46, %s49
      %p55 = scmp.eq.s32.totalorder %s22, 0
      %p56 = por %p54, %p55
      %p57 = scmp.ne.s32.totalorder %s46, %s49
      %p58 = scmp.eq.s32.totalorder %s27, 7
      %p59 = por %p57, %p58
      %p60 = scmp.ne.s32.totalorder %s49, %s50
      %p61 = scmp.eq.s32.totalorder %s27, 0
      %p62 = por %p60, %p61
      %p63 = scmp.ne.s32.totalorder %s49, %s50
      %p64 = scmp.eq.s32.totalorder %s28, 7
      %p65 = por %p63, %p64
      %p67 = scmp.ne.s32.totalorder %s50, %s66
      %p68 = scmp.eq.s32.totalorder %s28, 0
      %p69 = por %p67, %p68
      %s70 = ssub.s32 %s29, %s41
      %p71 = scmp.eq.s32.totalorder %s70, 0
      %s73 = sadd.s32 %s72, 1
      %s74 = scalar_select %p71, %s72, %s73
      %p77 = pneg %p71
      %p78 = scmp.eq.s32.totalorder %s22, 7
      %p79 = por %p77, %p78
      %p80 = scmp.ne.s32.totalorder %s72, %s75
      %p81 = scmp.eq.s32.totalorder %s22, 0
      %p82 = por %p80, %p81
      %p83 = scmp.ne.s32.totalorder %s72, %s75
      %p84 = scmp.eq.s32.totalorder %s27, 7
      %p85 = por %p83, %p84
      %p86 = scmp.ne.s32.totalorder %s75, %s76
      %p87 = scmp.eq.s32.totalorder %s27, 0
      %p88 = por %p86, %p87
      %p89 = scmp.ne.s32.totalorder %s75, %s76
      %p90 = scmp.eq.s32.totalorder %s28, 7
      %p91 = por %p89, %p90
      %p93 = scmp.ne.s32.totalorder %s76, %s92
      %p94 = scmp.eq.s32.totalorder %s28, 0
      %p95 = por %p93, %p94
      %s96 = ssub.s32 %s29, %s41
      %p97 = scmp.eq.s32.totalorder %s96, 0
      %s99 = sadd.s32 %s98, 1
      %s100 = scalar_select %p97, %s98, %s99
      %p103 = pneg %p97
      %p104 = scmp.eq.s32.totalorder %s22, 7
      %p105 = por %p103, %p104
      %p106 = scmp.ne.s32.totalorder %s98, %s101
      %p107 = scmp.eq.s32.totalorder %s22, 0
      %p108 = por %p106, %p107
      %p109 = scmp.ne.s32.totalorder %s98, %s101
      %p110 = scmp.eq.s32.totalorder %s27, 7
      %p111 = por %p109, %p110
      %p112 = scmp.ne.s32.totalorder %s101, %s102
      %p113 = scmp.eq.s32.totalorder %s27, 0
      %p114 = por %p112, %p113
      %p115 = scmp.ne.s32.totalorder %s101, %s102
      %p116 = scmp.eq.s32.totalorder %s28, 7
      %p117 = por %p115, %p116
      %p119 = scmp.ne.s32.totalorder %s102, %s118
      %p120 = scmp.eq.s32.totalorder %s28, 0
      %p121 = por %p119, %p120
      %s123 = sadd.s32 %s122, 1
      %p126 = scmp.eq.s32.totalorder %s22, 7
      %p127 = scmp.ne.s32.totalorder %s122, %s124
      %p128 = scmp.eq.s32.totalorder %s22, 0
      %p129 = por %p127, %p128
      %p130 = scmp.ne.s32.totalorder %s122, %s124
      %p131 = scmp.eq.s32.totalorder %s27, 7
      %p132 = por %p130, %p131
      %p133 = scmp.ne.s32.totalorder %s124, %s125
      %p134 = scmp.eq.s32.totalorder %s27, 0
      %p135 = por %p133, %p134
      %p136 = scmp.ne.s32.totalorder %s124, %s125
      %p137 = scmp.eq.s32.totalorder %s28, 7
      %p138 = por %p136, %p137
      %p140 = scmp.ne.s32.totalorder %s125, %s139
      %p141 = scmp.eq.s32.totalorder %s28, 0
      %p142 = por %p140, %p141
      %s144 = sadd.s32 %s143, 1
      %p147 = scmp.eq.s32.totalorder %s22, 7
      %p148 = scmp.ne.s32.totalorder %s143, %s145
      %p149 = scmp.eq.s32.totalorder %s22, 0
      %p150 = por %p148, %p149
      %p151 = scmp.ne.s32.totalorder %s143, %s145
      %p152 = scmp.eq.s32.totalorder %s27, 7
      %p153 = por %p151, %p152
      %p154 = scmp.ne.s32.totalorder %s145, %s146
      %p155 = scmp.eq.s32.totalorder %s27, 0
      %p156 = por %p154, %p155
      %p157 = scmp.ne.s32.totalorder %s145, %s146
      %p158 = scmp.eq.s32.totalorder %s28, 7
      %p159 = por %p157, %p158
      %p161 = scmp.ne.s32.totalorder %s146, %s160
      %p162 = scmp.eq.s32.totalorder %s28, 0
      %p163 = por %p161, %p162
      %s165 = sadd.s32 %s164, 1
      %p168 = scmp.eq.s32.totalorder %s22, 7
      %p169 = scmp.ne.s32.totalorder %s164, %s166
      %p170 = scmp.eq.s32.totalorder %s22, 0
      %p171 = por %p169, %p170
      %p172 = scmp.ne.s32.totalorder %s164, %s166
      %p173 = scmp.eq.s32.totalorder %s27, 7
      %p174 = por %p172, %p173
      %p175 = scmp.ne.s32.totalorder %s166, %s167
      %p176 = scmp.eq.s32.totalorder %s27, 0
      %p177 = por %p175, %p176
      %p178 = scmp.ne.s32.totalorder %s166, %s167
      %p179 = scmp.eq.s32.totalorder %s28, 7
      %p180 = por %p178, %p179
      %p182 = scmp.ne.s32.totalorder %s167, %s181
      %p183 = scmp.eq.s32.totalorder %s28, 0
      %p184 = por %p182, %p183
      %s186 = sadd.s32 %s185, 1
      %p189 = scmp.eq.s32.totalorder %s22, 7
      %p190 = scmp.ne.s32.totalorder %s185, %s187
      %p191 = scmp.eq.s32.totalorder %s22, 0
      %p192 = por %p190, %p191
      %p193 = scmp.ne.s32.totalorder %s185, %s187
      %p194 = scmp.eq.s32.totalorder %s27, 7
      %p195 = por %p193, %p194
      %p196 = scmp.ne.s32.totalorder %s187, %s188
      %p197 = scmp.eq.s32.totalorder %s27, 0
      %p198 = por %p196, %p197
      %p199 = scmp.ne.s32.totalorder %s187, %s188
      %p200 = scmp.eq.s32.totalorder %s28, 7
      %p201 = por %p199, %p200
      %p203 = scmp.ne.s32.totalorder %s188, %s202
      %p204 = scmp.eq.s32.totalorder %s28, 0
      %p205 = por %p203, %p204
      %s207 = sadd.s32 %s206, 1
      %p210 = scmp.eq.s32.totalorder %s22, 7
      %p211 = scmp.ne.s32.totalorder %s206, %s208
      %p212 = scmp.eq.s32.totalorder %s22, 0
      %p213 = por %p211, %p212
      %p214 = scmp.ne.s32.totalorder %s206, %s208
      %p215 = scmp.eq.s32.totalorder %s27, 7
      %p216 = por %p214, %p215
      %p217 = scmp.ne.s32.totalorder %s208, %s209
      %p218 = scmp.eq.s32.totalorder %s27, 0
      %p219 = por %p217, %p218
      %p220 = scmp.ne.s32.totalorder %s208, %s209
      %p221 = scmp.eq.s32.totalorder %s28, 7
      %p222 = por %p220, %p221
      %p224 = scmp.ne.s32.totalorder %s209, %s223
      %p225 = scmp.eq.s32.totalorder %s28, 0
      %p226 = por %p224, %p225
      %s228 = sadd.s32 %s227, 1
      %p231 = scmp.eq.s32.totalorder %s22, 7
      %p232 = scmp.ne.s32.totalorder %s227, %s229
      %p233 = scmp.eq.s32.totalorder %s22, 0
      %p234 = por %p232, %p233
      %p235 = scmp.ne.s32.totalorder %s227, %s229
      %p236 = scmp.eq.s32.totalorder %s27, 7
      %p237 = por %p235, %p236
      %p238 = scmp.ne.s32.totalorder %s229, %s230
      %p239 = scmp.eq.s32.totalorder %s27, 0
      %p240 = por %p238, %p239
      %p241 = scmp.ne.s32.totalorder %s229, %s230
      %p242 = scmp.eq.s32.totalorder %s28, 7
      %p243 = por %p241, %p242
      %p245 = scmp.ne.s32.totalorder %s230, %s244
      %p246 = scmp.eq.s32.totalorder %s28, 0
      %p247 = por %p245, %p246
      %s249 = sadd.s32 %s248, 1
      %p252 = scmp.eq.s32.totalorder %s22, 7
      %p253 = scmp.ne.s32.totalorder %s248, %s250
      %p254 = scmp.eq.s32.totalorder %s22, 0
      %p255 = por %p253, %p254
      %p256 = scmp.ne.s32.totalorder %s248, %s250
      %p257 = scmp.eq.s32.totalorder %s27, 7
      %p258 = por %p256, %p257
      %p259 = scmp.ne.s32.totalorder %s250, %s251
      %p260 = scmp.eq.s32.totalorder %s27, 0
      %p261 = por %p259, %p260
      %p262 = scmp.ne.s32.totalorder %s250, %s251
      %p263 = scmp.eq.s32.totalorder %s28, 7
      %p264 = por %p262, %p263
      %p266 = scmp.ne.s32.totalorder %s251, %s265
      %p267 = scmp.eq.s32.totalorder %s28, 0
      %p268 = por %p266, %p267
      %s269 = ssub.s32 %s29, %s41
      %s270 = ssub.s32 %s30, %s37
      %s271 = sor.u32 %s269, %s270
      %p272 = scmp.eq.s32.totalorder %s271, 0
      %s274 = sadd.s32 %s273, 1
      %s275 = scalar_select %p272, %s273, %s274
      %p278 = pneg %p272
      %p279 = scmp.eq.s32.totalorder %s22, 7
      %p280 = por %p278, %p279
      %p281 = scmp.ne.s32.totalorder %s273, %s276
      %p282 = scmp.eq.s32.totalorder %s22, 0
      %p283 = por %p281, %p282
      %p284 = scmp.ne.s32.totalorder %s273, %s276
      %p285 = scmp.eq.s32.totalorder %s27, 7
      %p286 = por %p284, %p285
      %p287 = scmp.ne.s32.totalorder %s276, %s277
      %p288 = scmp.eq.s32.totalorder %s27, 0
      %p289 = por %p287, %p288
      %p290 = scmp.ne.s32.totalorder %s276, %s277
      %p291 = scmp.eq.s32.totalorder %s28, 7
      %p292 = por %p290, %p291
      %p294 = scmp.ne.s32.totalorder %s277, %s293
      %p295 = scmp.eq.s32.totalorder %s28, 0
      %p296 = por %p294, %p295
      %p297 = scmp.le.s32.totalorder 1, %s22
      %p298 = scmp.lt.s32.totalorder %s22, 9
      %p299 = pnand %p297, %p298
      %p300 = pneg %p299
      // Predicated region
      $region9: #{resblock_forward.1} parent=5 // pred_check
        _
      $region10: #{resblock_forward.1} parent=5 // pred_check_branch
        %302 = sbr.rel (%p299) target = $region12
      $region11: #{resblock_forward.1} parent=5 // pred_region
        %s303 = ssub.s32 %s22, 1
        // Predicated region
        $region13: #{resblock_forward.1} parent=11 // pred_check
          %p304 = pneg %p135
        $region14: #{resblock_forward.1} parent=11 // pred_check_branch
          %306 = sbr.rel (%p304) target = $region16
        $region15: #{resblock_forward.1} parent=11 // pred_region
          _
        $region16: #{resblock_forward.1} parent=11 // pred_fallthru
          _
        // Predicated region
        $region17: #{resblock_forward.1} parent=11 // pred_check
          %p307 = pneg %p156
        $region18: #{resblock_forward.1} parent=11 // pred_check_branch
          %309 = sbr.rel (%p307) target = $region20
        $region19: #{resblock_forward.1} parent=11 // pred_region
          _
        $region20: #{resblock_forward.1} parent=11 // pred_fallthru
          _
        // Predicated region
        $region21: #{resblock_forward.1} parent=11 // pred_check
          %p310 = pneg %p177
        $region22: #{resblock_forward.1} parent=11 // pred_check_branch
          %312 = sbr.rel (%p310) target = $region24
        $region23: #{resblock_forward.1} parent=11 // pred_region
          _
        $region24: #{resblock_forward.1} parent=11 // pred_fallthru
          _
        // Predicated region
        $region25: #{resblock_forward.1} parent=11 // pred_check
          %p313 = pneg %p198
        $region26: #{resblock_forward.1} parent=11 // pred_check_branch
          %315 = sbr.rel (%p313) target = $region28
        $region27: #{resblock_forward.1} parent=11 // pred_region
          _
        $region28: #{resblock_forward.1} parent=11 // pred_fallthru
          _
        // Predicated region
        $region29: #{resblock_forward.1} parent=11 // pred_check
          %p316 = pneg %p219
        $region30: #{resblock_forward.1} parent=11 // pred_check_branch
          %318 = sbr.rel (%p316) target = $region32
        $region31: #{resblock_forward.1} parent=11 // pred_region
          _
        $region32: #{resblock_forward.1} parent=11 // pred_fallthru
          _
        // Predicated region
        $region33: #{resblock_forward.1} parent=11 // pred_check
          %p319 = pneg %p240
        $region34: #{resblock_forward.1} parent=11 // pred_check_branch
          %321 = sbr.rel (%p319) target = $region36
        $region35: #{resblock_forward.1} parent=11 // pred_region
          _
        $region36: #{resblock_forward.1} parent=11 // pred_fallthru
          _
        // Predicated region
        $region37: #{resblock_forward.1} parent=11 // pred_check
          %p322 = pneg %p261
        $region38: #{resblock_forward.1} parent=11 // pred_check_branch
          %324 = sbr.rel (%p322) target = $region40
        $region39: #{resblock_forward.1} parent=11 // pred_region
          _
        $region40: #{resblock_forward.1} parent=11 // pred_fallthru
          _
      $region12: #{resblock_forward.1} parent=5 // pred_fallthru
        _
      %p325 = scmp.lt.s32.totalorder %s22, 8
      // Predicated region
      $region41: #{resblock_forward.1} parent=5 // pred_check
        %p326 = pneg %p325
      $region42: #{resblock_forward.1} parent=5 // pred_check_branch
        %328 = sbr.rel (%p326) target = $region44
      $region43: #{resblock_forward.1} parent=5 // pred_region
        // Predicated region
        $region45: #{resblock_forward.1} parent=43 // pred_check
          %p329 = pneg %p56
        $region46: #{resblock_forward.1} parent=43 // pred_check_branch
          %331 = sbr.rel (%p329) target = $region48
        $region47: #{resblock_forward.1} parent=43 // pred_region
          %s332 = sand.u32 %s46, 1
          %s333 = scalar_lea.sflag [#allocation3], %s332
          %s334 = sand.u32 %s46, 1
          %s335 = smul.addr %s334, 128
          %s336 = scalar_lea.vmem [#allocation2], %s335
          %s337 = smul.u32 16, %s30
          %s339 = ssub.s32 2048, 2048
          %340 = vsyncadd %s333, %s339
          %s341 = smul.addr %s29, 64
          %s342 = sadd.s32 %s337, %s341
          %s343 = smul.addr %s342, 128
          %s344 = scalar_lea.hbm %s0, %s343
          %s345 = sshll.u32 %s336, 4
          %s346 = int_to_ptr.vmem [resolvable:$true] %s345
          %351 = dma.hbm_to_vmem [thread:$0]  %s344, 2048, %s346, %s333, 128, 128, 8
        $region48: #{resblock_forward.1} parent=43 // pred_fallthru
          _
        // Predicated region
        $region49: #{resblock_forward.1} parent=43 // pred_check
          %p352 = pneg %p82
        $region50: #{resblock_forward.1} parent=43 // pred_check_branch
          %354 = sbr.rel (%p352) target = $region52
        $region51: #{resblock_forward.1} parent=43 // pred_region
          %p355 = scmp.lt.s32.totalorder %s29, 1
          %s356 = scalar_select %p355, %s29, 1
          %s357 = scalar_lea.vmem %s1, %s356
        $region52: #{resblock_forward.1} parent=43 // pred_fallthru
          _
        // Predicated region
        $region53: #{resblock_forward.1} parent=43 // pred_check
          %p358 = pneg %p108
        $region54: #{resblock_forward.1} parent=43 // pred_check_branch
          %360 = sbr.rel (%p358) target = $region56
        $region55: #{resblock_forward.1} parent=43 // pred_region
          %p361 = scmp.lt.s32.totalorder %s29, 1
          %s362 = scalar_select %p361, %s29, 1
          %s363 = scalar_lea.vmem %s2, %s362
        $region56: #{resblock_forward.1} parent=43 // pred_fallthru
          _
      $region44: #{resblock_forward.1} parent=5 // pred_fallthru
        _
      %p364 = scmp.le.s32.totalorder 1, %s22
      %p365 = scmp.lt.s32.totalorder %s22, 9
      %p366 = pnand %p364, %p365
      %p367 = pneg %p366
      // Predicated region
      $region57: #{resblock_forward.1} parent=5 // pred_check
        _
      $region58: #{resblock_forward.1} parent=5 // pred_check_branch
        %369 = sbr.rel (%p366) target = $region60
      $region59: #{resblock_forward.1} parent=5 // pred_region
        %s370 = ssub.s32 %s22, 1
        %s371 = sand.u32 %s49, 1
        %s372 = scalar_lea.sflag [#allocation3], %s371
        %s373 = sand.u32 %s49, 1
        %s374 = smul.addr %s373, 128
        %s375 = scalar_lea.vmem [#allocation2], %s374
        // Predicated region
        $region61: #{resblock_forward.1} parent=59 // pred_check
          %p376 = pneg %p62
        $region62: #{resblock_forward.1} parent=59 // pred_check_branch
          %378 = sbr.rel (%p376) target = $region64
        $region63: #{resblock_forward.1} parent=59 // pred_region
          %379 = dma.done %s372, 2048
        $region64: #{resblock_forward.1} parent=59 // pred_fallthru
          _
        %s380 = sand.u32 %s49, 1
        %s381 = scalar_lea.sflag [#allocation3], %s380
        %s382 = sand.u32 %s49, 1
        %s383 = smul.addr %s382, 128
        %s384 = scalar_lea.vmem [#allocation2], %s383
        %p385 = pneg %p62
        %p386 = pneg %p59
        %p387 = scmp.lt.s32.totalorder %s31, 1
        %s388 = scalar_select %p387, %s31, 1
        %s389 = scalar_lea.vmem %s1, %s388
        %p390 = pneg %p88
        %p391 = pneg %p85
        %p392 = scmp.lt.s32.totalorder %s31, 1
        %s393 = scalar_select %p392, %s31, 1
        %s394 = scalar_lea.vmem %s2, %s393
        %p395 = pneg %p114
        %p396 = pneg %p111
        %p397 = pneg %p135
        %p398 = pneg %p132
        %p399 = pneg %p156
        %p400 = pneg %p153
        %p401 = pneg %p177
        %p402 = pneg %p174
        %p403 = pneg %p198
        %p404 = pneg %p195
        %p405 = pneg %p219
        %p406 = pneg %p216
        %p407 = pneg %p240
        %p408 = pneg %p237
        %p409 = pneg %p261
        %p410 = pneg %p258
        %p411 = pneg %p289
        %p412 = pneg %p286
        %s413 = sand.u32 %s276, 1
        %s414 = scalar_lea.sflag [#allocation4], %s413
        %s415 = sand.u32 %s276, 1
        %s416 = smul.addr %s415, 128
        %s417 = scalar_lea.vmem [#allocation5], %s416
        %s418 = smul.u32 16, %s32
        %p419 = scmp.lt.s32.totalorder %s31, 1
        %s420 = scalar_select %p419, %s31, 1
        %s421 = scalar_lea.vmem %s1, %s420
        %p422 = scmp.lt.s32.totalorder %s31, 1
        %s423 = scalar_select %p422, %s31, 1
        %s424 = scalar_lea.vmem %s2, %s423
        %s425 = smul.u32 16, %s32
        %v427 = vld [vmem:[%s375] sm:$0xff]
        %v428 = vld [vmem:[%s375 + $0x8] sm:$0xff]
        %v429 = vld [vmem:[%s375 + $0x10] sm:$0xff]
        %v430 = vld [vmem:[%s375 + $0x18] sm:$0xff]
        %v431 = vld [vmem:[%s375 + $0x20] sm:$0xff]
        %v432 = vld [vmem:[%s375 + $0x28] sm:$0xff]
        %v433 = vld [vmem:[%s375 + $0x30] sm:$0xff]
        %v434 = vld [vmem:[%s375 + $0x38] sm:$0xff]
        %v435 = vld [vmem:[%s375 + $0x40] sm:$0xff]
        %v436 = vld [vmem:[%s375 + $0x48] sm:$0xff]
        %v437 = vld [vmem:[%s375 + $0x50] sm:$0xff]
        %v438 = vld [vmem:[%s375 + $0x58] sm:$0xff]
        %v439 = vld [vmem:[%s375 + $0x60] sm:$0xff]
        %v440 = vld [vmem:[%s375 + $0x68] sm:$0xff]
        %v441 = vld [vmem:[%s375 + $0x70] sm:$0xff]
        %v442 = vld [vmem:[%s375 + $0x78] sm:$0xff]
        %v443 = vld [vmem:[%s3] sm:$0x1]
        %v444 = vld [vmem:[%s4] sm:$0x1]
        %445 = vadd.xlane.f32.xlu0 %v427
        %v446 = vpop.xlane.xlu0 %445
        %447 = vadd.xlane.f32.xlu0 %v428
        %v448 = vpop.xlane.xlu0 %447
        %449 = vadd.xlane.f32.xlu0 %v429
        %v450 = vpop.xlane.xlu0 %449
        %451 = vadd.xlane.f32.xlu0 %v430
        %v452 = vpop.xlane.xlu0 %451
        %453 = vadd.xlane.f32.xlu0 %v431
        %v454 = vpop.xlane.xlu0 %453
        %455 = vadd.xlane.f32.xlu0 %v432
        %v456 = vpop.xlane.xlu0 %455
        %457 = vadd.xlane.f32.xlu0 %v433
        %v458 = vpop.xlane.xlu0 %457
        %459 = vadd.xlane.f32.xlu0 %v434
        %v460 = vpop.xlane.xlu0 %459
        %461 = vadd.xlane.f32.xlu0 %v435
        %v462 = vpop.xlane.xlu0 %461
        %463 = vadd.xlane.f32.xlu0 %v436
        %v464 = vpop.xlane.xlu0 %463
        %465 = vadd.xlane.f32.xlu0 %v437
        %v466 = vpop.xlane.xlu0 %465
        %467 = vadd.xlane.f32.xlu0 %v438
        %v468 = vpop.xlane.xlu0 %467
        %469 = vadd.xlane.f32.xlu0 %v439
        %v470 = vpop.xlane.xlu0 %469
        %471 = vadd.xlane.f32.xlu0 %v440
        %v472 = vpop.xlane.xlu0 %471
        %473 = vadd.xlane.f32.xlu0 %v441
        %v474 = vpop.xlane.xlu0 %473
        %475 = vadd.xlane.f32.xlu0 %v442
        %v476 = vpop.xlane.xlu0 %475
        %v477 = vmul.f32 %v427, %v427
        %v478 = vmul.f32 %v428, %v428
        %v479 = vmul.f32 %v429, %v429
        %v480 = vmul.f32 %v430, %v430
        %v481 = vmul.f32 %v431, %v431
        %v482 = vmul.f32 %v432, %v432
        %v483 = vmul.f32 %v433, %v433
        %v484 = vmul.f32 %v434, %v434
        %v485 = vmul.f32 %v435, %v435
        %v486 = vmul.f32 %v436, %v436
        %v487 = vmul.f32 %v437, %v437
        %v488 = vmul.f32 %v438, %v438
        %v489 = vmul.f32 %v439, %v439
        %v490 = vmul.f32 %v440, %v440
        %v491 = vmul.f32 %v441, %v441
        %v492 = vmul.f32 %v442, %v442
        %493 = vadd.xlane.f32.xlu0 %v477
        %v494 = vpop.xlane.xlu0 %493
        %495 = vadd.xlane.f32.xlu0 %v478
        %v496 = vpop.xlane.xlu0 %495
        %497 = vadd.xlane.f32.xlu0 %v479
        %v498 = vpop.xlane.xlu0 %497
        %499 = vadd.xlane.f32.xlu0 %v480
        %v500 = vpop.xlane.xlu0 %499
        %501 = vadd.xlane.f32.xlu0 %v481
        %v502 = vpop.xlane.xlu0 %501
        %503 = vadd.xlane.f32.xlu0 %v482
        %v504 = vpop.xlane.xlu0 %503
        %505 = vadd.xlane.f32.xlu0 %v483
        %v506 = vpop.xlane.xlu0 %505
        %507 = vadd.xlane.f32.xlu0 %v484
        %v508 = vpop.xlane.xlu0 %507
        %509 = vadd.xlane.f32.xlu0 %v485
        %v510 = vpop.xlane.xlu0 %509
        %511 = vadd.xlane.f32.xlu0 %v486
        %v512 = vpop.xlane.xlu0 %511
        %513 = vadd.xlane.f32.xlu0 %v487
        %v514 = vpop.xlane.xlu0 %513
        %515 = vadd.xlane.f32.xlu0 %v488
        %v516 = vpop.xlane.xlu0 %515
        %517 = vadd.xlane.f32.xlu0 %v489
        %v518 = vpop.xlane.xlu0 %517
        %519 = vadd.xlane.f32.xlu0 %v490
        %v520 = vpop.xlane.xlu0 %519
        %521 = vadd.xlane.f32.xlu0 %v491
        %v522 = vpop.xlane.xlu0 %521
        %523 = vadd.xlane.f32.xlu0 %v492
        %v524 = vpop.xlane.xlu0 %523
        %v525 = vmul.f32 %v446, 0.0078125
        %v526 = vmul.f32 %v448, 0.0078125
        %v527 = vmul.f32 %v450, 0.0078125
        %v528 = vmul.f32 %v452, 0.0078125
        %v529 = vmul.f32 %v454, 0.0078125
        %v530 = vmul.f32 %v456, 0.0078125
        %v531 = vmul.f32 %v458, 0.0078125
        %v532 = vmul.f32 %v460, 0.0078125
        %v533 = vmul.f32 %v462, 0.0078125
        %v534 = vmul.f32 %v464, 0.0078125
        %v535 = vmul.f32 %v466, 0.0078125
        %v536 = vmul.f32 %v468, 0.0078125
        %v537 = vmul.f32 %v470, 0.0078125
        %v538 = vmul.f32 %v472, 0.0078125
        %v539 = vmul.f32 %v474, 0.0078125
        %v540 = vmul.f32 %v476, 0.0078125
        %v541 = vmul.f32 %v494, 0.0078125
        %v542 = vmul.f32 %v496, 0.0078125
        %v543 = vmul.f32 %v498, 0.0078125
        %v544 = vmul.f32 %v500, 0.0078125
        %v545 = vmul.f32 %v502, 0.0078125
        %v546 = vmul.f32 %v504, 0.0078125
        %v547 = vmul.f32 %v506, 0.0078125
        %v548 = vmul.f32 %v508, 0.0078125
        %v549 = vmul.f32 %v510, 0.0078125
        %v550 = vmul.f32 %v512, 0.0078125
        %v551 = vmul.f32 %v514, 0.0078125
        %v552 = vmul.f32 %v516, 0.0078125
        %v553 = vmul.f32 %v518, 0.0078125
        %v554 = vmul.f32 %v520, 0.0078125
        %v555 = vmul.f32 %v522, 0.0078125
        %v556 = vmul.f32 %v524, 0.0078125
        %v557 = vmul.f32 %v525, %v525
        %v558 = vmul.f32 %v526, %v526
        %v559 = vmul.f32 %v527, %v527
        %v560 = vmul.f32 %v528, %v528
        %v561 = vmul.f32 %v529, %v529
        %v562 = vmul.f32 %v530, %v530
        %v563 = vmul.f32 %v531, %v531
        %v564 = vmul.f32 %v532, %v532
        %v565 = vmul.f32 %v533, %v533
        %v566 = vmul.f32 %v534, %v534
        %v567 = vmul.f32 %v535, %v535
        %v568 = vmul.f32 %v536, %v536
        %v569 = vmul.f32 %v537, %v537
        %v570 = vmul.f32 %v538, %v538
        %v571 = vmul.f32 %v539, %v539
        %v572 = vmul.f32 %v540, %v540
        %v573 = vsub.f32 %v541, %v557
        %v574 = vsub.f32 %v542, %v558
        %v575 = vsub.f32 %v543, %v559
        %v576 = vsub.f32 %v544, %v560
        %v577 = vsub.f32 %v545, %v561
        %v578 = vsub.f32 %v546, %v562
        %v579 = vsub.f32 %v547, %v563
        %v580 = vsub.f32 %v548, %v564
        %v581 = vsub.f32 %v549, %v565
        %v582 = vsub.f32 %v550, %v566
        %v583 = vsub.f32 %v551, %v567
        %v584 = vsub.f32 %v552, %v568
        %v585 = vsub.f32 %v553, %v569
        %v586 = vsub.f32 %v554, %v570
        %v587 = vsub.f32 %v555, %v571
        %v588 = vsub.f32 %v556, %v572
        %v589 = vmax.f32 %v573, 0.0
        %v590 = vmax.f32 %v574, 0.0
        %v591 = vmax.f32 %v575, 0.0
        %v592 = vmax.f32 %v576, 0.0
        %v593 = vmax.f32 %v577, 0.0
        %v594 = vmax.f32 %v578, 0.0
        %v595 = vmax.f32 %v579, 0.0
        %v596 = vmax.f32 %v580, 0.0
        %v597 = vmax.f32 %v581, 0.0
        %v598 = vmax.f32 %v582, 0.0
        %v599 = vmax.f32 %v583, 0.0
        %v600 = vmax.f32 %v584, 0.0
        %v601 = vmax.f32 %v585, 0.0
        %v602 = vmax.f32 %v586, 0.0
        %v603 = vmax.f32 %v587, 0.0
        %v604 = vmax.f32 %v588, 0.0
        %v605 = vsub.f32 %v427, %v525
        %v606 = vsub.f32 %v428, %v526
        %v607 = vsub.f32 %v429, %v527
        %v608 = vsub.f32 %v430, %v528
        %v609 = vsub.f32 %v431, %v529
        %v610 = vsub.f32 %v432, %v530
        %v611 = vsub.f32 %v433, %v531
        %v612 = vsub.f32 %v434, %v532
        %v613 = vsub.f32 %v435, %v533
        %v614 = vsub.f32 %v436, %v534
        %v615 = vsub.f32 %v437, %v535
        %v616 = vsub.f32 %v438, %v536
        %v617 = vsub.f32 %v439, %v537
        %v618 = vsub.f32 %v440, %v538
        %v619 = vsub.f32 %v441, %v539
        %v620 = vsub.f32 %v442, %v540
        %v621 = vadd.f32 %v589, 1e-05
        %v622 = vadd.f32 %v590, 1e-05
        %v623 = vadd.f32 %v591, 1e-05
        %v624 = vadd.f32 %v592, 1e-05
        %v625 = vadd.f32 %v593, 1e-05
        %v626 = vadd.f32 %v594, 1e-05
        %v627 = vadd.f32 %v595, 1e-05
        %v628 = vadd.f32 %v596, 1e-05
        %v629 = vadd.f32 %v597, 1e-05
        %v630 = vadd.f32 %v598, 1e-05
        %v631 = vadd.f32 %v599, 1e-05
        %v632 = vadd.f32 %v600, 1e-05
        %v633 = vadd.f32 %v601, 1e-05
        %v634 = vadd.f32 %v602, 1e-05
        %v635 = vadd.f32 %v603, 1e-05
        %v636 = vadd.f32 %v604, 1e-05
        %v637 = vrsqrt.pop %v621
        %v638 = vrsqrt.pop %v622
        %v639 = vrsqrt.pop %v623
        %v640 = vrsqrt.pop %v624
        %v641 = vrsqrt.pop %v625
        %v642 = vrsqrt.pop %v626
        %v643 = vrsqrt.pop %v627
        %v644 = vrsqrt.pop %v628
        %v645 = vrsqrt.pop %v629
        %v646 = vrsqrt.pop %v630
        %v647 = vrsqrt.pop %v631
        %v648 = vrsqrt.pop %v632
        %v649 = vrsqrt.pop %v633
        %v650 = vrsqrt.pop %v634
        %v651 = vrsqrt.pop %v635
        %v652 = vrsqrt.pop %v636
        %v653 = vmul.f32 %v605, %v637
        %v654 = vmul.f32 %v606, %v638
        %v655 = vmul.f32 %v607, %v639
        %v656 = vmul.f32 %v608, %v640
        %v657 = vmul.f32 %v609, %v641
        %v658 = vmul.f32 %v610, %v642
        %v659 = vmul.f32 %v611, %v643
        %v660 = vmul.f32 %v612, %v644
        %v661 = vmul.f32 %v613, %v645
        %v662 = vmul.f32 %v614, %v646
        %v663 = vmul.f32 %v615, %v647
        %v664 = vmul.f32 %v616, %v648
        %v665 = vmul.f32 %v617, %v649
        %v666 = vmul.f32 %v618, %v650
        %v667 = vmul.f32 %v619, %v651
        %v668 = vmul.f32 %v620, %v652
        %v670 = vlaneseq
        %v671 = vshrl.u32 %v670, 7
        %v672 = vsub.s32 0, %v671
        %v673 = vrot.slane %v443, %v672
        %v675 = vmul.f32 %v653, %v673
        %v676 = vmul.f32 %v654, %v673
        %v677 = vmul.f32 %v655, %v673
        %v678 = vmul.f32 %v656, %v673
        %v679 = vmul.f32 %v657, %v673
        %v680 = vmul.f32 %v658, %v673
        %v681 = vmul.f32 %v659, %v673
        %v682 = vmul.f32 %v660, %v673
        %v683 = vmul.f32 %v661, %v673
        %v684 = vmul.f32 %v662, %v673
        %v685 = vmul.f32 %v663, %v673
        %v686 = vmul.f32 %v664, %v673
        %v687 = vmul.f32 %v665, %v673
        %v688 = vmul.f32 %v666, %v673
        %v689 = vmul.f32 %v667, %v673
        %v690 = vmul.f32 %v668, %v673
        %v692 = vlaneseq
        %v693 = vshrl.u32 %v692, 7
        %v694 = vsub.s32 0, %v693
        %v695 = vrot.slane %v444, %v694
        %v697 = vadd.f32 %v675, %v695
        %v698 = vadd.f32 %v676, %v695
        %v699 = vadd.f32 %v677, %v695
        %v700 = vadd.f32 %v678, %v695
        %v701 = vadd.f32 %v679, %v695
        %v702 = vadd.f32 %v680, %v695
        %v703 = vadd.f32 %v681, %v695
        %v704 = vadd.f32 %v682, %v695
        %v705 = vadd.f32 %v683, %v695
        %v706 = vadd.f32 %v684, %v695
        %v707 = vadd.f32 %v685, %v695
        %v708 = vadd.f32 %v686, %v695
        %v709 = vadd.f32 %v687, %v695
        %v710 = vadd.f32 %v688, %v695
        %v711 = vadd.f32 %v689, %v695
        %v712 = vadd.f32 %v690, %v695
        %v713 = vxor.u32 %v697, 2147483648
        %v714 = vxor.u32 %v698, 2147483648
        %v715 = vxor.u32 %v699, 2147483648
        %v716 = vxor.u32 %v700, 2147483648
        %v717 = vxor.u32 %v701, 2147483648
        %v718 = vxor.u32 %v702, 2147483648
        %v719 = vxor.u32 %v703, 2147483648
        %v720 = vxor.u32 %v704, 2147483648
        %v721 = vxor.u32 %v705, 2147483648
        %v722 = vxor.u32 %v706, 2147483648
        %v723 = vxor.u32 %v707, 2147483648
        %v724 = vxor.u32 %v708, 2147483648
        %v725 = vxor.u32 %v709, 2147483648
        %v726 = vxor.u32 %v710, 2147483648
        %v727 = vxor.u32 %v711, 2147483648
        %v728 = vxor.u32 %v712, 2147483648
        %v729 = vmul.f32 %v713, 1.442695
        %v730 = vpow.pop %v729
        %v731 = vmul.f32 %v714, 1.442695
        %v732 = vpow.pop %v731
        %v733 = vmul.f32 %v715, 1.442695
        %v734 = vpow.pop %v733
        %v735 = vmul.f32 %v716, 1.442695
        %v736 = vpow.pop %v735
        %v737 = vmul.f32 %v717, 1.442695
        %v738 = vpow.pop %v737
        %v739 = vmul.f32 %v718, 1.442695
        %v740 = vpow.pop %v739
        %v741 = vmul.f32 %v719, 1.442695
        %v742 = vpow.pop %v741
        %v743 = vmul.f32 %v720, 1.442695
        %v744 = vpow.pop %v743
        %v745 = vmul.f32 %v721, 1.442695
        %v746 = vpow.pop %v745
        %v747 = vmul.f32 %v722, 1.442695
        %v748 = vpow.pop %v747
        %v749 = vmul.f32 %v723, 1.442695
        %v750 = vpow.pop %v749
        %v751 = vmul.f32 %v724, 1.442695
        %v752 = vpow.pop %v751
        %v753 = vmul.f32 %v725, 1.442695
        %v754 = vpow.pop %v753
        %v755 = vmul.f32 %v726, 1.442695
        %v756 = vpow.pop %v755
        %v757 = vmul.f32 %v727, 1.442695
        %v758 = vpow.pop %v757
        %v759 = vmul.f32 %v728, 1.442695
        %v760 = vpow.pop %v759
        %v761 = vadd.f32 %v730, 1.0
        %v762 = vadd.f32 %v732, 1.0
        %v763 = vadd.f32 %v734, 1.0
        %v764 = vadd.f32 %v736, 1.0
        %v765 = vadd.f32 %v738, 1.0
        %v766 = vadd.f32 %v740, 1.0
        %v767 = vadd.f32 %v742, 1.0
        %v768 = vadd.f32 %v744, 1.0
        %v769 = vadd.f32 %v746, 1.0
        %v770 = vadd.f32 %v748, 1.0
        %v771 = vadd.f32 %v750, 1.0
        %v772 = vadd.f32 %v752, 1.0
        %v773 = vadd.f32 %v754, 1.0
        %v774 = vadd.f32 %v756, 1.0
        %v775 = vadd.f32 %v758, 1.0
        %v776 = vadd.f32 %v760, 1.0
        %v777 = vrcp.pop %v761
        %v778 = vmul.f32 1.0, %v777
        %v779 = vrcp.pop %v762
        %v780 = vmul.f32 1.0, %v779
        %v781 = vrcp.pop %v763
        %v782 = vmul.f32 1.0, %v781
        %v783 = vrcp.pop %v764
        %v784 = vmul.f32 1.0, %v783
        %v785 = vrcp.pop %v765
        %v786 = vmul.f32 1.0, %v785
        %v787 = vrcp.pop %v766
        %v788 = vmul.f32 1.0, %v787
        %v789 = vrcp.pop %v767
        %v790 = vmul.f32 1.0, %v789
        %v791 = vrcp.pop %v768
        %v792 = vmul.f32 1.0, %v791
        %v793 = vrcp.pop %v769
        %v794 = vmul.f32 1.0, %v793
        %v795 = vrcp.pop %v770
        %v796 = vmul.f32 1.0, %v795
        %v797 = vrcp.pop %v771
        %v798 = vmul.f32 1.0, %v797
        %v799 = vrcp.pop %v772
        %v800 = vmul.f32 1.0, %v799
        %v801 = vrcp.pop %v773
        %v802 = vmul.f32 1.0, %v801
        %v803 = vrcp.pop %v774
        %v804 = vmul.f32 1.0, %v803
        %v805 = vrcp.pop %v775
        %v806 = vmul.f32 1.0, %v805
        %v807 = vrcp.pop %v776
        %v808 = vmul.f32 1.0, %v807
        %v809 = vmul.f32 %v697, %v778
        %v810 = vmul.f32 %v698, %v780
        %v811 = vmul.f32 %v699, %v782
        %v812 = vmul.f32 %v700, %v784
        %v813 = vmul.f32 %v701, %v786
        %v814 = vmul.f32 %v702, %v788
        %v815 = vmul.f32 %v703, %v790
        %v816 = vmul.f32 %v704, %v792
        %v817 = vmul.f32 %v705, %v794
        %v818 = vmul.f32 %v706, %v796
        %v819 = vmul.f32 %v707, %v798
        %v820 = vmul.f32 %v708, %v800
        %v821 = vmul.f32 %v709, %v802
        %v822 = vmul.f32 %v710, %v804
        %v823 = vmul.f32 %v711, %v806
        %v824 = vmul.f32 %v712, %v808
        %v825 = vpack.c.bf16 %v810, %v809
        %v826 = vpack.c.bf16 %v812, %v811
        %v827 = vpack.c.bf16 %v814, %v813
        %v828 = vpack.c.bf16 %v816, %v815
        %v829 = vpack.c.bf16 %v818, %v817
        %v830 = vpack.c.bf16 %v820, %v819
        %v831 = vpack.c.bf16 %v822, %v821
        %v832 = vpack.c.bf16 %v824, %v823
        %v833 = vld [vmem:[%s5] sm:$0xf]
        %v834 = vld [vmem:[%s5 + $0x4] sm:$0xf]
        %v835 = vld [vmem:[%s5 + $0x8] sm:$0xf]
        %v836 = vld [vmem:[%s5 + $0xc] sm:$0xf]
        %v837 = vld [vmem:[%s5 + $0x10] sm:$0xf]
        %v838 = vld [vmem:[%s5 + $0x14] sm:$0xf]
        %v839 = vld [vmem:[%s5 + $0x18] sm:$0xf]
        %v840 = vld [vmem:[%s5 + $0x1c] sm:$0xf]
        %v841 = vld [vmem:[%s5 + $0x20] sm:$0xf]
        %v842 = vld [vmem:[%s5 + $0x24] sm:$0xf]
        %v843 = vld [vmem:[%s5 + $0x28] sm:$0xf]
        %v844 = vld [vmem:[%s5 + $0x2c] sm:$0xf]
        %v845 = vld [vmem:[%s5 + $0x30] sm:$0xf]
        %v846 = vld [vmem:[%s5 + $0x34] sm:$0xf]
        %v847 = vld [vmem:[%s5 + $0x38] sm:$0xf]
        %v848 = vld [vmem:[%s5 + $0x3c] sm:$0xf]
        %v865 = vunpack.c.l.b16 %v833
        %v866 = vunpack.c.l.b16 %v834
        %v867 = vunpack.c.l.b16 %v835
        %v868 = vunpack.c.l.b16 %v836
        %v869 = vunpack.c.l.b16 %v837
        %v870 = vunpack.c.l.b16 %v838
        %v871 = vunpack.c.l.b16 %v839
        %v872 = vunpack.c.l.b16 %v840
        %v873 = vunpack.c.l.b16 %v841
        %v874 = vunpack.c.l.b16 %v842
        %v875 = vunpack.c.l.b16 %v843
        %v876 = vunpack.c.l.b16 %v844
        %v877 = vunpack.c.l.b16 %v845
        %v878 = vunpack.c.l.b16 %v846
        %v879 = vunpack.c.l.b16 %v847
        %v880 = vunpack.c.l.b16 %v848
        %v881 = vpack.c.b16 %v866, %v865
        %v882 = vpack.c.b16 %v868, %v867
        %v883 = vpack.c.b16 %v870, %v869
        %v884 = vpack.c.b16 %v872, %v871
        %v885 = vpack.c.b16 %v874, %v873
        %v886 = vpack.c.b16 %v876, %v875
        %v887 = vpack.c.b16 %v878, %v877
        %v888 = vpack.c.b16 %v880, %v879
        %897 = vmatprep.subr.bf16.mxu0 0
        %898 = vmatpush1.bf16.msra.mxu0 %v888
        %899 = vmatprep.subr.bf16.mxu0 0
        %900 = vmatpush1.bf16.msra.mxu0 %v887
        %901 = vmatprep.subr.bf16.mxu0 0
        %902 = vmatpush1.bf16.msra.mxu0 %v886
        %903 = vmatprep.subr.bf16.mxu0 0
        %904 = vmatpush1.bf16.msra.mxu0 %v885
        %905 = vmatprep.subr.bf16.mxu0 0
        %906 = vmatpush1.bf16.msra.mxu0 %v884
        %907 = vmatprep.subr.bf16.mxu0 0
        %908 = vmatpush1.bf16.msra.mxu0 %v883
        %909 = vmatprep.subr.bf16.mxu0 0
        %910 = vmatpush1.bf16.msra.mxu0 %v882
        %911 = vmatprep.subr.bf16.mxu0 0
        %912 = vmatpush1.bf16.msra.mxu0 %v881
        %913 = vmatprep.subr.bf16.mxu0 0
        %914 = vmatpush2.bf16.msra.mxu0 0
        %915 = vmatprep.subr.bf16.mxu0 0
        %916 = vmatpush2.bf16.msra.mxu0 0
        %917 = vmatprep.subr.bf16.mxu0 0
        %918 = vmatpush2.bf16.msra.mxu0 0
        %919 = vmatprep.subr.bf16.mxu0 0
        %920 = vmatpush2.bf16.msra.mxu0 0
        %921 = vmatprep.subr.bf16.mxu0 0
        %922 = vmatpush2.bf16.msra.mxu0 0
        %923 = vmatprep.subr.bf16.mxu0 0
        %924 = vmatpush2.bf16.msra.mxu0 0
        %925 = vmatprep.subr.bf16.mxu0 0
        %926 = vmatpush2.bf16.msra.mxu0 0
        %927 = vmatprep.subr.bf16.mxu0 0
        %928 = vmatpush2.bf16.msra.mxu0 0
        %929 = vmatprep.mubr.bf16.mxu0 0
        %930 = vmatmul.mubr.bf16.gmra.mxu0 %v825
        %v931 = vpop.f32.mrf.mxu0
        %v932 = vadd.f32 0.0, %v931
        %v933 = vpop.f32.mrf.mxu0
        %v934 = vpop.f32.mrf.mxu0
        %v935 = vadd.f32 0.0, %v934
        %v936 = vpop.f32.mrf.mxu0
        %937 = vmatprep.mubr.bf16.mxu0 0
        %938 = vmatmul.mubr.bf16.gmra.mxu0 %v826
        %v939 = vpop.f32.mrf.mxu0
        %v940 = vadd.f32 0.0, %v939
        %v941 = vpop.f32.mrf.mxu0
        %v942 = vpop.f32.mrf.mxu0
        %v943 = vadd.f32 0.0, %v942
        %v944 = vpop.f32.mrf.mxu0
        %945 = vmatprep.mubr.bf16.mxu0 0
        %946 = vmatmul.mubr.bf16.gmra.mxu0 %v827
        %v947 = vpop.f32.mrf.mxu0
        %v948 = vadd.f32 0.0, %v947
        %v949 = vpop.f32.mrf.mxu0
        %v950 = vpop.f32.mrf.mxu0
        %v951 = vadd.f32 0.0, %v950
        %v952 = vpop.f32.mrf.mxu0
        %953 = vmatprep.mubr.bf16.mxu0 0
        %954 = vmatmul.mubr.bf16.gmra.mxu0 %v828
        %v955 = vpop.f32.mrf.mxu0
        %v956 = vadd.f32 0.0, %v955
        %v957 = vpop.f32.mrf.mxu0
        %v958 = vpop.f32.mrf.mxu0
        %v959 = vadd.f32 0.0, %v958
        %v960 = vpop.f32.mrf.mxu0
        %961 = vmatprep.mubr.bf16.mxu0 0
        %962 = vmatmul.mubr.bf16.gmra.mxu0 %v829
        %v963 = vpop.f32.mrf.mxu0
        %v964 = vadd.f32 0.0, %v963
        %v965 = vpop.f32.mrf.mxu0
        %v966 = vpop.f32.mrf.mxu0
        %v967 = vadd.f32 0.0, %v966
        %v968 = vpop.f32.mrf.mxu0
        %969 = vmatprep.mubr.bf16.mxu0 0
        %970 = vmatmul.mubr.bf16.gmra.mxu0 %v830
        %v971 = vpop.f32.mrf.mxu0
        %v972 = vadd.f32 0.0, %v971
        %v973 = vpop.f32.mrf.mxu0
        %v974 = vpop.f32.mrf.mxu0
        %v975 = vadd.f32 0.0, %v974
        %v976 = vpop.f32.mrf.mxu0
        %977 = vmatprep.mubr.bf16.mxu0 0
        %978 = vmatmul.mubr.bf16.gmra.mxu0 %v831
        %v979 = vpop.f32.mrf.mxu0
        %v980 = vadd.f32 0.0, %v979
        %v981 = vpop.f32.mrf.mxu0
        %v982 = vpop.f32.mrf.mxu0
        %v983 = vadd.f32 0.0, %v982
        %v984 = vpop.f32.mrf.mxu0
        %985 = vmatprep.mubr.bf16.mxu0 0
        %986 = vmatmul.mubr.bf16.gmra.mxu0 %v832
        %v987 = vpop.f32.mrf.mxu0
        %v988 = vadd.f32 0.0, %v987
        %v989 = vpop.f32.mrf.mxu0
        %v990 = vpop.f32.mrf.mxu0
        %v991 = vadd.f32 0.0, %v990
        %v992 = vpop.f32.mrf.mxu0
        %993 = vdwg.mxu0
        %v994 = vld [vmem:[%s421] sm:$0x1]
        %v996 = vlaneseq
        %v997 = vshrl.u32 %v996, 7
        %v998 = vsub.s32 0, %v997
        %v999 = vrot.slane %v994, %v998
        %v1001 = vmul.f32 %v932, %v999
        %v1002 = vmul.f32 %v935, %v999
        %v1003 = vmul.f32 %v940, %v999
        %v1004 = vmul.f32 %v943, %v999
        %v1005 = vmul.f32 %v948, %v999
        %v1006 = vmul.f32 %v951, %v999
        %v1007 = vmul.f32 %v956, %v999
        %v1008 = vmul.f32 %v959, %v999
        %v1009 = vmul.f32 %v964, %v999
        %v1010 = vmul.f32 %v967, %v999
        %v1011 = vmul.f32 %v972, %v999
        %v1012 = vmul.f32 %v975, %v999
        %v1013 = vmul.f32 %v980, %v999
        %v1014 = vmul.f32 %v983, %v999
        %v1015 = vmul.f32 %v988, %v999
        %v1016 = vmul.f32 %v991, %v999
        %v1017 = vld [vmem:[%s424] sm:$0x1]
        %v1019 = vlaneseq
        %v1020 = vshrl.u32 %v1019, 7
        %v1021 = vsub.s32 0, %v1020
        %v1022 = vrot.slane %v1017, %v1021
        %v1024 = vadd.f32 %v1001, %v1022
        %v1025 = vadd.f32 %v1002, %v1022
        %v1026 = vadd.f32 %v1003, %v1022
        %v1027 = vadd.f32 %v1004, %v1022
        %v1028 = vadd.f32 %v1005, %v1022
        %v1029 = vadd.f32 %v1006, %v1022
        %v1030 = vadd.f32 %v1007, %v1022
        %v1031 = vadd.f32 %v1008, %v1022
        %v1032 = vadd.f32 %v1009, %v1022
        %v1033 = vadd.f32 %v1010, %v1022
        %v1034 = vadd.f32 %v1011, %v1022
        %v1035 = vadd.f32 %v1012, %v1022
        %v1036 = vadd.f32 %v1013, %v1022
        %v1037 = vadd.f32 %v1014, %v1022
        %v1038 = vadd.f32 %v1015, %v1022
        %v1039 = vadd.f32 %v1016, %v1022
        %v1040 = vld [vmem:[%s6] sm:$0x1]
        %v1041 = vld [vmem:[%s7] sm:$0x1]
        %1042 = vadd.xlane.f32.xlu0 %v1024
        %v1043 = vpop.xlane.xlu0 %1042
        %1044 = vadd.xlane.f32.xlu0 %v1025
        %v1045 = vpop.xlane.xlu0 %1044
        %1046 = vadd.xlane.f32.xlu0 %v1026
        %v1047 = vpop.xlane.xlu0 %1046
        %1048 = vadd.xlane.f32.xlu0 %v1027
        %v1049 = vpop.xlane.xlu0 %1048
        %1050 = vadd.xlane.f32.xlu0 %v1028
        %v1051 = vpop.xlane.xlu0 %1050
        %1052 = vadd.xlane.f32.xlu0 %v1029
        %v1053 = vpop.xlane.xlu0 %1052
        %1054 = vadd.xlane.f32.xlu0 %v1030
        %v1055 = vpop.xlane.xlu0 %1054
        %1056 = vadd.xlane.f32.xlu0 %v1031
        %v1057 = vpop.xlane.xlu0 %1056
        %1058 = vadd.xlane.f32.xlu0 %v1032
        %v1059 = vpop.xlane.xlu0 %1058
        %1060 = vadd.xlane.f32.xlu0 %v1033
        %v1061 = vpop.xlane.xlu0 %1060
        %1062 = vadd.xlane.f32.xlu0 %v1034
        %v1063 = vpop.xlane.xlu0 %1062
        %1064 = vadd.xlane.f32.xlu0 %v1035
        %v1065 = vpop.xlane.xlu0 %1064
        %1066 = vadd.xlane.f32.xlu0 %v1036
        %v1067 = vpop.xlane.xlu0 %1066
        %1068 = vadd.xlane.f32.xlu0 %v1037
        %v1069 = vpop.xlane.xlu0 %1068
        %1070 = vadd.xlane.f32.xlu0 %v1038
        %v1071 = vpop.xlane.xlu0 %1070
        %1072 = vadd.xlane.f32.xlu0 %v1039
        %v1073 = vpop.xlane.xlu0 %1072
        %v1074 = vmul.f32 %v1024, %v1024
        %v1075 = vmul.f32 %v1025, %v1025
        %v1076 = vmul.f32 %v1026, %v1026
        %v1077 = vmul.f32 %v1027, %v1027
        %v1078 = vmul.f32 %v1028, %v1028
        %v1079 = vmul.f32 %v1029, %v1029
        %v1080 = vmul.f32 %v1030, %v1030
        %v1081 = vmul.f32 %v1031, %v1031
        %v1082 = vmul.f32 %v1032, %v1032
        %v1083 = vmul.f32 %v1033, %v1033
        %v1084 = vmul.f32 %v1034, %v1034
        %v1085 = vmul.f32 %v1035, %v1035
        %v1086 = vmul.f32 %v1036, %v1036
        %v1087 = vmul.f32 %v1037, %v1037
        %v1088 = vmul.f32 %v1038, %v1038
        %v1089 = vmul.f32 %v1039, %v1039
        %1090 = vadd.xlane.f32.xlu0 %v1074
        %v1091 = vpop.xlane.xlu0 %1090
        %1092 = vadd.xlane.f32.xlu0 %v1075
        %v1093 = vpop.xlane.xlu0 %1092
        %1094 = vadd.xlane.f32.xlu0 %v1076
        %v1095 = vpop.xlane.xlu0 %1094
        %1096 = vadd.xlane.f32.xlu0 %v1077
        %v1097 = vpop.xlane.xlu0 %1096
        %1098 = vadd.xlane.f32.xlu0 %v1078
        %v1099 = vpop.xlane.xlu0 %1098
        %1100 = vadd.xlane.f32.xlu0 %v1079
        %v1101 = vpop.xlane.xlu0 %1100
        %1102 = vadd.xlane.f32.xlu0 %v1080
        %v1103 = vpop.xlane.xlu0 %1102
        %1104 = vadd.xlane.f32.xlu0 %v1081
        %v1105 = vpop.xlane.xlu0 %1104
        %1106 = vadd.xlane.f32.xlu0 %v1082
        %v1107 = vpop.xlane.xlu0 %1106
        %1108 = vadd.xlane.f32.xlu0 %v1083
        %v1109 = vpop.xlane.xlu0 %1108
        %1110 = vadd.xlane.f32.xlu0 %v1084
        %v1111 = vpop.xlane.xlu0 %1110
        %1112 = vadd.xlane.f32.xlu0 %v1085
        %v1113 = vpop.xlane.xlu0 %1112
        %1114 = vadd.xlane.f32.xlu0 %v1086
        %v1115 = vpop.xlane.xlu0 %1114
        %1116 = vadd.xlane.f32.xlu0 %v1087
        %v1117 = vpop.xlane.xlu0 %1116
        %1118 = vadd.xlane.f32.xlu0 %v1088
        %v1119 = vpop.xlane.xlu0 %1118
        %1120 = vadd.xlane.f32.xlu0 %v1089
        %v1121 = vpop.xlane.xlu0 %1120
        %v1122 = vmul.f32 %v1043, 0.0078125
        %v1123 = vmul.f32 %v1045, 0.0078125
        %v1124 = vmul.f32 %v1047, 0.0078125
        %v1125 = vmul.f32 %v1049, 0.0078125
        %v1126 = vmul.f32 %v1051, 0.0078125
        %v1127 = vmul.f32 %v1053, 0.0078125
        %v1128 = vmul.f32 %v1055, 0.0078125
        %v1129 = vmul.f32 %v1057, 0.0078125
        %v1130 = vmul.f32 %v1059, 0.0078125
        %v1131 = vmul.f32 %v1061, 0.0078125
        %v1132 = vmul.f32 %v1063, 0.0078125
        %v1133 = vmul.f32 %v1065, 0.0078125
        %v1134 = vmul.f32 %v1067, 0.0078125
        %v1135 = vmul.f32 %v1069, 0.0078125
        %v1136 = vmul.f32 %v1071, 0.0078125
        %v1137 = vmul.f32 %v1073, 0.0078125
        %v1138 = vmul.f32 %v1091, 0.0078125
        %v1139 = vmul.f32 %v1093, 0.0078125
        %v1140 = vmul.f32 %v1095, 0.0078125
        %v1141 = vmul.f32 %v1097, 0.0078125
        %v1142 = vmul.f32 %v1099, 0.0078125
        %v1143 = vmul.f32 %v1101, 0.0078125
        %v1144 = vmul.f32 %v1103, 0.0078125
        %v1145 = vmul.f32 %v1105, 0.0078125
        %v1146 = vmul.f32 %v1107, 0.0078125
        %v1147 = vmul.f32 %v1109, 0.0078125
        %v1148 = vmul.f32 %v1111, 0.0078125
        %v1149 = vmul.f32 %v1113, 0.0078125
        %v1150 = vmul.f32 %v1115, 0.0078125
        %v1151 = vmul.f32 %v1117, 0.0078125
        %v1152 = vmul.f32 %v1119, 0.0078125
        %v1153 = vmul.f32 %v1121, 0.0078125
        %v1154 = vmul.f32 %v1122, %v1122
        %v1155 = vmul.f32 %v1123, %v1123
        %v1156 = vmul.f32 %v1124, %v1124
        %v1157 = vmul.f32 %v1125, %v1125
        %v1158 = vmul.f32 %v1126, %v1126
        %v1159 = vmul.f32 %v1127, %v1127
        %v1160 = vmul.f32 %v1128, %v1128
        %v1161 = vmul.f32 %v1129, %v1129
        %v1162 = vmul.f32 %v1130, %v1130
        %v1163 = vmul.f32 %v1131, %v1131
        %v1164 = vmul.f32 %v1132, %v1132
        %v1165 = vmul.f32 %v1133, %v1133
        %v1166 = vmul.f32 %v1134, %v1134
        %v1167 = vmul.f32 %v1135, %v1135
        %v1168 = vmul.f32 %v1136, %v1136
        %v1169 = vmul.f32 %v1137, %v1137
        %v1170 = vsub.f32 %v1138, %v1154
        %v1171 = vsub.f32 %v1139, %v1155
        %v1172 = vsub.f32 %v1140, %v1156
        %v1173 = vsub.f32 %v1141, %v1157
        %v1174 = vsub.f32 %v1142, %v1158
        %v1175 = vsub.f32 %v1143, %v1159
        %v1176 = vsub.f32 %v1144, %v1160
        %v1177 = vsub.f32 %v1145, %v1161
        %v1178 = vsub.f32 %v1146, %v1162
        %v1179 = vsub.f32 %v1147, %v1163
        %v1180 = vsub.f32 %v1148, %v1164
        %v1181 = vsub.f32 %v1149, %v1165
        %v1182 = vsub.f32 %v1150, %v1166
        %v1183 = vsub.f32 %v1151, %v1167
        %v1184 = vsub.f32 %v1152, %v1168
        %v1185 = vsub.f32 %v1153, %v1169
        %v1186 = vmax.f32 %v1170, 0.0
        %v1187 = vmax.f32 %v1171, 0.0
        %v1188 = vmax.f32 %v1172, 0.0
        %v1189 = vmax.f32 %v1173, 0.0
        %v1190 = vmax.f32 %v1174, 0.0
        %v1191 = vmax.f32 %v1175, 0.0
        %v1192 = vmax.f32 %v1176, 0.0
        %v1193 = vmax.f32 %v1177, 0.0
        %v1194 = vmax.f32 %v1178, 0.0
        %v1195 = vmax.f32 %v1179, 0.0
        %v1196 = vmax.f32 %v1180, 0.0
        %v1197 = vmax.f32 %v1181, 0.0
        %v1198 = vmax.f32 %v1182, 0.0
        %v1199 = vmax.f32 %v1183, 0.0
        %v1200 = vmax.f32 %v1184, 0.0
        %v1201 = vmax.f32 %v1185, 0.0
        %v1202 = vsub.f32 %v1024, %v1122
        %v1203 = vsub.f32 %v1025, %v1123
        %v1204 = vsub.f32 %v1026, %v1124
        %v1205 = vsub.f32 %v1027, %v1125
        %v1206 = vsub.f32 %v1028, %v1126
        %v1207 = vsub.f32 %v1029, %v1127
        %v1208 = vsub.f32 %v1030, %v1128
        %v1209 = vsub.f32 %v1031, %v1129
        %v1210 = vsub.f32 %v1032, %v1130
        %v1211 = vsub.f32 %v1033, %v1131
        %v1212 = vsub.f32 %v1034, %v1132
        %v1213 = vsub.f32 %v1035, %v1133
        %v1214 = vsub.f32 %v1036, %v1134
        %v1215 = vsub.f32 %v1037, %v1135
        %v1216 = vsub.f32 %v1038, %v1136
        %v1217 = vsub.f32 %v1039, %v1137
        %v1218 = vadd.f32 %v1186, 1e-05
        %v1219 = vadd.f32 %v1187, 1e-05
        %v1220 = vadd.f32 %v1188, 1e-05
        %v1221 = vadd.f32 %v1189, 1e-05
        %v1222 = vadd.f32 %v1190, 1e-05
        %v1223 = vadd.f32 %v1191, 1e-05
        %v1224 = vadd.f32 %v1192, 1e-05
        %v1225 = vadd.f32 %v1193, 1e-05
        %v1226 = vadd.f32 %v1194, 1e-05
        %v1227 = vadd.f32 %v1195, 1e-05
        %v1228 = vadd.f32 %v1196, 1e-05
        %v1229 = vadd.f32 %v1197, 1e-05
        %v1230 = vadd.f32 %v1198, 1e-05
        %v1231 = vadd.f32 %v1199, 1e-05
        %v1232 = vadd.f32 %v1200, 1e-05
        %v1233 = vadd.f32 %v1201, 1e-05
        %v1234 = vrsqrt.pop %v1218
        %v1235 = vrsqrt.pop %v1219
        %v1236 = vrsqrt.pop %v1220
        %v1237 = vrsqrt.pop %v1221
        %v1238 = vrsqrt.pop %v1222
        %v1239 = vrsqrt.pop %v1223
        %v1240 = vrsqrt.pop %v1224
        %v1241 = vrsqrt.pop %v1225
        %v1242 = vrsqrt.pop %v1226
        %v1243 = vrsqrt.pop %v1227
        %v1244 = vrsqrt.pop %v1228
        %v1245 = vrsqrt.pop %v1229
        %v1246 = vrsqrt.pop %v1230
        %v1247 = vrsqrt.pop %v1231
        %v1248 = vrsqrt.pop %v1232
        %v1249 = vrsqrt.pop %v1233
        %v1250 = vmul.f32 %v1202, %v1234
        %v1251 = vmul.f32 %v1203, %v1235
        %v1252 = vmul.f32 %v1204, %v1236
        %v1253 = vmul.f32 %v1205, %v1237
        %v1254 = vmul.f32 %v1206, %v1238
        %v1255 = vmul.f32 %v1207, %v1239
        %v1256 = vmul.f32 %v1208, %v1240
        %v1257 = vmul.f32 %v1209, %v1241
        %v1258 = vmul.f32 %v1210, %v1242
        %v1259 = vmul.f32 %v1211, %v1243
        %v1260 = vmul.f32 %v1212, %v1244
        %v1261 = vmul.f32 %v1213, %v1245
        %v1262 = vmul.f32 %v1214, %v1246
        %v1263 = vmul.f32 %v1215, %v1247
        %v1264 = vmul.f32 %v1216, %v1248
        %v1265 = vmul.f32 %v1217, %v1249
        %v1267 = vlaneseq
        %v1268 = vshrl.u32 %v1267, 7
        %v1269 = vsub.s32 0, %v1268
        %v1270 = vrot.slane %v1040, %v1269
        %v1272 = vmul.f32 %v1250, %v1270
        %v1273 = vmul.f32 %v1251, %v1270
        %v1274 = vmul.f32 %v1252, %v1270
        %v1275 = vmul.f32 %v1253, %v1270
        %v1276 = vmul.f32 %v1254, %v1270
        %v1277 = vmul.f32 %v1255, %v1270
        %v1278 = vmul.f32 %v1256, %v1270
        %v1279 = vmul.f32 %v1257, %v1270
        %v1280 = vmul.f32 %v1258, %v1270
        %v1281 = vmul.f32 %v1259, %v1270
        %v1282 = vmul.f32 %v1260, %v1270
        %v1283 = vmul.f32 %v1261, %v1270
        %v1284 = vmul.f32 %v1262, %v1270
        %v1285 = vmul.f32 %v1263, %v1270
        %v1286 = vmul.f32 %v1264, %v1270
        %v1287 = vmul.f32 %v1265, %v1270
        %v1289 = vlaneseq
        %v1290 = vshrl.u32 %v1289, 7
        %v1291 = vsub.s32 0, %v1290
        %v1292 = vrot.slane %v1041, %v1291
        %v1294 = vadd.f32 %v1272, %v1292
        %v1295 = vadd.f32 %v1273, %v1292
        %v1296 = vadd.f32 %v1274, %v1292
        %v1297 = vadd.f32 %v1275, %v1292
        %v1298 = vadd.f32 %v1276, %v1292
        %v1299 = vadd.f32 %v1277, %v1292
        %v1300 = vadd.f32 %v1278, %v1292
        %v1301 = vadd.f32 %v1279, %v1292
        %v1302 = vadd.f32 %v1280, %v1292
        %v1303 = vadd.f32 %v1281, %v1292
        %v1304 = vadd.f32 %v1282, %v1292
        %v1305 = vadd.f32 %v1283, %v1292
        %v1306 = vadd.f32 %v1284, %v1292
        %v1307 = vadd.f32 %v1285, %v1292
        %v1308 = vadd.f32 %v1286, %v1292
        %v1309 = vadd.f32 %v1287, %v1292
        %v1310 = vxor.u32 %v1294, 2147483648
        %v1311 = vxor.u32 %v1295, 2147483648
        %v1312 = vxor.u32 %v1296, 2147483648
        %v1313 = vxor.u32 %v1297, 2147483648
        %v1314 = vxor.u32 %v1298, 2147483648
        %v1315 = vxor.u32 %v1299, 2147483648
        %v1316 = vxor.u32 %v1300, 2147483648
        %v1317 = vxor.u32 %v1301, 2147483648
        %v1318 = vxor.u32 %v1302, 2147483648
        %v1319 = vxor.u32 %v1303, 2147483648
        %v1320 = vxor.u32 %v1304, 2147483648
        %v1321 = vxor.u32 %v1305, 2147483648
        %v1322 = vxor.u32 %v1306, 2147483648
        %v1323 = vxor.u32 %v1307, 2147483648
        %v1324 = vxor.u32 %v1308, 2147483648
        %v1325 = vxor.u32 %v1309, 2147483648
        %v1326 = vmul.f32 %v1310, 1.442695
        %v1327 = vpow.pop %v1326
        %v1328 = vmul.f32 %v1311, 1.442695
        %v1329 = vpow.pop %v1328
        %v1330 = vmul.f32 %v1312, 1.442695
        %v1331 = vpow.pop %v1330
        %v1332 = vmul.f32 %v1313, 1.442695
        %v1333 = vpow.pop %v1332
        %v1334 = vmul.f32 %v1314, 1.442695
        %v1335 = vpow.pop %v1334
        %v1336 = vmul.f32 %v1315, 1.442695
        %v1337 = vpow.pop %v1336
        %v1338 = vmul.f32 %v1316, 1.442695
        %v1339 = vpow.pop %v1338
        %v1340 = vmul.f32 %v1317, 1.442695
        %v1341 = vpow.pop %v1340
        %v1342 = vmul.f32 %v1318, 1.442695
        %v1343 = vpow.pop %v1342
        %v1344 = vmul.f32 %v1319, 1.442695
        %v1345 = vpow.pop %v1344
        %v1346 = vmul.f32 %v1320, 1.442695
        %v1347 = vpow.pop %v1346
        %v1348 = vmul.f32 %v1321, 1.442695
        %v1349 = vpow.pop %v1348
        %v1350 = vmul.f32 %v1322, 1.442695
        %v1351 = vpow.pop %v1350
        %v1352 = vmul.f32 %v1323, 1.442695
        %v1353 = vpow.pop %v1352
        %v1354 = vmul.f32 %v1324, 1.442695
        %v1355 = vpow.pop %v1354
        %v1356 = vmul.f32 %v1325, 1.442695
        %v1357 = vpow.pop %v1356
        %v1358 = vadd.f32 %v1327, 1.0
        %v1359 = vadd.f32 %v1329, 1.0
        %v1360 = vadd.f32 %v1331, 1.0
        %v1361 = vadd.f32 %v1333, 1.0
        %v1362 = vadd.f32 %v1335, 1.0
        %v1363 = vadd.f32 %v1337, 1.0
        %v1364 = vadd.f32 %v1339, 1.0
        %v1365 = vadd.f32 %v1341, 1.0
        %v1366 = vadd.f32 %v1343, 1.0
        %v1367 = vadd.f32 %v1345, 1.0
        %v1368 = vadd.f32 %v1347, 1.0
        %v1369 = vadd.f32 %v1349, 1.0
        %v1370 = vadd.f32 %v1351, 1.0
        %v1371 = vadd.f32 %v1353, 1.0
        %v1372 = vadd.f32 %v1355, 1.0
        %v1373 = vadd.f32 %v1357, 1.0
        %v1374 = vrcp.pop %v1358
        %v1375 = vmul.f32 1.0, %v1374
        %v1376 = vrcp.pop %v1359
        %v1377 = vmul.f32 1.0, %v1376
        %v1378 = vrcp.pop %v1360
        %v1379 = vmul.f32 1.0, %v1378
        %v1380 = vrcp.pop %v1361
        %v1381 = vmul.f32 1.0, %v1380
        %v1382 = vrcp.pop %v1362
        %v1383 = vmul.f32 1.0, %v1382
        %v1384 = vrcp.pop %v1363
        %v1385 = vmul.f32 1.0, %v1384
        %v1386 = vrcp.pop %v1364
        %v1387 = vmul.f32 1.0, %v1386
        %v1388 = vrcp.pop %v1365
        %v1389 = vmul.f32 1.0, %v1388
        %v1390 = vrcp.pop %v1366
        %v1391 = vmul.f32 1.0, %v1390
        %v1392 = vrcp.pop %v1367
        %v1393 = vmul.f32 1.0, %v1392
        %v1394 = vrcp.pop %v1368
        %v1395 = vmul.f32 1.0, %v1394
        %v1396 = vrcp.pop %v1369
        %v1397 = vmul.f32 1.0, %v1396
        %v1398 = vrcp.pop %v1370
        %v1399 = vmul.f32 1.0, %v1398
        %v1400 = vrcp.pop %v1371
        %v1401 = vmul.f32 1.0, %v1400
        %v1402 = vrcp.pop %v1372
        %v1403 = vmul.f32 1.0, %v1402
        %v1404 = vrcp.pop %v1373
        %v1405 = vmul.f32 1.0, %v1404
        %v1406 = vmul.f32 %v1294, %v1375
        %v1407 = vmul.f32 %v1295, %v1377
        %v1408 = vmul.f32 %v1296, %v1379
        %v1409 = vmul.f32 %v1297, %v1381
        %v1410 = vmul.f32 %v1298, %v1383
        %v1411 = vmul.f32 %v1299, %v1385
        %v1412 = vmul.f32 %v1300, %v1387
        %v1413 = vmul.f32 %v1301, %v1389
        %v1414 = vmul.f32 %v1302, %v1391
        %v1415 = vmul.f32 %v1303, %v1393
        %v1416 = vmul.f32 %v1304, %v1395
        %v1417 = vmul.f32 %v1305, %v1397
        %v1418 = vmul.f32 %v1306, %v1399
        %v1419 = vmul.f32 %v1307, %v1401
        %v1420 = vmul.f32 %v1308, %v1403
        %v1421 = vmul.f32 %v1309, %v1405
        %v1422 = vpack.c.bf16 %v1407, %v1406
        %v1423 = vpack.c.bf16 %v1409, %v1408
        %v1424 = vpack.c.bf16 %v1411, %v1410
        %v1425 = vpack.c.bf16 %v1413, %v1412
        %v1426 = vpack.c.bf16 %v1415, %v1414
        %v1427 = vpack.c.bf16 %v1417, %v1416
        %v1428 = vpack.c.bf16 %v1419, %v1418
        %v1429 = vpack.c.bf16 %v1421, %v1420
        %v1430 = vld [vmem:[%s8] sm:$0xf]
        %v1431 = vld [vmem:[%s8 + $0x4] sm:$0xf]
        %v1432 = vld [vmem:[%s8 + $0x8] sm:$0xf]
        %v1433 = vld [vmem:[%s8 + $0xc] sm:$0xf]
        %v1434 = vld [vmem:[%s8 + $0x10] sm:$0xf]
        %v1435 = vld [vmem:[%s8 + $0x14] sm:$0xf]
        %v1436 = vld [vmem:[%s8 + $0x18] sm:$0xf]
        %v1437 = vld [vmem:[%s8 + $0x1c] sm:$0xf]
        %v1438 = vld [vmem:[%s8 + $0x20] sm:$0xf]
        %v1439 = vld [vmem:[%s8 + $0x24] sm:$0xf]
        %v1440 = vld [vmem:[%s8 + $0x28] sm:$0xf]
        %v1441 = vld [vmem:[%s8 + $0x2c] sm:$0xf]
        %v1442 = vld [vmem:[%s8 + $0x30] sm:$0xf]
        %v1443 = vld [vmem:[%s8 + $0x34] sm:$0xf]
        %v1444 = vld [vmem:[%s8 + $0x38] sm:$0xf]
        %v1445 = vld [vmem:[%s8 + $0x3c] sm:$0xf]
        %v1446 = vld [vmem:[%s9] sm:$0x1]
        %v1448 = vlaneseq
        %v1449 = vshrl.u32 %v1448, 7
        %v1450 = vsub.s32 0, %v1449
        %v1451 = vrot.slane %v1446, %v1450
        %v1469 = vunpack.c.l.b16 %v1430
        %v1470 = vunpack.c.l.b16 %v1431
        %v1471 = vunpack.c.l.b16 %v1432
        %v1472 = vunpack.c.l.b16 %v1433
        %v1473 = vunpack.c.l.b16 %v1434
        %v1474 = vunpack.c.l.b16 %v1435
        %v1475 = vunpack.c.l.b16 %v1436
        %v1476 = vunpack.c.l.b16 %v1437
        %v1477 = vunpack.c.l.b16 %v1438
        %v1478 = vunpack.c.l.b16 %v1439
        %v1479 = vunpack.c.l.b16 %v1440
        %v1480 = vunpack.c.l.b16 %v1441
        %v1481 = vunpack.c.l.b16 %v1442
        %v1482 = vunpack.c.l.b16 %v1443
        %v1483 = vunpack.c.l.b16 %v1444
        %v1484 = vunpack.c.l.b16 %v1445
        %v1485 = vpack.c.b16 %v1470, %v1469
        %v1486 = vpack.c.b16 %v1472, %v1471
        %v1487 = vpack.c.b16 %v1474, %v1473
        %v1488 = vpack.c.b16 %v1476, %v1475
        %v1489 = vpack.c.b16 %v1478, %v1477
        %v1490 = vpack.c.b16 %v1480, %v1479
        %v1491 = vpack.c.b16 %v1482, %v1481
        %v1492 = vpack.c.b16 %v1484, %v1483
        %1501 = vmatprep.subr.bf16.mxu0 0
        %1502 = vmatpush1.bf16.msra.mxu0 %v1492
        %1503 = vmatprep.subr.bf16.mxu0 0
        %1504 = vmatpush1.bf16.msra.mxu0 %v1491
        %1505 = vmatprep.subr.bf16.mxu0 0
        %1506 = vmatpush1.bf16.msra.mxu0 %v1490
        %1507 = vmatprep.subr.bf16.mxu0 0
        %1508 = vmatpush1.bf16.msra.mxu0 %v1489
        %1509 = vmatprep.subr.bf16.mxu0 0
        %1510 = vmatpush1.bf16.msra.mxu0 %v1488
        %1511 = vmatprep.subr.bf16.mxu0 0
        %1512 = vmatpush1.bf16.msra.mxu0 %v1487
        %1513 = vmatprep.subr.bf16.mxu0 0
        %1514 = vmatpush1.bf16.msra.mxu0 %v1486
        %1515 = vmatprep.subr.bf16.mxu0 0
        %1516 = vmatpush1.bf16.msra.mxu0 %v1485
        %1517 = vmatprep.subr.bf16.mxu0 0
        %1518 = vmatpush2.bf16.msra.mxu0 0
        %1519 = vmatprep.subr.bf16.mxu0 0
        %1520 = vmatpush2.bf16.msra.mxu0 0
        %1521 = vmatprep.subr.bf16.mxu0 0
        %1522 = vmatpush2.bf16.msra.mxu0 0
        %1523 = vmatprep.subr.bf16.mxu0 0
        %1524 = vmatpush2.bf16.msra.mxu0 0
        %1525 = vmatprep.subr.bf16.mxu0 0
        %1526 = vmatpush2.bf16.msra.mxu0 0
        %1527 = vmatprep.subr.bf16.mxu0 0
        %1528 = vmatpush2.bf16.msra.mxu0 0
        %1529 = vmatprep.subr.bf16.mxu0 0
        %1530 = vmatpush2.bf16.msra.mxu0 0
        %1531 = vmatprep.subr.bf16.mxu0 0
        %1532 = vmatpush2.bf16.msra.mxu0 0
        %1533 = vmatprep.mubr.bf16.mxu0 0
        %1534 = vmatmul.mubr.bf16.gmra.mxu0 %v1422
        %v1535 = vpop.f32.mrf.mxu0
        %v1536 = vadd.f32 %v1451, %v1535
        %v1537 = vpop.f32.mrf.mxu0
        %v1538 = vpop.f32.mrf.mxu0
        %v1539 = vadd.f32 %v1451, %v1538
        %v1540 = vpop.f32.mrf.mxu0
        %1541 = vmatprep.mubr.bf16.mxu0 0
        %1542 = vmatmul.mubr.bf16.gmra.mxu0 %v1423
        %v1543 = vpop.f32.mrf.mxu0
        %v1544 = vadd.f32 %v1451, %v1543
        %v1545 = vpop.f32.mrf.mxu0
        %v1546 = vpop.f32.mrf.mxu0
        %v1547 = vadd.f32 %v1451, %v1546
        %v1548 = vpop.f32.mrf.mxu0
        %1549 = vmatprep.mubr.bf16.mxu0 0
        %1550 = vmatmul.mubr.bf16.gmra.mxu0 %v1424
        %v1551 = vpop.f32.mrf.mxu0
        %v1552 = vadd.f32 %v1451, %v1551
        %v1553 = vpop.f32.mrf.mxu0
        %v1554 = vpop.f32.mrf.mxu0
        %v1555 = vadd.f32 %v1451, %v1554
        %v1556 = vpop.f32.mrf.mxu0
        %1557 = vmatprep.mubr.bf16.mxu0 0
        %1558 = vmatmul.mubr.bf16.gmra.mxu0 %v1425
        %v1559 = vpop.f32.mrf.mxu0
        %v1560 = vadd.f32 %v1451, %v1559
        %v1561 = vpop.f32.mrf.mxu0
        %v1562 = vpop.f32.mrf.mxu0
        %v1563 = vadd.f32 %v1451, %v1562
        %v1564 = vpop.f32.mrf.mxu0
        %1565 = vmatprep.mubr.bf16.mxu0 0
        %1566 = vmatmul.mubr.bf16.gmra.mxu0 %v1426
        %v1567 = vpop.f32.mrf.mxu0
        %v1568 = vadd.f32 %v1451, %v1567
        %v1569 = vpop.f32.mrf.mxu0
        %v1570 = vpop.f32.mrf.mxu0
        %v1571 = vadd.f32 %v1451, %v1570
        %v1572 = vpop.f32.mrf.mxu0
        %1573 = vmatprep.mubr.bf16.mxu0 0
        %1574 = vmatmul.mubr.bf16.gmra.mxu0 %v1427
        %v1575 = vpop.f32.mrf.mxu0
        %v1576 = vadd.f32 %v1451, %v1575
        %v1577 = vpop.f32.mrf.mxu0
        %v1578 = vpop.f32.mrf.mxu0
        %v1579 = vadd.f32 %v1451, %v1578
        %v1580 = vpop.f32.mrf.mxu0
        %1581 = vmatprep.mubr.bf16.mxu0 0
        %1582 = vmatmul.mubr.bf16.gmra.mxu0 %v1428
        %v1583 = vpop.f32.mrf.mxu0
        %v1584 = vadd.f32 %v1451, %v1583
        %v1585 = vpop.f32.mrf.mxu0
        %v1586 = vpop.f32.mrf.mxu0
        %v1587 = vadd.f32 %v1451, %v1586
        %v1588 = vpop.f32.mrf.mxu0
        %1589 = vmatprep.mubr.bf16.mxu0 0
        %1590 = vmatmul.mubr.bf16.gmra.mxu0 %v1429
        %v1591 = vpop.f32.mrf.mxu0
        %v1592 = vadd.f32 %v1451, %v1591
        %v1593 = vpop.f32.mrf.mxu0
        %v1594 = vpop.f32.mrf.mxu0
        %v1595 = vadd.f32 %v1451, %v1594
        %v1596 = vpop.f32.mrf.mxu0
        %1597 = vdwg.mxu0
        %v1598 = vadd.f32 %v427, %v1536
        %v1599 = vadd.f32 %v428, %v1539
        %v1600 = vadd.f32 %v429, %v1544
        %v1601 = vadd.f32 %v430, %v1547
        %v1602 = vadd.f32 %v431, %v1552
        %v1603 = vadd.f32 %v432, %v1555
        %v1604 = vadd.f32 %v433, %v1560
        %v1605 = vadd.f32 %v434, %v1563
        %v1606 = vadd.f32 %v435, %v1568
        %v1607 = vadd.f32 %v436, %v1571
        %v1608 = vadd.f32 %v437, %v1576
        %v1609 = vadd.f32 %v438, %v1579
        %v1610 = vadd.f32 %v439, %v1584
        %v1611 = vadd.f32 %v440, %v1587
        %v1612 = vadd.f32 %v441, %v1592
        %v1613 = vadd.f32 %v442, %v1595
        %1614 = vst [vmem:[%s417] sm:$0xff] %v1598
        %1615 = vst [vmem:[%s417 + $0x8] sm:$0xff] %v1599
        %1616 = vst [vmem:[%s417 + $0x10] sm:$0xff] %v1600
        %1617 = vst [vmem:[%s417 + $0x18] sm:$0xff] %v1601
        %1618 = vst [vmem:[%s417 + $0x20] sm:$0xff] %v1602
        %1619 = vst [vmem:[%s417 + $0x28] sm:$0xff] %v1603
        %1620 = vst [vmem:[%s417 + $0x30] sm:$0xff] %v1604
        %1621 = vst [vmem:[%s417 + $0x38] sm:$0xff] %v1605
        %1622 = vst [vmem:[%s417 + $0x40] sm:$0xff] %v1606
        %1623 = vst [vmem:[%s417 + $0x48] sm:$0xff] %v1607
        %1624 = vst [vmem:[%s417 + $0x50] sm:$0xff] %v1608
        %1625 = vst [vmem:[%s417 + $0x58] sm:$0xff] %v1609
        %1626 = vst [vmem:[%s417 + $0x60] sm:$0xff] %v1610
        %1627 = vst [vmem:[%s417 + $0x68] sm:$0xff] %v1611
        %1628 = vst [vmem:[%s417 + $0x70] sm:$0xff] %v1612
        %1629 = vst [vmem:[%s417 + $0x78] sm:$0xff] %v1613
        %s1630 = sand.u32 %s276, 1
        %s1631 = scalar_lea.sflag [#allocation4], %s1630
        %s1632 = sand.u32 %s276, 1
        %s1633 = smul.addr %s1632, 128
        %s1634 = scalar_lea.vmem [#allocation5], %s1633
        // Predicated region
        $region65: #{resblock_forward.1} parent=59 // pred_check
          %p1635 = pneg %p286
        $region66: #{resblock_forward.1} parent=59 // pred_check_branch
          %1637 = sbr.rel (%p1635) target = $region68
        $region67: #{resblock_forward.1} parent=59 // pred_region
          %s1638 = smul.u32 16, %s32
          %s1640 = ssub.s32 2048, 2048
          %1641 = vsyncadd %s1631, %s1640
          %s1642 = smul.addr %s31, 64
          %s1643 = sadd.s32 %s1638, %s1642
          %s1644 = smul.addr %s1643, 128
          %s1645 = scalar_lea.hbm %s10, %s1644
          %s1646 = sshll.u32 %s1634, 4
          %s1647 = int_to_ptr.vmem [resolvable:$true] %s1646
          %1652 = dma.vmem_to_hbm [thread:$0]  %s1647, 2048, %s1645, %s1631, 128, 128, 8
        $region68: #{resblock_forward.1} parent=59 // pred_fallthru
          _
      $region60: #{resblock_forward.1} parent=5 // pred_fallthru
        _
      %p1653 = scmp.le.s32.totalorder 2, %s22
      // Predicated region
      $region69: #{resblock_forward.1} parent=5 // pred_check
        %p1654 = pneg %p1653
      $region70: #{resblock_forward.1} parent=5 // pred_check_branch
        %1656 = sbr.rel (%p1654) target = $region72
      $region71: #{resblock_forward.1} parent=5 // pred_region
        %s1657 = ssub.s32 %s22, 2
        // Predicated region
        $region73: #{resblock_forward.1} parent=71 // pred_check
          %p1658 = pneg %p292
        $region74: #{resblock_forward.1} parent=71 // pred_check_branch
          %1660 = sbr.rel (%p1658) target = $region76
        $region75: #{resblock_forward.1} parent=71 // pred_region
          %s1661 = sand.u32 %s277, 1
          %s1662 = scalar_lea.sflag [#allocation4], %s1661
          %s1663 = sand.u32 %s277, 1
          %s1664 = smul.addr %s1663, 128
          %s1665 = scalar_lea.vmem [#allocation5], %s1664
          %1666 = dma.done %s1662, 2048
        $region76: #{resblock_forward.1} parent=71 // pred_fallthru
          _
      $region72: #{resblock_forward.1} parent=5 // pred_fallthru
        _
    $region6: #{resblock_forward.1} parent=1 // loop_footer
      %s26 = sadd.s32 1, %s22
    $region7: #{resblock_forward.1} parent=1 // loop_footer_branch
      %21 = sbr.rel target = $region3
    $region8: #{resblock_forward.1} parent=1 // loop_exit
      _
    %1667 = vsyncpa [#allocation3], 1
    %s1668 = scalar_lea.sflag [#allocation3], 1
    %1669 = vsyncpa %s1668, 1
    %1670 = vsyncpa [#allocation4], 1
    %s1671 = scalar_lea.sflag [#allocation4], 1
    %1672 = vsyncpa %s1671, 1

</llo_original>
